<compile_context>
chip_gen: v7x
topology: tpu7x:2x2x1
jax: 0.10.0
libtpu: 0.0.40
codegen_flags: <defaults>
</compile_context>

<pallas_src>
import jax
import jax.numpy as jnp
from jax.experimental import pallas as pl
from jax.experimental.pallas import tpu as pltpu


# ---------------------------------------------------------------------------
# Fused whole-block kernel (one batch element per grid step)
# ---------------------------------------------------------------------------
def _make_nb1d_kernel(H, W, P, d, residual_only):
    Wp = W + 2 * d                 # padded width
    Hp = H + 2 * d                 # padded height
    Mi = Hp * Wp                   # rows of the flattened padded canvas
    Mm = H * Wp                    # "middle" rows that contain real output positions
    off = d * Wp                   # flat offset of the first interior row

    def kernel(x_ref, w1_ref, w2_ref, w3_ref, w4_ref,
               b1_ref, b2_ref, b3_ref, b4_ref, mask_ref,
               o_ref, ca_ref, cb_ref):
        mask = mask_ref[...]                              # (Mm, 1): 0 on W-halo columns

        def conv3(src_ref, w_ref, b_ref, step, relu):
            """3-tap 1-D conv = three shifted (Mm,Cin)@(Cin,P) bf16 matmuls, f32 acc."""
            acc = None
            for t, s in enumerate((off - step, off, off + step)):
                lhs = src_ref[pl.ds(s, Mm), :].astype(jnp.bfloat16)
                term = jnp.dot(lhs, w_ref[t], preferred_element_type=jnp.float32)
                acc = term if acc is None else acc + term
            y = acc + b_ref[...]
            if relu:
                y = jnp.maximum(y, 0.0)
            return y * mask                               # keep halo columns exactly 0

        def store(dst_ref, y):
            zeros = jnp.zeros((off, P), dst_ref.dtype)
            dst_ref[pl.ds(0, off), :] = zeros             # top halo rows
            dst_ref[pl.ds(off + Mm, off), :] = zeros      # bottom halo rows
            dst_ref[pl.ds(off, Mm), :] = y.astype(dst_ref.dtype)

        # conv3x1_1 (+bias) + ReLU                  (conv along H, dilation 1)
        store(ca_ref, conv3(x_ref, w1_ref, b1_ref, Wp, True))
        # conv1x3_1 (+bias, BN1 folded) + ReLU      (conv along W, dilation 1)
        store(cb_ref, conv3(ca_ref, w2_ref, b2_ref, 1, True))
        # conv3x1_2 (+bias) + ReLU                  (conv along H, dilation d)
        store(ca_ref, conv3(cb_ref, w3_ref, b3_ref, d * Wp, True))
        # conv1x3_2 (+bias, BN2 folded)             (conv along W, dilation d)
        y = conv3(ca_ref, w4_ref, b4_ref, d, False)
        if not residual_only:                             # + identity, ReLU
            y = jnp.maximum(y + x_ref[pl.ds(off, Mm), :], 0.0)
        o_ref[...] = y

    return kernel


def _nb1d_pallas_call(x_canvas, fp, H, W, C, P, d, residual_only):
    B = x_canvas.shape[0]
    Wp, Hp = W + 2 * d, H + 2 * d
    Mi, Mm = Hp * Wp, H * Wp

    # 0/1 mask over flattened (H, Wp): zero out the W-halo columns of each row.
    col = jnp.arange(Wp, dtype=jnp.int32)
    mask = jnp.tile(((col >= d) & (col < d + W)).astype(jnp.float32), H).reshape(Mm, 1)

    kernel = _make_nb1d_kernel(H, W, P, d, residual_only)

    flops = int(B * (6 * Mm * C * P + 18 * Mm * P * P))
    bytes_accessed = int(B * Mi * C * 4                     # input canvas (f32)
                         + 2 * (3 * C * P + 9 * P * P)      # bf16 weights
                         + 16 * P + 4 * Mm                  # biases + mask
                         + B * Mm * P * 4)                  # output (f32)

    def wspec(cin):
        return pl.BlockSpec((3, cin, P), lambda b: (0, 0, 0))

    vspec = pl.BlockSpec((1, P), lambda b: (0, 0))

    return pl.pallas_call(
        kernel,
        out_shape=jax.ShapeDtypeStruct((B, Mm, P), jnp.float32),
        grid_spec=pltpu.PrefetchScalarGridSpec(
            num_scalar_prefetch=0,
            grid=(B,),
            in_specs=[
                pl.BlockSpec((None, Mi, C), lambda b: (b, 0, 0)),   # input canvas
                wspec(C), wspec(P), wspec(P), wspec(P),             # folded bf16 weights
                vspec, vspec, vspec, vspec,                         # folded f32 biases
                pl.BlockSpec((Mm, 1), lambda b: (0, 0)),            # column mask
            ],
            out_specs=pl.BlockSpec((None, Mm, P), lambda b: (b, 0, 0)),
            scratch_shapes=[pltpu.VMEM((Mi, P), jnp.float32),       # ping-pong canvases
                            pltpu.VMEM((Mi, P), jnp.float32)],
        ),
        compiler_params=pltpu.CompilerParams(dimension_semantics=("parallel",)),
        cost_estimate=pl.CostEstimate(flops=flops, transcendentals=0,
                                      bytes_accessed=bytes_accessed),
    )(x_canvas, fp["w1"], fp["w2"], fp["w3"], fp["w4"],
      fp["b1"], fp["b2"], fp["b3"], fp["b4"], mask)


# ---------------------------------------------------------------------------
# Public forward (PyTorch NCHW in / NCHW out)
# ---------------------------------------------------------------------------
def nonbottleneck1d_forward(x_nchw, folded, dilation=1, residual_only=False):
    # TODO(synk): stride != 1 and an external `downsample` module are not implemented
    #             (the module default is stride=1, downsample=None); Dropout2d(p=0)
    #             in the reference module is a no-op.
    B, C, H, W = x_nchw.shape
    P = folded["w1"].shape[-1]
    if not residual_only:
        assert C == P, "identity residual requires inplanes == planes (downsample=None)"
    d = int(dilation)

    x = jnp.transpose(x_nchw, (0, 2, 3, 1)).astype(jnp.float32)      # NCHW -> NHWC
    xp = jnp.pad(x, ((0, 0), (d, d), (d, d), (0, 0)))                # small halo pad only
    x_canvas = xp.reshape(B, (H + 2 * d) * (W + 2 * d), C)

    out = _nb1d_pallas_call(x_canvas, folded, H, W, C, P, d, residual_only)
    out = out.reshape(B, H, W + 2 * d, P)[:, :, d:d + W, :]          # drop W-halo columns
    return jnp.transpose(out, (0, 3, 1, 2))                          # NHWC -> NCHW


# ---------------------------------------------------------------------------
# Parameters (mirror the PyTorch layers) and BN folding
# ---------------------------------------------------------------------------
def make_nonbottleneck1d_params(key, inplanes, planes):
    ks = jax.random.split(key, 4)

    def conv(k, cin, cout):
        bound = (1.0 / (3 * cin)) ** 0.5           # ~ PyTorch default conv init scale
        kw, kb = jax.random.split(k)
        w = jax.random.uniform(kw, (3, cin, cout), jnp.float32, -bound, bound)
        b = jax.random.uniform(kb, (cout,), jnp.float32, -bound, bound)
        return w, b

    p = {}
    p["w1"], p["b1"] = conv(ks[0], inplanes, planes)   # conv3x1_1
    p["w2"], p["b2"] = conv(ks[1], planes, planes)     # conv1x3_1
    p["w3"], p["b3"] = conv(ks[2], planes, planes)     # conv3x1_2
    p["w4"], p["b4"] = conv(ks[3], planes, planes)     # conv1x3_2
    for name in ("bn1", "bn2"):                        # BatchNorm2d(planes, eps=1e-3) init
        p[f"{name}_gamma"] = jnp.ones((planes,), jnp.float32)
        p[f"{name}_beta"] = jnp.zeros((planes,), jnp.float32)
        p[f"{name}_mean"] = jnp.zeros((planes,), jnp.float32)
        p[f"{name}_var"] = jnp.ones((planes,), jnp.float32)
    return p


def fold_params(p, eps=1e-3):
    """Fold inference-mode BN into the preceding conv; cast weights to bf16."""
    def fold(w, b, g, beta, mean, var):
        s = g / jnp.sqrt(var + eps)
        return ((w * s[None, None, :]).astype(jnp.bfloat16),
                ((b - mean) * s + beta).reshape(1, -1))

    fp = {}
    fp["w1"], fp["b1"] = p["w1"].astype(jnp.bfloat16), p["b1"].reshape(1, -1)
    fp["w2"], fp["b2"] = fold(p["w2"], p["b2"], p["bn1_gamma"], p["bn1_beta"],
                              p["bn1_mean"], p["bn1_var"])
    fp["w3"], fp["b3"] = p["w3"].astype(jnp.bfloat16), p["b3"].reshape(1, -1)
    fp["w4"], fp["b4"] = fold(p["w4"], p["b4"], p["bn2_gamma"], p["bn2_beta"],
                              p["bn2_mean"], p["bn2_var"])
    return fp


# ---------------------------------------------------------------------------
# Pure-JAX reference mirroring the kernel's bf16-operand / f32-accumulate math
# ---------------------------------------------------------------------------
def nonbottleneck1d_reference(x_nchw, fp, dilation=1, residual_only=False):
    x = jnp.transpose(x_nchw, (0, 2, 3, 1)).astype(jnp.float32)
    B, H, W, _ = x.shape

    def conv1d(a, w, b, dil, axis):
        pad = [(0, 0)] * 4
        pad[axis] = (dil, dil)
        ap = jnp.pad(a.astype(jnp.bfloat16), pad)
        acc = jnp.zeros(a.shape[:3] + (w.shape[-1],), jnp.float32)
        for t in range(3):
            sl = (ap[:, t * dil:t * dil + H, :, :] if axis == 1
                  else ap[:, :, t * dil:t * dil + W, :])
            acc = acc + jnp.einsum("bhwc,cp->bhwp", sl, w[t],
                                   preferred_element_type=jnp.float32)
        return acc + b.reshape(1, 1, 1, -1)

    act = lambda v: jnp.maximum(v, 0.0)
    out = act(conv1d(x, fp["w1"], fp["b1"], 1, 1))           # conv3x1_1 + ReLU
    out = act(conv1d(out, fp["w2"], fp["b2"], 1, 2))         # conv1x3_1 + BN1 + ReLU
    out = act(conv1d(out, fp["w3"], fp["b3"], dilation, 1))  # conv3x1_2 + ReLU
    out = conv1d(out, fp["w4"], fp["b4"], dilation, 2)       # conv1x3_2 + BN2
    if not residual_only:
        out = act(out + x)
    return jnp.transpose(out, (0, 3, 1, 2))


if __name__ == "__main__":
    key = jax.random.PRNGKey(0)
    kp, kx = jax.random.split(key)

    B, C, H, W = 2, 128, 16, 16          # inplanes == planes == 128 (lane-dense channels)
    params = make_nonbottleneck1d_params(kp, C, C)
    fp = fold_params(params)
    x = jax.random.normal(kx, (B, C, H, W), dtype=jnp.float32)

    fwd = jax.jit(nonbottleneck1d_forward, static_argnames=("dilation", "residual_only"))

    # Standard block: stride=1, dilation=1, identity residual.
    out = fwd(x, fp, dilation=1, residual_only=False)
    jax.block_until_ready(out)
    ref = nonbottleneck1d_reference(x, fp, dilation=1, residual_only=False)
    assert out.shape == (B, C, H, W)
    assert bool(jnp.all(jnp.isfinite(out)))
    err = float(jnp.max(jnp.abs(out - ref)))
    assert err < 2e-2, f"mismatch vs reference: {err}"

    # Dilated variant with residual_only=True.
    out2 = fwd(x, fp, dilation=2, residual_only=True)
    jax.block_until_ready(out2)
    ref2 = nonbottleneck1d_reference(x, fp, dilation=2, residual_only=True)
    assert out2.shape == (B, C, H, W)
    assert bool(jnp.all(jnp.isfinite(out2)))
    err2 = float(jnp.max(jnp.abs(out2 - ref2)))
    assert err2 < 2e-2, f"dilated mismatch vs reference: {err2}"

    print("KERNEL_OK")
</pallas_src>

<mosaic_0001>
module attributes {stable_mosaic.version = 11 : i64} {
  func.func @kernel(%arg0: i32, %arg1: memref<1x324x128xf32, #tpu.memory_space<vmem>>, %arg2: memref<3x128x128xbf16, #tpu.memory_space<vmem>>, %arg3: memref<3x128x128xbf16, #tpu.memory_space<vmem>>, %arg4: memref<3x128x128xbf16, #tpu.memory_space<vmem>>, %arg5: memref<3x128x128xbf16, #tpu.memory_space<vmem>>, %arg6: memref<1x128xf32, #tpu.memory_space<vmem>>, %arg7: memref<1x128xf32, #tpu.memory_space<vmem>>, %arg8: memref<1x128xf32, #tpu.memory_space<vmem>>, %arg9: memref<1x128xf32, #tpu.memory_space<vmem>>, %arg10: memref<288x1xf32, #tpu.memory_space<vmem>>, %arg11: memref<1x288x128xf32, #tpu.memory_space<vmem>>, %arg12: memref<324x128xf32, #tpu.memory_space<vmem>>, %arg13: memref<324x128xf32, #tpu.memory_space<vmem>>) attributes {dimension_semantics = [#tpu.dimension_semantics<parallel>], iteration_bounds = array<i64: 2>, scalar_prefetch = 0 : i64, scratch_operands = 2 : i64, tpu.core_type = #tpu.core_type<tc>, window_params = [{transform_indices = @transform_0, window_bounds = array<i64: 1, 324, 128>}, {pipeline_mode = #tpu.pipeline_mode<synchronous>, transform_indices = @transform_1, window_bounds = array<i64: 3, 128, 128>}, {pipeline_mode = #tpu.pipeline_mode<synchronous>, transform_indices = @transform_2, window_bounds = array<i64: 3, 128, 128>}, {pipeline_mode = #tpu.pipeline_mode<synchronous>, transform_indices = @transform_3, window_bounds = array<i64: 3, 128, 128>}, {pipeline_mode = #tpu.pipeline_mode<synchronous>, transform_indices = @transform_4, window_bounds = array<i64: 3, 128, 128>}, {pipeline_mode = #tpu.pipeline_mode<synchronous>, transform_indices = @transform_5, window_bounds = array<i64: 1, 128>}, {pipeline_mode = #tpu.pipeline_mode<synchronous>, transform_indices = @transform_6, window_bounds = array<i64: 1, 128>}, {pipeline_mode = #tpu.pipeline_mode<synchronous>, transform_indices = @transform_7, window_bounds = array<i64: 1, 128>}, {pipeline_mode = #tpu.pipeline_mode<synchronous>, transform_indices = @transform_8, window_bounds = array<i64: 1, 128>}, {pipeline_mode = #tpu.pipeline_mode<synchronous>, transform_indices = @transform_9, window_bounds = array<i64: 288, 1>}, {transform_indices = @transform_10, window_bounds = array<i64: 1, 288, 128>}]} {
    %c0 = arith.constant 0 : index
    %c0_0 = arith.constant 0 : index
    %0 = vector.load %arg10[%c0, %c0_0] : memref<288x1xf32, #tpu.memory_space<vmem>>, vector<288x1xf32>
    %c0_1 = arith.constant 0 : index
    %c0_2 = arith.constant 0 : index
    %c0_3 = arith.constant 0 : index
    %1 = vector.load %arg1[%c0_1, %c0_2, %c0_3] : memref<1x324x128xf32, #tpu.memory_space<vmem>>, vector<1x288x128xf32>
    %2 = vector.shape_cast %1 : vector<1x288x128xf32> to vector<288x128xf32>
    %3 = arith.truncf %2 : vector<288x128xf32> to vector<288x128xbf16>
    %c0_4 = arith.constant 0 : index
    %c0_5 = arith.constant 0 : index
    %c0_6 = arith.constant 0 : index
    %4 = vector.load %arg2[%c0_4, %c0_5, %c0_6] : memref<3x128x128xbf16, #tpu.memory_space<vmem>>, vector<1x128x128xbf16>
    %5 = vector.shape_cast %4 : vector<1x128x128xbf16> to vector<128x128xbf16>
    %cst = arith.constant dense<0.000000e+00> : vector<288x128xf32>
    %6 = tpu.matmul %3, %5, %cst {dimension_numbers = #tpu.dot_dimension_numbers<[1], [0], [0], [1], [0, 0, 1, 1], [], []>} : vector<288x128xbf16>, vector<128x128xbf16>, vector<288x128xf32> -> vector<288x128xf32>
    %c0_7 = arith.constant 0 : index
    %c18 = arith.constant 18 : index
    %c0_8 = arith.constant 0 : index
    %7 = vector.load %arg1[%c0_7, %c18, %c0_8] : memref<1x324x128xf32, #tpu.memory_space<vmem>>, vector<1x288x128xf32>
    %8 = vector.shape_cast %7 : vector<1x288x128xf32> to vector<288x128xf32>
    %9 = arith.truncf %8 : vector<288x128xf32> to vector<288x128xbf16>
    %c1 = arith.constant 1 : index
    %c0_9 = arith.constant 0 : index
    %c0_10 = arith.constant 0 : index
    %10 = vector.load %arg2[%c1, %c0_9, %c0_10] : memref<3x128x128xbf16, #tpu.memory_space<vmem>>, vector<1x128x128xbf16>
    %11 = vector.shape_cast %10 : vector<1x128x128xbf16> to vector<128x128xbf16>
    %cst_11 = arith.constant dense<0.000000e+00> : vector<288x128xf32>
    %12 = tpu.matmul %9, %11, %cst_11 {dimension_numbers = #tpu.dot_dimension_numbers<[1], [0], [0], [1], [0, 0, 1, 1], [], []>} : vector<288x128xbf16>, vector<128x128xbf16>, vector<288x128xf32> -> vector<288x128xf32>
    %13 = arith.addf %6, %12 : vector<288x128xf32>
    %c0_12 = arith.constant 0 : index
    %c36 = arith.constant 36 : index
    %c0_13 = arith.constant 0 : index
    %14 = vector.load %arg1[%c0_12, %c36, %c0_13] : memref<1x324x128xf32, #tpu.memory_space<vmem>>, vector<1x288x128xf32>
    %15 = vector.shape_cast %14 : vector<1x288x128xf32> to vector<288x128xf32>
    %16 = arith.truncf %15 : vector<288x128xf32> to vector<288x128xbf16>
    %c2 = arith.constant 2 : index
    %c0_14 = arith.constant 0 : index
    %c0_15 = arith.constant 0 : index
    %17 = vector.load %arg2[%c2, %c0_14, %c0_15] : memref<3x128x128xbf16, #tpu.memory_space<vmem>>, vector<1x128x128xbf16>
    %18 = vector.shape_cast %17 : vector<1x128x128xbf16> to vector<128x128xbf16>
    %cst_16 = arith.constant dense<0.000000e+00> : vector<288x128xf32>
    %19 = tpu.matmul %16, %18, %cst_16 {dimension_numbers = #tpu.dot_dimension_numbers<[1], [0], [0], [1], [0, 0, 1, 1], [], []>} : vector<288x128xbf16>, vector<128x128xbf16>, vector<288x128xf32> -> vector<288x128xf32>
    %20 = arith.addf %13, %19 : vector<288x128xf32>
    %c0_17 = arith.constant 0 : index
    %c0_18 = arith.constant 0 : index
    %21 = vector.load %arg6[%c0_17, %c0_18] : memref<1x128xf32, #tpu.memory_space<vmem>>, vector<1x128xf32>
    %22 = vector.broadcast %21 : vector<1x128xf32> to vector<288x128xf32>
    %23 = arith.addf %20, %22 : vector<288x128xf32>
    %cst_19 = arith.constant 0.000000e+00 : f32
    %24 = vector.broadcast %cst_19 : f32 to vector<288x128xf32>
    %25 = arith.maximumf %23, %24 : vector<288x128xf32>
    %26 = vector.broadcast %0 : vector<288x1xf32> to vector<288x128xf32>
    %27 = arith.mulf %25, %26 : vector<288x128xf32>
    %cst_20 = arith.constant 0.000000e+00 : f32
    %28 = vector.broadcast %cst_20 : f32 to vector<18x128xf32>
    %c0_21 = arith.constant 0 : index
    %c0_22 = arith.constant 0 : index
    %29 = vector.load %arg12[%c0_21, %c0_22] : memref<324x128xf32, #tpu.memory_space<vmem>>, vector<18x128xf32>
    tpu.vector_store %arg12[%c0_21, %c0_22], %28 {strides = array<i32>} : memref<324x128xf32, #tpu.memory_space<vmem>>, vector<18x128xf32>,
    %c306 = arith.constant 306 : index
    %c0_23 = arith.constant 0 : index
    %30 = vector.load %arg12[%c306, %c0_23] : memref<324x128xf32, #tpu.memory_space<vmem>>, vector<18x128xf32>
    tpu.vector_store %arg12[%c306, %c0_23], %28 {strides = array<i32>} : memref<324x128xf32, #tpu.memory_space<vmem>>, vector<18x128xf32>,
    %c18_24 = arith.constant 18 : index
    %c0_25 = arith.constant 0 : index
    %31 = vector.load %arg12[%c18_24, %c0_25] : memref<324x128xf32, #tpu.memory_space<vmem>>, vector<288x128xf32>
    tpu.vector_store %arg12[%c18_24, %c0_25], %27 {strides = array<i32>} : memref<324x128xf32, #tpu.memory_space<vmem>>, vector<288x128xf32>,
    %c17 = arith.constant 17 : index
    %c0_26 = arith.constant 0 : index
    %32 = vector.load %arg12[%c17, %c0_26] : memref<324x128xf32, #tpu.memory_space<vmem>>, vector<288x128xf32>
    %33 = arith.truncf %32 : vector<288x128xf32> to vector<288x128xbf16>
    %c0_27 = arith.constant 0 : index
    %c0_28 = arith.constant 0 : index
    %c0_29 = arith.constant 0 : index
    %34 = vector.load %arg3[%c0_27, %c0_28, %c0_29] : memref<3x128x128xbf16, #tpu.memory_space<vmem>>, vector<1x128x128xbf16>
    %35 = vector.shape_cast %34 : vector<1x128x128xbf16> to vector<128x128xbf16>
    %cst_30 = arith.constant dense<0.000000e+00> : vector<288x128xf32>
    %36 = tpu.matmul %33, %35, %cst_30 {dimension_numbers = #tpu.dot_dimension_numbers<[1], [0], [0], [1], [0, 0, 1, 1], [], []>} : vector<288x128xbf16>, vector<128x128xbf16>, vector<288x128xf32> -> vector<288x128xf32>
    %c18_31 = arith.constant 18 : index
    %c0_32 = arith.constant 0 : index
    %37 = vector.load %arg12[%c18_31, %c0_32] : memref<324x128xf32, #tpu.memory_space<vmem>>, vector<288x128xf32>
    %38 = arith.truncf %37 : vector<288x128xf32> to vector<288x128xbf16>
    %c1_33 = arith.constant 1 : index
    %c0_34 = arith.constant 0 : index
    %c0_35 = arith.constant 0 : index
    %39 = vector.load %arg3[%c1_33, %c0_34, %c0_35] : memref<3x128x128xbf16, #tpu.memory_space<vmem>>, vector<1x128x128xbf16>
    %40 = vector.shape_cast %39 : vector<1x128x128xbf16> to vector<128x128xbf16>
    %cst_36 = arith.constant dense<0.000000e+00> : vector<288x128xf32>
    %41 = tpu.matmul %38, %40, %cst_36 {dimension_numbers = #tpu.dot_dimension_numbers<[1], [0], [0], [1], [0, 0, 1, 1], [], []>} : vector<288x128xbf16>, vector<128x128xbf16>, vector<288x128xf32> -> vector<288x128xf32>
    %42 = arith.addf %36, %41 : vector<288x128xf32>
    %c19 = arith.constant 19 : index
    %c0_37 = arith.constant 0 : index
    %43 = vector.load %arg12[%c19, %c0_37] : memref<324x128xf32, #tpu.memory_space<vmem>>, vector<288x128xf32>
    %44 = arith.truncf %43 : vector<288x128xf32> to vector<288x128xbf16>
    %c2_38 = arith.constant 2 : index
    %c0_39 = arith.constant 0 : index
    %c0_40 = arith.constant 0 : index
    %45 = vector.load %arg3[%c2_38, %c0_39, %c0_40] : memref<3x128x128xbf16, #tpu.memory_space<vmem>>, vector<1x128x128xbf16>
    %46 = vector.shape_cast %45 : vector<1x128x128xbf16> to vector<128x128xbf16>
    %cst_41 = arith.constant dense<0.000000e+00> : vector<288x128xf32>
    %47 = tpu.matmul %44, %46, %cst_41 {dimension_numbers = #tpu.dot_dimension_numbers<[1], [0], [0], [1], [0, 0, 1, 1], [], []>} : vector<288x128xbf16>, vector<128x128xbf16>, vector<288x128xf32> -> vector<288x128xf32>
    %48 = arith.addf %42, %47 : vector<288x128xf32>
    %c0_42 = arith.constant 0 : index
    %c0_43 = arith.constant 0 : index
    %49 = vector.load %arg7[%c0_42, %c0_43] : memref<1x128xf32, #tpu.memory_space<vmem>>, vector<1x128xf32>
    %50 = vector.broadcast %49 : vector<1x128xf32> to vector<288x128xf32>
    %51 = arith.addf %48, %50 : vector<288x128xf32>
    %cst_44 = arith.constant 0.000000e+00 : f32
    %52 = vector.broadcast %cst_44 : f32 to vector<288x128xf32>
    %53 = arith.maximumf %51, %52 : vector<288x128xf32>
    %54 = vector.broadcast %0 : vector<288x1xf32> to vector<288x128xf32>
    %55 = arith.mulf %53, %54 : vector<288x128xf32>
    %cst_45 = arith.constant 0.000000e+00 : f32
    %56 = vector.broadcast %cst_45 : f32 to vector<18x128xf32>
    %c0_46 = arith.constant 0 : index
    %c0_47 = arith.constant 0 : index
    %57 = vector.load %arg13[%c0_46, %c0_47] : memref<324x128xf32, #tpu.memory_space<vmem>>, vector<18x128xf32>
    tpu.vector_store %arg13[%c0_46, %c0_47], %56 {strides = array<i32>} : memref<324x128xf32, #tpu.memory_space<vmem>>, vector<18x128xf32>,
    %c306_48 = arith.constant 306 : index
    %c0_49 = arith.constant 0 : index
    %58 = vector.load %arg13[%c306_48, %c0_49] : memref<324x128xf32, #tpu.memory_space<vmem>>, vector<18x128xf32>
    tpu.vector_store %arg13[%c306_48, %c0_49], %56 {strides = array<i32>} : memref<324x128xf32, #tpu.memory_space<vmem>>, vector<18x128xf32>,
    %c18_50 = arith.constant 18 : index
    %c0_51 = arith.constant 0 : index
    %59 = vector.load %arg13[%c18_50, %c0_51] : memref<324x128xf32, #tpu.memory_space<vmem>>, vector<288x128xf32>
    tpu.vector_store %arg13[%c18_50, %c0_51], %55 {strides = array<i32>} : memref<324x128xf32, #tpu.memory_space<vmem>>, vector<288x128xf32>,
    %c0_52 = arith.constant 0 : index
    %c0_53 = arith.constant 0 : index
    %60 = vector.load %arg13[%c0_52, %c0_53] : memref<324x128xf32, #tpu.memory_space<vmem>>, vector<288x128xf32>
    %61 = arith.truncf %60 : vector<288x128xf32> to vector<288x128xbf16>
    %c0_54 = arith.constant 0 : index
    %c0_55 = arith.constant 0 : index
    %c0_56 = arith.constant 0 : index
    %62 = vector.load %arg4[%c0_54, %c0_55, %c0_56] : memref<3x128x128xbf16, #tpu.memory_space<vmem>>, vector<1x128x128xbf16>
    %63 = vector.shape_cast %62 : vector<1x128x128xbf16> to vector<128x128xbf16>
    %cst_57 = arith.constant dense<0.000000e+00> : vector<288x128xf32>
    %64 = tpu.matmul %61, %63, %cst_57 {dimension_numbers = #tpu.dot_dimension_numbers<[1], [0], [0], [1], [0, 0, 1, 1], [], []>} : vector<288x128xbf16>, vector<128x128xbf16>, vector<288x128xf32> -> vector<288x128xf32>
    %c18_58 = arith.constant 18 : index
    %c0_59 = arith.constant 0 : index
    %65 = vector.load %arg13[%c18_58, %c0_59] : memref<324x128xf32, #tpu.memory_space<vmem>>, vector<288x128xf32>
    %66 = arith.truncf %65 : vector<288x128xf32> to vector<288x128xbf16>
    %c1_60 = arith.constant 1 : index
    %c0_61 = arith.constant 0 : index
    %c0_62 = arith.constant 0 : index
    %67 = vector.load %arg4[%c1_60, %c0_61, %c0_62] : memref<3x128x128xbf16, #tpu.memory_space<vmem>>, vector<1x128x128xbf16>
    %68 = vector.shape_cast %67 : vector<1x128x128xbf16> to vector<128x128xbf16>
    %cst_63 = arith.constant dense<0.000000e+00> : vector<288x128xf32>
    %69 = tpu.matmul %66, %68, %cst_63 {dimension_numbers = #tpu.dot_dimension_numbers<[1], [0], [0], [1], [0, 0, 1, 1], [], []>} : vector<288x128xbf16>, vector<128x128xbf16>, vector<288x128xf32> -> vector<288x128xf32>
    %70 = arith.addf %64, %69 : vector<288x128xf32>
    %c36_64 = arith.constant 36 : index
    %c0_65 = arith.constant 0 : index
    %71 = vector.load %arg13[%c36_64, %c0_65] : memref<324x128xf32, #tpu.memory_space<vmem>>, vector<288x128xf32>
    %72 = arith.truncf %71 : vector<288x128xf32> to vector<288x128xbf16>
    %c2_66 = arith.constant 2 : index
    %c0_67 = arith.constant 0 : index
    %c0_68 = arith.constant 0 : index
    %73 = vector.load %arg4[%c2_66, %c0_67, %c0_68] : memref<3x128x128xbf16, #tpu.memory_space<vmem>>, vector<1x128x128xbf16>
    %74 = vector.shape_cast %73 : vector<1x128x128xbf16> to vector<128x128xbf16>
    %cst_69 = arith.constant dense<0.000000e+00> : vector<288x128xf32>
    %75 = tpu.matmul %72, %74, %cst_69 {dimension_numbers = #tpu.dot_dimension_numbers<[1], [0], [0], [1], [0, 0, 1, 1], [], []>} : vector<288x128xbf16>, vector<128x128xbf16>, vector<288x128xf32> -> vector<288x128xf32>
    %76 = arith.addf %70, %75 : vector<288x128xf32>
    %c0_70 = arith.constant 0 : index
    %c0_71 = arith.constant 0 : index
    %77 = vector.load %arg8[%c0_70, %c0_71] : memref<1x128xf32, #tpu.memory_space<vmem>>, vector<1x128xf32>
    %78 = vector.broadcast %77 : vector<1x128xf32> to vector<288x128xf32>
    %79 = arith.addf %76, %78 : vector<288x128xf32>
    %cst_72 = arith.constant 0.000000e+00 : f32
    %80 = vector.broadcast %cst_72 : f32 to vector<288x128xf32>
    %81 = arith.maximumf %79, %80 : vector<288x128xf32>
    %82 = vector.broadcast %0 : vector<288x1xf32> to vector<288x128xf32>
    %83 = arith.mulf %81, %82 : vector<288x128xf32>
    %cst_73 = arith.constant 0.000000e+00 : f32
    %84 = vector.broadcast %cst_73 : f32 to vector<18x128xf32>
    %c0_74 = arith.constant 0 : index
    %c0_75 = arith.constant 0 : index
    %85 = vector.load %arg12[%c0_74, %c0_75] : memref<324x128xf32, #tpu.memory_space<vmem>>, vector<18x128xf32>
    tpu.vector_store %arg12[%c0_74, %c0_75], %84 {strides = array<i32>} : memref<324x128xf32, #tpu.memory_space<vmem>>, vector<18x128xf32>,
    %c306_76 = arith.constant 306 : index
    %c0_77 = arith.constant 0 : index
    %86 = vector.load %arg12[%c306_76, %c0_77] : memref<324x128xf32, #tpu.memory_space<vmem>>, vector<18x128xf32>
    tpu.vector_store %arg12[%c306_76, %c0_77], %84 {strides = array<i32>} : memref<324x128xf32, #tpu.memory_space<vmem>>, vector<18x128xf32>,
    %c18_78 = arith.constant 18 : index
    %c0_79 = arith.constant 0 : index
    %87 = vector.load %arg12[%c18_78, %c0_79] : memref<324x128xf32, #tpu.memory_space<vmem>>, vector<288x128xf32>
    tpu.vector_store %arg12[%c18_78, %c0_79], %83 {strides = array<i32>} : memref<324x128xf32, #tpu.memory_space<vmem>>, vector<288x128xf32>,
    %c17_80 = arith.constant 17 : index
    %c0_81 = arith.constant 0 : index
    %88 = vector.load %arg12[%c17_80, %c0_81] : memref<324x128xf32, #tpu.memory_space<vmem>>, vector<288x128xf32>
    %89 = arith.truncf %88 : vector<288x128xf32> to vector<288x128xbf16>
    %c0_82 = arith.constant 0 : index
    %c0_83 = arith.constant 0 : index
    %c0_84 = arith.constant 0 : index
    %90 = vector.load %arg5[%c0_82, %c0_83, %c0_84] : memref<3x128x128xbf16, #tpu.memory_space<vmem>>, vector<1x128x128xbf16>
    %91 = vector.shape_cast %90 : vector<1x128x128xbf16> to vector<128x128xbf16>
    %cst_85 = arith.constant dense<0.000000e+00> : vector<288x128xf32>
    %92 = tpu.matmul %89, %91, %cst_85 {dimension_numbers = #tpu.dot_dimension_numbers<[1], [0], [0], [1], [0, 0, 1, 1], [], []>} : vector<288x128xbf16>, vector<128x128xbf16>, vector<288x128xf32> -> vector<288x128xf32>
    %c18_86 = arith.constant 18 : index
    %c0_87 = arith.constant 0 : index
    %93 = vector.load %arg12[%c18_86, %c0_87] : memref<324x128xf32, #tpu.memory_space<vmem>>, vector<288x128xf32>
    %94 = arith.truncf %93 : vector<288x128xf32> to vector<288x128xbf16>
    %c1_88 = arith.constant 1 : index
    %c0_89 = arith.constant 0 : index
    %c0_90 = arith.constant 0 : index
    %95 = vector.load %arg5[%c1_88, %c0_89, %c0_90] : memref<3x128x128xbf16, #tpu.memory_space<vmem>>, vector<1x128x128xbf16>
    %96 = vector.shape_cast %95 : vector<1x128x128xbf16> to vector<128x128xbf16>
    %cst_91 = arith.constant dense<0.000000e+00> : vector<288x128xf32>
    %97 = tpu.matmul %94, %96, %cst_91 {dimension_numbers = #tpu.dot_dimension_numbers<[1], [0], [0], [1], [0, 0, 1, 1], [], []>} : vector<288x128xbf16>, vector<128x128xbf16>, vector<288x128xf32> -> vector<288x128xf32>
    %98 = arith.addf %92, %97 : vector<288x128xf32>
    %c19_92 = arith.constant 19 : index
    %c0_93 = arith.constant 0 : index
    %99 = vector.load %arg12[%c19_92, %c0_93] : memref<324x128xf32, #tpu.memory_space<vmem>>, vector<288x128xf32>
    %100 = arith.truncf %99 : vector<288x128xf32> to vector<288x128xbf16>
    %c2_94 = arith.constant 2 : index
    %c0_95 = arith.constant 0 : index
    %c0_96 = arith.constant 0 : index
    %101 = vector.load %arg5[%c2_94, %c0_95, %c0_96] : memref<3x128x128xbf16, #tpu.memory_space<vmem>>, vector<1x128x128xbf16>
    %102 = vector.shape_cast %101 : vector<1x128x128xbf16> to vector<128x128xbf16>
    %cst_97 = arith.constant dense<0.000000e+00> : vector<288x128xf32>
    %103 = tpu.matmul %100, %102, %cst_97 {dimension_numbers = #tpu.dot_dimension_numbers<[1], [0], [0], [1], [0, 0, 1, 1], [], []>} : vector<288x128xbf16>, vector<128x128xbf16>, vector<288x128xf32> -> vector<288x128xf32>
    %104 = arith.addf %98, %103 : vector<288x128xf32>
    %c0_98 = arith.constant 0 : index
    %c0_99 = arith.constant 0 : index
    %105 = vector.load %arg9[%c0_98, %c0_99] : memref<1x128xf32, #tpu.memory_space<vmem>>, vector<1x128xf32>
    %106 = vector.broadcast %105 : vector<1x128xf32> to vector<288x128xf32>
    %107 = arith.addf %104, %106 : vector<288x128xf32>
    %108 = vector.broadcast %0 : vector<288x1xf32> to vector<288x128xf32>
    %109 = arith.mulf %107, %108 : vector<288x128xf32>
    %c0_100 = arith.constant 0 : index
    %c18_101 = arith.constant 18 : index
    %c0_102 = arith.constant 0 : index
    %110 = vector.load %arg1[%c0_100, %c18_101, %c0_102] : memref<1x324x128xf32, #tpu.memory_space<vmem>>, vector<1x288x128xf32>
    %111 = vector.shape_cast %110 : vector<1x288x128xf32> to vector<288x128xf32>
    %112 = arith.addf %109, %111 : vector<288x128xf32>
    %cst_103 = arith.constant 0.000000e+00 : f32
    %113 = vector.broadcast %cst_103 : f32 to vector<288x128xf32>
    %114 = arith.maximumf %112, %113 : vector<288x128xf32>
    %c0_104 = arith.constant 0 : index
    %c0_105 = arith.constant 0 : index
    %c0_106 = arith.constant 0 : index
    %115 = vector.load %arg11[%c0_104, %c0_105, %c0_106] : memref<1x288x128xf32, #tpu.memory_space<vmem>>, vector<1x288x128xf32>
    %116 = vector.shape_cast %115 : vector<1x288x128xf32> to vector<288x128xf32>
    %117 = vector.shape_cast %114 : vector<288x128xf32> to vector<1x288x128xf32>
    tpu.vector_store %arg11[%c0_104, %c0_105, %c0_106], %117 {strides = array<i32>} : memref<1x288x128xf32, #tpu.memory_space<vmem>>, vector<1x288x128xf32>,
    return
  }
  func.func @transform_0(%arg0: i32) -> (i32, i32, i32) {
    %c0_i32 = arith.constant 0 : i32
    %c0_i32_0 = arith.constant 0 : i32
    %c0_i32_1 = arith.constant 0 : i32
    return %arg0, %c0_i32, %c0_i32_0 : i32, i32, i32
  }
  func.func @transform_1(%arg0: i32) -> (i32, i32, i32) {
    %c0_i32 = arith.constant 0 : i32
    %c0_i32_0 = arith.constant 0 : i32
    %c0_i32_1 = arith.constant 0 : i32
    %c0_i32_2 = arith.constant 0 : i32
    return %c0_i32, %c0_i32_0, %c0_i32_1 : i32, i32, i32
  }
  func.func @transform_2(%arg0: i32) -> (i32, i32, i32) {
    %c0_i32 = arith.constant 0 : i32
    %c0_i32_0 = arith.constant 0 : i32
    %c0_i32_1 = arith.constant 0 : i32
    %c0_i32_2 = arith.constant 0 : i32
    return %c0_i32, %c0_i32_0, %c0_i32_1 : i32, i32, i32
  }
  func.func @transform_3(%arg0: i32) -> (i32, i32, i32) {
    %c0_i32 = arith.constant 0 : i32
    %c0_i32_0 = arith.constant 0 : i32
    %c0_i32_1 = arith.constant 0 : i32
    %c0_i32_2 = arith.constant 0 : i32
    return %c0_i32, %c0_i32_0, %c0_i32_1 : i32, i32, i32
  }
  func.func @transform_4(%arg0: i32) -> (i32, i32, i32) {
    %c0_i32 = arith.constant 0 : i32
    %c0_i32_0 = arith.constant 0 : i32
    %c0_i32_1 = arith.constant 0 : i32
    %c0_i32_2 = arith.constant 0 : i32
    return %c0_i32, %c0_i32_0, %c0_i32_1 : i32, i32, i32
  }
  func.func @transform_5(%arg0: i32) -> (i32, i32) {
    %c0_i32 = arith.constant 0 : i32
    %c0_i32_0 = arith.constant 0 : i32
    %c0_i32_1 = arith.constant 0 : i32
    return %c0_i32, %c0_i32_0 : i32, i32
  }
  func.func @transform_6(%arg0: i32) -> (i32, i32) {
    %c0_i32 = arith.constant 0 : i32
    %c0_i32_0 = arith.constant 0 : i32
    %c0_i32_1 = arith.constant 0 : i32
    return %c0_i32, %c0_i32_0 : i32, i32
  }
  func.func @transform_7(%arg0: i32) -> (i32, i32) {
    %c0_i32 = arith.constant 0 : i32
    %c0_i32_0 = arith.constant 0 : i32
    %c0_i32_1 = arith.constant 0 : i32
    return %c0_i32, %c0_i32_0 : i32, i32
  }
  func.func @transform_8(%arg0: i32) -> (i32, i32) {
    %c0_i32 = arith.constant 0 : i32
    %c0_i32_0 = arith.constant 0 : i32
    %c0_i32_1 = arith.constant 0 : i32
    return %c0_i32, %c0_i32_0 : i32, i32
  }
  func.func @transform_9(%arg0: i32) -> (i32, i32) {
    %c0_i32 = arith.constant 0 : i32
    %c0_i32_0 = arith.constant 0 : i32
    %c0_i32_1 = arith.constant 0 : i32
    return %c0_i32, %c0_i32_0 : i32, i32
  }
  func.func @transform_10(%arg0: i32) -> (i32, i32, i32) {
    %c0_i32 = arith.constant 0 : i32
    %c0_i32_0 = arith.constant 0 : i32
    %c0_i32_1 = arith.constant 0 : i32
    return %arg0, %c0_i32, %c0_i32_0 : i32, i32, i32
  }
}

</mosaic_0001>

<llo_original>
// kernel: tile.8
$region0: #{tile.8}
  #allocation0 [shape = 's32[1]{0}', space=sflag, size = 0x4, scoped, tag = 'scoped memory for tile.8']
  %s0 = inlined_call_operand.vmem [shape: f32[18], index: 0, kind: input, shape index: {}]
  %s1 = inlined_call_operand.vmem [shape: f32[16,18], index: 1, kind: output, shape index: {}]
  // Predicated region
  $region2: #{tile.8} parent=0 // pred_check
    _
  $region3: #{tile.8} parent=0 // pred_check_branch
    %3 = sbr.rel (0) target = $region5
  $region4: #{tile.8} parent=0 // pred_region
    _
  $region5: #{tile.8} parent=0 // pred_fallthru
    _
  %v4 = vld [vmem:[%s0] ss:$0 sm:$0xff]
  %5 = vst [vmem:[%s1] sm:$0xff] %v4
  %s6 = scalar_lea.vmem %s1, 8
  %7 = vst [vmem:[%s6] sm:$0xff] %v4

// kernel: tile.0
$region0: #{tile.0}
  %s0 = inlined_call_operand.vmem [shape: f32[16,18], index: 0, kind: input, shape index: {}]
  %s1 = inlined_call_operand.vmem [shape: f32[288,1], index: 1, kind: output, shape index: {}]
  %v2 = vld [vmem:[%s0] sm:$0xff]
  %vm3 = vcmask 7168
  %4 = vst.msk [vmem:[%s1] ss:$18 sm:$0xff] %vm3, %v2
  %s5 = scalar_lea.vmem %s0, 8
  %v6 = vld [vmem:[%s5] sm:$0xff]
  %vm7 = vcmask 7168
  %s8 = scalar_lea.vmem %s1, 144
  %9 = vst.msk [vmem:[%s8] ss:$18 sm:$0xff] %vm7, %v6
  %v10 = vld.sshfl [vmem:[%s0] sm:$0xff pattern:$0xf6d4b290]
  %11 = vrot.lane.b32.xlu0 %v10, 127
  %v12 = vpop.permute.xlu0 %11
  %vm13 = vcmask 7168
  %s14 = scalar_lea.vmem %s1, 1
  %15 = vst.msk [vmem:[%s14] ss:$162 sm:$0x3] %vm13, %v12
  %s16 = scalar_lea.vmem %s1, 4294967009
  %17 = vst.msk [vmem:[%s16] ss:$162 sm:$0xc] %vm13, %v12
  %s18 = scalar_lea.vmem %s1, 4294966721
  %19 = vst.msk [vmem:[%s18] ss:$162 sm:$0x30] %vm13, %v12
  %s20 = scalar_lea.vmem %s1, 4294966433
  %21 = vst.msk [vmem:[%s20] ss:$162 sm:$0xc0] %vm13, %v12
  %s22 = scalar_lea.vmem %s0, 1
  %v23 = vld.sshfl [vmem:[%s22] sm:$0xff pattern:$0x6d4b2907]
  %24 = vrot.lane.b32.xlu0 %v23, 127
  %v25 = vpop.permute.xlu0 %24
  %vm26 = vcmask 7168
  %s27 = scalar_lea.vmem %s1, 145
  %28 = vst.msk [vmem:[%s27] ss:$-126 sm:$0x3] %vm26, %v25
  %s29 = scalar_lea.vmem %s1, 433
  %30 = vst.msk [vmem:[%s29] ss:$-126 sm:$0xc] %vm26, %v25
  %s31 = scalar_lea.vmem %s1, 721
  %32 = vst.msk [vmem:[%s31] ss:$-126 sm:$0x30] %vm26, %v25
  %s33 = scalar_lea.vmem %s1, 1009
  %34 = vst.msk [vmem:[%s33] ss:$-126 sm:$0xc0] %vm26, %v25
  %v35 = vld.sshfl [vmem:[%s0] sm:$0xff pattern:$0x6d4b2907]
  %36 = vrot.lane.b32.xlu0 %v35, 126
  %v37 = vpop.permute.xlu0 %36
  %vm38 = vcmask 7168
  %s39 = scalar_lea.vmem %s1, 128
  %40 = vst.msk [vmem:[%s39] ss:$-126 sm:$0x3] %vm38, %v37
  %s41 = scalar_lea.vmem %s1, 416
  %42 = vst.msk [vmem:[%s41] ss:$-126 sm:$0xc] %vm38, %v37
  %s43 = scalar_lea.vmem %s1, 704
  %44 = vst.msk [vmem:[%s43] ss:$-126 sm:$0x30] %vm38, %v37
  %s45 = scalar_lea.vmem %s1, 992
  %46 = vst.msk [vmem:[%s45] ss:$-126 sm:$0xc0] %vm38, %v37
  %s47 = scalar_lea.vmem %s0, 1
  %v48 = vld.sshfl [vmem:[%s47] sm:$0xff pattern:$0xd4b2907e]
  %49 = vrot.lane.b32.xlu0 %v48, 126
  %v50 = vpop.permute.xlu0 %49
  %vm51 = vcmask 7168
  %s52 = scalar_lea.vmem %s1, 272
  %53 = vst.msk [vmem:[%s52] ss:$-126 sm:$0x7] %vm51, %v50
  %s54 = scalar_lea.vmem %s1, 560
  %55 = vst.msk [vmem:[%s54] ss:$-126 sm:$0x18] %vm51, %v50
  %s56 = scalar_lea.vmem %s1, 848
  %57 = vst.msk [vmem:[%s56] ss:$-126 sm:$0x60] %vm51, %v50
  %s58 = scalar_lea.vmem %s1, 247
  %59 = vst.msk [vmem:[%s58] sm:$0x80] %vm51, %v50
  %v60 = vld.sshfl [vmem:[%s0] sm:$0xff pattern:$0x6d4b2907]
  %61 = vrot.lane.b32.xlu0 %v60, 125
  %v62 = vpop.permute.xlu0 %61
  %vm63 = vcmask 7168
  %s64 = scalar_lea.vmem %s1, 129
  %65 = vst.msk [vmem:[%s64] ss:$-126 sm:$0x3] %vm63, %v62
  %s66 = scalar_lea.vmem %s1, 417
  %67 = vst.msk [vmem:[%s66] ss:$-126 sm:$0xc] %vm63, %v62
  %s68 = scalar_lea.vmem %s1, 705
  %69 = vst.msk [vmem:[%s68] ss:$-126 sm:$0x30] %vm63, %v62
  %s70 = scalar_lea.vmem %s1, 993
  %71 = vst.msk [vmem:[%s70] ss:$-126 sm:$0xc0] %vm63, %v62
  %s72 = scalar_lea.vmem %s0, 1
  %v73 = vld.sshfl [vmem:[%s72] sm:$0xff pattern:$0xd4b2907e]
  %74 = vrot.lane.b32.xlu0 %v73, 125
  %v75 = vpop.permute.xlu0 %74
  %vm76 = vcmask 7168
  %s77 = scalar_lea.vmem %s1, 273
  %78 = vst.msk [vmem:[%s77] ss:$-126 sm:$0x7] %vm76, %v75
  %s79 = scalar_lea.vmem %s1, 561
  %80 = vst.msk [vmem:[%s79] ss:$-126 sm:$0x18] %vm76, %v75
  %s81 = scalar_lea.vmem %s1, 849
  %82 = vst.msk [vmem:[%s81] ss:$-126 sm:$0x60] %vm76, %v75
  %s83 = scalar_lea.vmem %s1, 248
  %84 = vst.msk [vmem:[%s83] sm:$0x80] %vm76, %v75
  %v85 = vld.sshfl [vmem:[%s0] sm:$0xff pattern:$0xd4b2907e]
  %86 = vrot.lane.b32.xlu0 %v85, 124
  %v87 = vpop.permute.xlu0 %86
  %vm88 = vcmask 7168
  %s89 = scalar_lea.vmem %s1, 256
  %90 = vst.msk [vmem:[%s89] ss:$-126 sm:$0x7] %vm88, %v87
  %s91 = scalar_lea.vmem %s1, 544
  %92 = vst.msk [vmem:[%s91] ss:$-126 sm:$0x18] %vm88, %v87
  %s93 = scalar_lea.vmem %s1, 832
  %94 = vst.msk [vmem:[%s93] ss:$-126 sm:$0x60] %vm88, %v87
  %s95 = scalar_lea.vmem %s1, 231
  %96 = vst.msk [vmem:[%s95] sm:$0x80] %vm88, %v87
  %s97 = scalar_lea.vmem %s0, 1
  %v98 = vld.sshfl [vmem:[%s97] sm:$0xff pattern:$0x4b2907e5]
  %99 = vrot.lane.b32.xlu0 %v98, 124
  %v100 = vpop.permute.xlu0 %99
  %vm101 = vcmask 7168
  %s102 = scalar_lea.vmem %s1, 112
  %103 = vst.msk [vmem:[%s102] ss:$162 sm:$0x3] %vm101, %v100
  %s104 = scalar_lea.vmem %s1, 400
  %105 = vst.msk [vmem:[%s104] ss:$-126 sm:$0xc] %vm101, %v100
  %s106 = scalar_lea.vmem %s1, 688
  %107 = vst.msk [vmem:[%s106] ss:$-126 sm:$0x30] %vm101, %v100
  %s108 = scalar_lea.vmem %s1, 976
  %109 = vst.msk [vmem:[%s108] ss:$-126 sm:$0xc0] %vm101, %v100
  %v110 = vld.sshfl [vmem:[%s0] sm:$0xff pattern:$0xd4b2907e]
  %111 = vrot.lane.b32.xlu0 %v110, 123
  %v112 = vpop.permute.xlu0 %111
  %vm113 = vcmask 7168
  %s114 = scalar_lea.vmem %s1, 257
  %115 = vst.msk [vmem:[%s114] ss:$-126 sm:$0x7] %vm113, %v112
  %s116 = scalar_lea.vmem %s1, 545
  %117 = vst.msk [vmem:[%s116] ss:$-126 sm:$0x18] %vm113, %v112
  %s118 = scalar_lea.vmem %s1, 833
  %119 = vst.msk [vmem:[%s118] ss:$-126 sm:$0x60] %vm113, %v112
  %s120 = scalar_lea.vmem %s1, 232
  %121 = vst.msk [vmem:[%s120] sm:$0x80] %vm113, %v112
  %s122 = scalar_lea.vmem %s0, 1
  %v123 = vld.sshfl [vmem:[%s122] sm:$0xff pattern:$0x4b2907e5]
  %124 = vrot.lane.b32.xlu0 %v123, 123
  %v125 = vpop.permute.xlu0 %124
  %vm126 = vcmask 7168
  %s127 = scalar_lea.vmem %s1, 113
  %128 = vst.msk [vmem:[%s127] ss:$162 sm:$0x3] %vm126, %v125
  %s129 = scalar_lea.vmem %s1, 401
  %130 = vst.msk [vmem:[%s129] ss:$-126 sm:$0xc] %vm126, %v125
  %s131 = scalar_lea.vmem %s1, 689
  %132 = vst.msk [vmem:[%s131] ss:$-126 sm:$0x30] %vm126, %v125
  %s133 = scalar_lea.vmem %s1, 977
  %134 = vst.msk [vmem:[%s133] ss:$-126 sm:$0xc0] %vm126, %v125
  %v135 = vld.sshfl [vmem:[%s0] sm:$0xff pattern:$0x4b2907e5]
  %136 = vrot.lane.b32.xlu0 %v135, 122
  %v137 = vpop.permute.xlu0 %136
  %vm138 = vcmask 7168
  %s139 = scalar_lea.vmem %s1, 96
  %140 = vst.msk [vmem:[%s139] ss:$162 sm:$0x3] %vm138, %v137
  %s141 = scalar_lea.vmem %s1, 384
  %142 = vst.msk [vmem:[%s141] ss:$-126 sm:$0xc] %vm138, %v137
  %s143 = scalar_lea.vmem %s1, 672
  %144 = vst.msk [vmem:[%s143] ss:$-126 sm:$0x30] %vm138, %v137
  %s145 = scalar_lea.vmem %s1, 960
  %146 = vst.msk [vmem:[%s145] ss:$-126 sm:$0xc0] %vm138, %v137
  %s147 = scalar_lea.vmem %s0, 1
  %v148 = vld.sshfl [vmem:[%s147] sm:$0xff pattern:$0xb2907e5c]
  %149 = vrot.lane.b32.xlu0 %v148, 122
  %v150 = vpop.permute.xlu0 %149
  %vm151 = vcmask 7168
  %s152 = scalar_lea.vmem %s1, 240
  %153 = vst.msk [vmem:[%s152] ss:$-126 sm:$0x3] %vm151, %v150
  %s154 = scalar_lea.vmem %s1, 528
  %155 = vst.msk [vmem:[%s154] ss:$-126 sm:$0x1c] %vm151, %v150
  %s156 = scalar_lea.vmem %s1, 816
  %157 = vst.msk [vmem:[%s156] ss:$-126 sm:$0x60] %vm151, %v150
  %s158 = scalar_lea.vmem %s1, 215
  %159 = vst.msk [vmem:[%s158] sm:$0x80] %vm151, %v150
  %v160 = vld.sshfl [vmem:[%s0] sm:$0xff pattern:$0x4b2907e5]
  %161 = vrot.lane.b32.xlu0 %v160, 121
  %v162 = vpop.permute.xlu0 %161
  %vm163 = vcmask 7168
  %s164 = scalar_lea.vmem %s1, 97
  %165 = vst.msk [vmem:[%s164] ss:$162 sm:$0x3] %vm163, %v162
  %s166 = scalar_lea.vmem %s1, 385
  %167 = vst.msk [vmem:[%s166] ss:$-126 sm:$0xc] %vm163, %v162
  %s168 = scalar_lea.vmem %s1, 673
  %169 = vst.msk [vmem:[%s168] ss:$-126 sm:$0x30] %vm163, %v162
  %s170 = scalar_lea.vmem %s1, 961
  %171 = vst.msk [vmem:[%s170] ss:$-126 sm:$0xc0] %vm163, %v162
  %s172 = scalar_lea.vmem %s0, 1
  %v173 = vld.sshfl [vmem:[%s172] sm:$0xff pattern:$0xb2907e5c]
  %174 = vrot.lane.b32.xlu0 %v173, 121
  %v175 = vpop.permute.xlu0 %174
  %vm176 = vcmask 7168
  %s177 = scalar_lea.vmem %s1, 241
  %178 = vst.msk [vmem:[%s177] ss:$-126 sm:$0x3] %vm176, %v175
  %s179 = scalar_lea.vmem %s1, 529
  %180 = vst.msk [vmem:[%s179] ss:$-126 sm:$0x1c] %vm176, %v175
  %s181 = scalar_lea.vmem %s1, 817
  %182 = vst.msk [vmem:[%s181] ss:$-126 sm:$0x60] %vm176, %v175
  %s183 = scalar_lea.vmem %s1, 216
  %184 = vst.msk [vmem:[%s183] sm:$0x80] %vm176, %v175
  %v185 = vld.sshfl [vmem:[%s0] sm:$0xff pattern:$0xb2907e5c]
  %186 = vrot.lane.b32.xlu0 %v185, 120
  %v187 = vpop.permute.xlu0 %186
  %vm188 = vcmask 7168
  %s189 = scalar_lea.vmem %s1, 224
  %190 = vst.msk [vmem:[%s189] ss:$-126 sm:$0x3] %vm188, %v187
  %s191 = scalar_lea.vmem %s1, 512
  %192 = vst.msk [vmem:[%s191] ss:$-126 sm:$0x1c] %vm188, %v187
  %s193 = scalar_lea.vmem %s1, 800
  %194 = vst.msk [vmem:[%s193] ss:$-126 sm:$0x60] %vm188, %v187
  %s195 = scalar_lea.vmem %s1, 199
  %196 = vst.msk [vmem:[%s195] sm:$0x80] %vm188, %v187
  %s197 = scalar_lea.vmem %s0, 1
  %v198 = vld.sshfl [vmem:[%s197] sm:$0xff pattern:$0x2907e5c3]
  %199 = vrot.lane.b32.xlu0 %v198, 120
  %v200 = vpop.permute.xlu0 %199
  %vm201 = vcmask 7168
  %s202 = scalar_lea.vmem %s1, 80
  %203 = vst.msk [vmem:[%s202] ss:$162 sm:$0x3] %vm201, %v200
  %s204 = scalar_lea.vmem %s1, 4294967088
  %205 = vst.msk [vmem:[%s204] ss:$162 sm:$0xc] %vm201, %v200
  %s206 = scalar_lea.vmem %s1, 656
  %207 = vst.msk [vmem:[%s206] ss:$-126 sm:$0x30] %vm201, %v200
  %s208 = scalar_lea.vmem %s1, 944
  %209 = vst.msk [vmem:[%s208] ss:$-126 sm:$0xc0] %vm201, %v200
  %v210 = vld.sshfl [vmem:[%s0] sm:$0xff pattern:$0xb2907e5c]
  %211 = vrot.lane.b32.xlu0 %v210, 119
  %v212 = vpop.permute.xlu0 %211
  %vm213 = vcmask 7168
  %s214 = scalar_lea.vmem %s1, 225
  %215 = vst.msk [vmem:[%s214] ss:$-126 sm:$0x3] %vm213, %v212
  %s216 = scalar_lea.vmem %s1, 513
  %217 = vst.msk [vmem:[%s216] ss:$-126 sm:$0x1c] %vm213, %v212
  %s218 = scalar_lea.vmem %s1, 801
  %219 = vst.msk [vmem:[%s218] ss:$-126 sm:$0x60] %vm213, %v212
  %s220 = scalar_lea.vmem %s1, 200
  %221 = vst.msk [vmem:[%s220] sm:$0x80] %vm213, %v212
  %s222 = scalar_lea.vmem %s0, 1
  %v223 = vld.sshfl [vmem:[%s222] sm:$0xff pattern:$0x2907e5c3]
  %224 = vrot.lane.b32.xlu0 %v223, 119
  %v225 = vpop.permute.xlu0 %224
  %vm226 = vcmask 7168
  %s227 = scalar_lea.vmem %s1, 81
  %228 = vst.msk [vmem:[%s227] ss:$162 sm:$0x3] %vm226, %v225
  %s229 = scalar_lea.vmem %s1, 4294967089
  %230 = vst.msk [vmem:[%s229] ss:$162 sm:$0xc] %vm226, %v225
  %s231 = scalar_lea.vmem %s1, 657
  %232 = vst.msk [vmem:[%s231] ss:$-126 sm:$0x30] %vm226, %v225
  %s233 = scalar_lea.vmem %s1, 945
  %234 = vst.msk [vmem:[%s233] ss:$-126 sm:$0xc0] %vm226, %v225
  %v235 = vld.sshfl [vmem:[%s0] sm:$0xff pattern:$0x2907e5c3]
  %236 = vrot.lane.b32.xlu0 %v235, 118
  %v237 = vpop.permute.xlu0 %236
  %vm238 = vcmask 7168
  %s239 = scalar_lea.vmem %s1, 64
  %240 = vst.msk [vmem:[%s239] ss:$162 sm:$0x3] %vm238, %v237
  %s241 = scalar_lea.vmem %s1, 4294967072
  %242 = vst.msk [vmem:[%s241] ss:$162 sm:$0xc] %vm238, %v237
  %s243 = scalar_lea.vmem %s1, 640
  %244 = vst.msk [vmem:[%s243] ss:$-126 sm:$0x30] %vm238, %v237
  %s245 = scalar_lea.vmem %s1, 928
  %246 = vst.msk [vmem:[%s245] ss:$-126 sm:$0xc0] %vm238, %v237
  %s247 = scalar_lea.vmem %s0, 1
  %v248 = vld.sshfl [vmem:[%s247] sm:$0xff pattern:$0x907e5c3a]
  %249 = vrot.lane.b32.xlu0 %v248, 118
  %v250 = vpop.permute.xlu0 %249
  %vm251 = vcmask 7168
  %s252 = scalar_lea.vmem %s1, 208
  %253 = vst.msk [vmem:[%s252] ss:$-126 sm:$0x3] %vm251, %v250
  %s254 = scalar_lea.vmem %s1, 496
  %255 = vst.msk [vmem:[%s254] ss:$-126 sm:$0xc] %vm251, %v250
  %s256 = scalar_lea.vmem %s1, 784
  %257 = vst.msk [vmem:[%s256] ss:$-126 sm:$0x70] %vm251, %v250
  %s258 = scalar_lea.vmem %s1, 183
  %259 = vst.msk [vmem:[%s258] sm:$0x80] %vm251, %v250
  %v260 = vld.sshfl [vmem:[%s0] sm:$0xff pattern:$0x2907e5c3]
  %261 = vrot.lane.b32.xlu0 %v260, 117
  %v262 = vpop.permute.xlu0 %261
  %vm263 = vcmask 7168
  %s264 = scalar_lea.vmem %s1, 65
  %265 = vst.msk [vmem:[%s264] ss:$162 sm:$0x3] %vm263, %v262
  %s266 = scalar_lea.vmem %s1, 4294967073
  %267 = vst.msk [vmem:[%s266] ss:$162 sm:$0xc] %vm263, %v262
  %s268 = scalar_lea.vmem %s1, 641
  %269 = vst.msk [vmem:[%s268] ss:$-126 sm:$0x30] %vm263, %v262
  %s270 = scalar_lea.vmem %s1, 929
  %271 = vst.msk [vmem:[%s270] ss:$-126 sm:$0xc0] %vm263, %v262
  %s272 = scalar_lea.vmem %s0, 1
  %v273 = vld.sshfl [vmem:[%s272] sm:$0xff pattern:$0x907e5c3a]
  %274 = vrot.lane.b32.xlu0 %v273, 117
  %v275 = vpop.permute.xlu0 %274
  %vm276 = vcmask 7168
  %s277 = scalar_lea.vmem %s1, 209
  %278 = vst.msk [vmem:[%s277] ss:$-126 sm:$0x3] %vm276, %v275
  %s279 = scalar_lea.vmem %s1, 497
  %280 = vst.msk [vmem:[%s279] ss:$-126 sm:$0xc] %vm276, %v275
  %s281 = scalar_lea.vmem %s1, 785
  %282 = vst.msk [vmem:[%s281] ss:$-126 sm:$0x70] %vm276, %v275
  %s283 = scalar_lea.vmem %s1, 184
  %284 = vst.msk [vmem:[%s283] sm:$0x80] %vm276, %v275
  %v285 = vld.sshfl [vmem:[%s0] sm:$0xff pattern:$0x907e5c3a]
  %286 = vrot.lane.b32.xlu0 %v285, 116
  %v287 = vpop.permute.xlu0 %286
  %vm288 = vcmask 7168
  %s289 = scalar_lea.vmem %s1, 192
  %290 = vst.msk [vmem:[%s289] ss:$-126 sm:$0x3] %vm288, %v287
  %s291 = scalar_lea.vmem %s1, 480
  %292 = vst.msk [vmem:[%s291] ss:$-126 sm:$0xc] %vm288, %v287
  %s293 = scalar_lea.vmem %s1, 768
  %294 = vst.msk [vmem:[%s293] ss:$-126 sm:$0x70] %vm288, %v287
  %s295 = scalar_lea.vmem %s1, 167
  %296 = vst.msk [vmem:[%s295] sm:$0x80] %vm288, %v287
  %s297 = scalar_lea.vmem %s0, 1
  %v298 = vld.sshfl [vmem:[%s297] sm:$0xff pattern:$0x7e5c3a1]
  %299 = vrot.lane.b32.xlu0 %v298, 116
  %v300 = vpop.permute.xlu0 %299
  %vm301 = vcmask 7168
  %s302 = scalar_lea.vmem %s1, 48
  %303 = vst.msk [vmem:[%s302] ss:$162 sm:$0x3] %vm301, %v300
  %s304 = scalar_lea.vmem %s1, 4294967056
  %305 = vst.msk [vmem:[%s304] ss:$162 sm:$0xc] %vm301, %v300
  %s306 = scalar_lea.vmem %s1, 4294966768
  %307 = vst.msk [vmem:[%s306] ss:$162 sm:$0x30] %vm301, %v300
  %s308 = scalar_lea.vmem %s1, 912
  %309 = vst.msk [vmem:[%s308] ss:$-126 sm:$0xc0] %vm301, %v300
  %v310 = vld.sshfl [vmem:[%s0] sm:$0xff pattern:$0x907e5c3a]
  %311 = vrot.lane.b32.xlu0 %v310, 115
  %v312 = vpop.permute.xlu0 %311
  %vm313 = vcmask 7168
  %s314 = scalar_lea.vmem %s1, 193
  %315 = vst.msk [vmem:[%s314] ss:$-126 sm:$0x3] %vm313, %v312
  %s316 = scalar_lea.vmem %s1, 481
  %317 = vst.msk [vmem:[%s316] ss:$-126 sm:$0xc] %vm313, %v312
  %s318 = scalar_lea.vmem %s1, 769
  %319 = vst.msk [vmem:[%s318] ss:$-126 sm:$0x70] %vm313, %v312
  %s320 = scalar_lea.vmem %s1, 168
  %321 = vst.msk [vmem:[%s320] sm:$0x80] %vm313, %v312
  %s322 = scalar_lea.vmem %s0, 1
  %v323 = vld.sshfl [vmem:[%s322] sm:$0xff pattern:$0x7e5c3a1]
  %324 = vrot.lane.b32.xlu0 %v323, 115
  %v325 = vpop.permute.xlu0 %324
  %vm326 = vcmask 7168
  %s327 = scalar_lea.vmem %s1, 49
  %328 = vst.msk [vmem:[%s327] ss:$162 sm:$0x3] %vm326, %v325
  %s329 = scalar_lea.vmem %s1, 4294967057
  %330 = vst.msk [vmem:[%s329] ss:$162 sm:$0xc] %vm326, %v325
  %s331 = scalar_lea.vmem %s1, 4294966769
  %332 = vst.msk [vmem:[%s331] ss:$162 sm:$0x30] %vm326, %v325
  %s333 = scalar_lea.vmem %s1, 913
  %334 = vst.msk [vmem:[%s333] ss:$-126 sm:$0xc0] %vm326, %v325
  %v335 = vld.sshfl [vmem:[%s0] sm:$0xff pattern:$0x7e5c3a1]
  %336 = vrot.lane.b32.xlu0 %v335, 114
  %v337 = vpop.permute.xlu0 %336
  %vm338 = vcmask 7168
  %s339 = scalar_lea.vmem %s1, 32
  %340 = vst.msk [vmem:[%s339] ss:$162 sm:$0x3] %vm338, %v337
  %s341 = scalar_lea.vmem %s1, 4294967040
  %342 = vst.msk [vmem:[%s341] ss:$162 sm:$0xc] %vm338, %v337
  %s343 = scalar_lea.vmem %s1, 4294966752
  %344 = vst.msk [vmem:[%s343] ss:$162 sm:$0x30] %vm338, %v337
  %s345 = scalar_lea.vmem %s1, 896
  %346 = vst.msk [vmem:[%s345] ss:$-126 sm:$0xc0] %vm338, %v337
  %s347 = scalar_lea.vmem %s0, 2
  %v348 = vld.sshfl [vmem:[%s347] sm:$0xff pattern:$0x6d4b2907]
  %349 = vrot.lane.b32.xlu0 %v348, 114
  %v350 = vpop.permute.xlu0 %349
  %vm351 = vcmask 7168
  %s352 = scalar_lea.vmem %s1, 176
  %353 = vst.msk [vmem:[%s352] ss:$-126 sm:$0x3] %vm351, %v350
  %s354 = scalar_lea.vmem %s1, 464
  %355 = vst.msk [vmem:[%s354] ss:$-126 sm:$0xc] %vm351, %v350
  %s356 = scalar_lea.vmem %s1, 752
  %357 = vst.msk [vmem:[%s356] ss:$-126 sm:$0x30] %vm351, %v350
  %s358 = scalar_lea.vmem %s1, 1040
  %359 = vst.msk [vmem:[%s358] ss:$-126 sm:$0xc0] %vm351, %v350
  %v360 = vld.sshfl [vmem:[%s0] sm:$0xff pattern:$0x7e5c3a1]
  %361 = vrot.lane.b32.xlu0 %v360, 113
  %v362 = vpop.permute.xlu0 %361
  %vm363 = vcmask 7168
  %s364 = scalar_lea.vmem %s1, 33
  %365 = vst.msk [vmem:[%s364] ss:$162 sm:$0x3] %vm363, %v362
  %s366 = scalar_lea.vmem %s1, 4294967041
  %367 = vst.msk [vmem:[%s366] ss:$162 sm:$0xc] %vm363, %v362
  %s368 = scalar_lea.vmem %s1, 4294966753
  %369 = vst.msk [vmem:[%s368] ss:$162 sm:$0x30] %vm363, %v362
  %s370 = scalar_lea.vmem %s1, 897
  %371 = vst.msk [vmem:[%s370] ss:$-126 sm:$0xc0] %vm363, %v362
  %s372 = scalar_lea.vmem %s0, 2
  %v373 = vld.sshfl [vmem:[%s372] sm:$0xff pattern:$0x6d4b2907]
  %374 = vrot.lane.b32.xlu0 %v373, 113
  %v375 = vpop.permute.xlu0 %374
  %vm376 = vcmask 7168
  %s377 = scalar_lea.vmem %s1, 177
  %378 = vst.msk [vmem:[%s377] ss:$-126 sm:$0x3] %vm376, %v375
  %s379 = scalar_lea.vmem %s1, 465
  %380 = vst.msk [vmem:[%s379] ss:$-126 sm:$0xc] %vm376, %v375
  %s381 = scalar_lea.vmem %s1, 753
  %382 = vst.msk [vmem:[%s381] ss:$-126 sm:$0x30] %vm376, %v375
  %s383 = scalar_lea.vmem %s1, 1041
  %384 = vst.msk [vmem:[%s383] ss:$-126 sm:$0xc0] %vm376, %v375
  %s385 = scalar_lea.vmem %s0, 1
  %v386 = vld.sshfl [vmem:[%s385] sm:$0xff pattern:$0x6d4b2907]
  %387 = vrot.lane.b32.xlu0 %v386, 112
  %v388 = vpop.permute.xlu0 %387
  %vm389 = vcmask 7168
  %s390 = scalar_lea.vmem %s1, 160
  %391 = vst.msk [vmem:[%s390] ss:$-126 sm:$0x3] %vm389, %v388
  %s392 = scalar_lea.vmem %s1, 448
  %393 = vst.msk [vmem:[%s392] ss:$-126 sm:$0xc] %vm389, %v388
  %s394 = scalar_lea.vmem %s1, 736
  %395 = vst.msk [vmem:[%s394] ss:$-126 sm:$0x30] %vm389, %v388
  %s396 = scalar_lea.vmem %s1, 1024
  %397 = vst.msk [vmem:[%s396] ss:$-126 sm:$0xc0] %vm389, %v388
  %v398 = vld.sshfl [vmem:[%s0] sm:$0xff pattern:$0xf6d4b290]
  %399 = vrot.lane.b32.xlu0 %v398, 112
  %v400 = vpop.permute.xlu0 %399
  %vm401 = vcmask 7168
  %s402 = scalar_lea.vmem %s1, 16
  %403 = vst.msk [vmem:[%s402] ss:$162 sm:$0x3] %vm401, %v400
  %s404 = scalar_lea.vmem %s1, 4294967024
  %405 = vst.msk [vmem:[%s404] ss:$162 sm:$0xc] %vm401, %v400
  %s406 = scalar_lea.vmem %s1, 4294966736
  %407 = vst.msk [vmem:[%s406] ss:$162 sm:$0x30] %vm401, %v400
  %s408 = scalar_lea.vmem %s1, 4294966448
  %409 = vst.msk [vmem:[%s408] ss:$162 sm:$0xc0] %vm401, %v400
  %s410 = scalar_lea.vmem %s0, 1
  %v411 = vld.sshfl [vmem:[%s410] sm:$0xff pattern:$0x6d4b2907]
  %412 = vrot.lane.b32.xlu0 %v411, 111
  %v413 = vpop.permute.xlu0 %412
  %vm414 = vcmask 7168
  %s415 = scalar_lea.vmem %s1, 161
  %416 = vst.msk [vmem:[%s415] ss:$-126 sm:$0x3] %vm414, %v413
  %s417 = scalar_lea.vmem %s1, 449
  %418 = vst.msk [vmem:[%s417] ss:$-126 sm:$0xc] %vm414, %v413
  %s419 = scalar_lea.vmem %s1, 737
  %420 = vst.msk [vmem:[%s419] ss:$-126 sm:$0x30] %vm414, %v413
  %s421 = scalar_lea.vmem %s1, 1025
  %422 = vst.msk [vmem:[%s421] ss:$-126 sm:$0xc0] %vm414, %v413
  %v423 = vld.sshfl [vmem:[%s0] sm:$0xff pattern:$0xf6d4b290]
  %424 = vrot.lane.b32.xlu0 %v423, 111
  %v425 = vpop.permute.xlu0 %424
  %vm426 = vcmask 7168
  %s427 = scalar_lea.vmem %s1, 17
  %428 = vst.msk [vmem:[%s427] ss:$162 sm:$0x3] %vm426, %v425
  %s429 = scalar_lea.vmem %s1, 4294967025
  %430 = vst.msk [vmem:[%s429] ss:$162 sm:$0xc] %vm426, %v425
  %s431 = scalar_lea.vmem %s1, 4294966737
  %432 = vst.msk [vmem:[%s431] ss:$162 sm:$0x30] %vm426, %v425
  %s433 = scalar_lea.vmem %s1, 4294966449
  %434 = vst.msk [vmem:[%s433] ss:$162 sm:$0xc0] %vm426, %v425

// kernel: nonbottleneck1d_forward.1
$region0: #{nonbottleneck1d_forward.1}
  #allocation0 [shape = 'u32[]', space=smem, size = 0x4, offset = 0x4, fixed_abs, tag = 'smem constant byte address 0x4 - core index']
  #allocation1 [shape = 'u32[144,128]{1,0:T(1,128)}', space=vmem, size = 0x12000, scoped, tag = 'internal scratch']
  #allocation2 [shape = 'f32[324,128]{1,0:T(8,128)}', space=vmem, size = 0x29000, scoped, tag = 'scratch operand']
  #allocation3 [shape = 'f32[324,128]{1,0:T(8,128)}', space=vmem, size = 0x29000, scoped, tag = 'scratch operand']
  %s0 = inlined_call_operand.vmem [shape: f32[2,324,128], index: 0, kind: input, shape index: {}]
  %s1 = inlined_call_operand.vmem [shape: bf16[3,128,128], index: 1, kind: input, shape index: {}]
  %s2 = inlined_call_operand.vmem [shape: bf16[3,128,128], index: 2, kind: input, shape index: {}]
  %s3 = inlined_call_operand.vmem [shape: bf16[3,128,128], index: 3, kind: input, shape index: {}]
  %s4 = inlined_call_operand.vmem [shape: bf16[3,128,128], index: 4, kind: input, shape index: {}]
  %s5 = inlined_call_operand.vmem [shape: f32[1,128], index: 5, kind: input, shape index: {}]
  %s6 = inlined_call_operand.vmem [shape: f32[1,128], index: 6, kind: input, shape index: {}]
  %s7 = inlined_call_operand.vmem [shape: f32[1,128], index: 7, kind: input, shape index: {}]
  %s8 = inlined_call_operand.vmem [shape: f32[1,128], index: 8, kind: input, shape index: {}]
  %s9 = inlined_call_operand.vmem [shape: f32[288,1], index: 9, kind: input, shape index: {}]
  %s10 = inlined_call_operand.vmem [shape: f32[2,288,128], index: 10, kind: output, shape index: {}]
  %s11 = sld [smem:[#allocation0]]
  $region73: #{nonbottleneck1d_forward.1} parent=0
    _
  %s13 = ssub.s32 1, %s11
  %s14 = scalar_select 0, %s13, %s11
  loop: start=0, step=1, limit=4
  $region2: #{nonbottleneck1d_forward.1} parent=0 // loop_pre_header
    _
  $region3: #{nonbottleneck1d_forward.1} parent=0 // loop_header
    %s16 = sphi 0, %s20
    %p17 = scmp.ge.s32.totalorder %s16, 4
    %s26 = sphi 0, %s28
    %s29 = sphi 0, %s26
    %s30 = sphi 0, %s29
    %s46 = sphi 0, %s30
    %s50 = sphi 0, %s50
    %s52 = sphi 0, %s50
    %s53 = sphi 0, %s52
    %s67 = sphi 0, %s53
    %s71 = sphi 0, %s71
    %s73 = sphi 0, %s71
    %s74 = sphi 0, %s73
    %s88 = sphi 0, %s74
    %s92 = sphi 0, %s92
    %s94 = sphi 0, %s92
    %s95 = sphi 0, %s94
    %s109 = sphi 0, %s95
    %s113 = sphi 0, %s113
    %s115 = sphi 0, %s113
    %s116 = sphi 0, %s115
    %s130 = sphi 0, %s116
    %s134 = sphi 0, %s134
    %s136 = sphi 0, %s134
    %s137 = sphi 0, %s136
    %s151 = sphi 0, %s137
    %s155 = sphi 0, %s155
    %s157 = sphi 0, %s155
    %s158 = sphi 0, %s157
    %s172 = sphi 0, %s158
    %s176 = sphi 0, %s176
    %s178 = sphi 0, %s176
    %s179 = sphi 0, %s178
    %s193 = sphi 0, %s179
    %s197 = sphi 0, %s197
    %s199 = sphi 0, %s197
    %s200 = sphi 0, %s199
    %s214 = sphi 0, %s200
    %s218 = sphi 0, %s218
    %s220 = sphi 0, %s218
    %s221 = sphi 0, %s220
    %s235 = sphi 0, %s221
    %s241 = sphi 0, %s243
    %s244 = sphi 0, %s241
    %s245 = sphi 0, %s244
    %s261 = sphi 0, %s245
  $region4: #{nonbottleneck1d_forward.1} parent=0 // loop_header_branch
    %19 = sbr.rel (%p17) target = $region8
  $region5: #{nonbottleneck1d_forward.1} parent=0 // loop_body
    %s21 = ssub.s32 %s16, 1
    %s22 = ssub.s32 %s16, 2
    %s23 = sadd.s32 %s16, 1
    %s24 = ssub.s32 %s16, %s23
    %p25 = scmp.eq.s32.totalorder %s24, 0
    %s27 = sadd.s32 %s26, 1
    %s28 = scalar_select %p25, %s26, %s27
    %p31 = pneg %p25
    %p32 = scmp.eq.s32.totalorder %s16, 1
    %p33 = por %p31, %p32
    %p34 = scmp.ne.s32.totalorder %s26, %s29
    %p35 = scmp.eq.s32.totalorder %s16, 0
    %p36 = por %p34, %p35
    %p37 = scmp.ne.s32.totalorder %s26, %s29
    %p38 = scmp.eq.s32.totalorder %s21, 1
    %p39 = por %p37, %p38
    %p40 = scmp.ne.s32.totalorder %s29, %s30
    %p41 = scmp.eq.s32.totalorder %s21, 0
    %p42 = por %p40, %p41
    %p43 = scmp.ne.s32.totalorder %s29, %s30
    %p44 = scmp.eq.s32.totalorder %s22, 1
    %p45 = por %p43, %p44
    %p47 = scmp.ne.s32.totalorder %s30, %s46
    %p48 = scmp.eq.s32.totalorder %s22, 0
    %p49 = por %p47, %p48
    %s51 = sadd.s32 %s50, 1
    %p54 = scmp.eq.s32.totalorder %s16, 1
    %p55 = scmp.ne.s32.totalorder %s50, %s52
    %p56 = scmp.eq.s32.totalorder %s16, 0
    %p57 = por %p55, %p56
    %p58 = scmp.ne.s32.totalorder %s50, %s52
    %p59 = scmp.eq.s32.totalorder %s21, 1
    %p60 = por %p58, %p59
    %p61 = scmp.ne.s32.totalorder %s52, %s53
    %p62 = scmp.eq.s32.totalorder %s21, 0
    %p63 = por %p61, %p62
    %p64 = scmp.ne.s32.totalorder %s52, %s53
    %p65 = scmp.eq.s32.totalorder %s22, 1
    %p66 = por %p64, %p65
    %p68 = scmp.ne.s32.totalorder %s53, %s67
    %p69 = scmp.eq.s32.totalorder %s22, 0
    %p70 = por %p68, %p69
    %s72 = sadd.s32 %s71, 1
    %p75 = scmp.eq.s32.totalorder %s16, 1
    %p76 = scmp.ne.s32.totalorder %s71, %s73
    %p77 = scmp.eq.s32.totalorder %s16, 0
    %p78 = por %p76, %p77
    %p79 = scmp.ne.s32.totalorder %s71, %s73
    %p80 = scmp.eq.s32.totalorder %s21, 1
    %p81 = por %p79, %p80
    %p82 = scmp.ne.s32.totalorder %s73, %s74
    %p83 = scmp.eq.s32.totalorder %s21, 0
    %p84 = por %p82, %p83
    %p85 = scmp.ne.s32.totalorder %s73, %s74
    %p86 = scmp.eq.s32.totalorder %s22, 1
    %p87 = por %p85, %p86
    %p89 = scmp.ne.s32.totalorder %s74, %s88
    %p90 = scmp.eq.s32.totalorder %s22, 0
    %p91 = por %p89, %p90
    %s93 = sadd.s32 %s92, 1
    %p96 = scmp.eq.s32.totalorder %s16, 1
    %p97 = scmp.ne.s32.totalorder %s92, %s94
    %p98 = scmp.eq.s32.totalorder %s16, 0
    %p99 = por %p97, %p98
    %p100 = scmp.ne.s32.totalorder %s92, %s94
    %p101 = scmp.eq.s32.totalorder %s21, 1
    %p102 = por %p100, %p101
    %p103 = scmp.ne.s32.totalorder %s94, %s95
    %p104 = scmp.eq.s32.totalorder %s21, 0
    %p105 = por %p103, %p104
    %p106 = scmp.ne.s32.totalorder %s94, %s95
    %p107 = scmp.eq.s32.totalorder %s22, 1
    %p108 = por %p106, %p107
    %p110 = scmp.ne.s32.totalorder %s95, %s109
    %p111 = scmp.eq.s32.totalorder %s22, 0
    %p112 = por %p110, %p111
    %s114 = sadd.s32 %s113, 1
    %p117 = scmp.eq.s32.totalorder %s16, 1
    %p118 = scmp.ne.s32.totalorder %s113, %s115
    %p119 = scmp.eq.s32.totalorder %s16, 0
    %p120 = por %p118, %p119
    %p121 = scmp.ne.s32.totalorder %s113, %s115
    %p122 = scmp.eq.s32.totalorder %s21, 1
    %p123 = por %p121, %p122
    %p124 = scmp.ne.s32.totalorder %s115, %s116
    %p125 = scmp.eq.s32.totalorder %s21, 0
    %p126 = por %p124, %p125
    %p127 = scmp.ne.s32.totalorder %s115, %s116
    %p128 = scmp.eq.s32.totalorder %s22, 1
    %p129 = por %p127, %p128
    %p131 = scmp.ne.s32.totalorder %s116, %s130
    %p132 = scmp.eq.s32.totalorder %s22, 0
    %p133 = por %p131, %p132
    %s135 = sadd.s32 %s134, 1
    %p138 = scmp.eq.s32.totalorder %s16, 1
    %p139 = scmp.ne.s32.totalorder %s134, %s136
    %p140 = scmp.eq.s32.totalorder %s16, 0
    %p141 = por %p139, %p140
    %p142 = scmp.ne.s32.totalorder %s134, %s136
    %p143 = scmp.eq.s32.totalorder %s21, 1
    %p144 = por %p142, %p143
    %p145 = scmp.ne.s32.totalorder %s136, %s137
    %p146 = scmp.eq.s32.totalorder %s21, 0
    %p147 = por %p145, %p146
    %p148 = scmp.ne.s32.totalorder %s136, %s137
    %p149 = scmp.eq.s32.totalorder %s22, 1
    %p150 = por %p148, %p149
    %p152 = scmp.ne.s32.totalorder %s137, %s151
    %p153 = scmp.eq.s32.totalorder %s22, 0
    %p154 = por %p152, %p153
    %s156 = sadd.s32 %s155, 1
    %p159 = scmp.eq.s32.totalorder %s16, 1
    %p160 = scmp.ne.s32.totalorder %s155, %s157
    %p161 = scmp.eq.s32.totalorder %s16, 0
    %p162 = por %p160, %p161
    %p163 = scmp.ne.s32.totalorder %s155, %s157
    %p164 = scmp.eq.s32.totalorder %s21, 1
    %p165 = por %p163, %p164
    %p166 = scmp.ne.s32.totalorder %s157, %s158
    %p167 = scmp.eq.s32.totalorder %s21, 0
    %p168 = por %p166, %p167
    %p169 = scmp.ne.s32.totalorder %s157, %s158
    %p170 = scmp.eq.s32.totalorder %s22, 1
    %p171 = por %p169, %p170
    %p173 = scmp.ne.s32.totalorder %s158, %s172
    %p174 = scmp.eq.s32.totalorder %s22, 0
    %p175 = por %p173, %p174
    %s177 = sadd.s32 %s176, 1
    %p180 = scmp.eq.s32.totalorder %s16, 1
    %p181 = scmp.ne.s32.totalorder %s176, %s178
    %p182 = scmp.eq.s32.totalorder %s16, 0
    %p183 = por %p181, %p182
    %p184 = scmp.ne.s32.totalorder %s176, %s178
    %p185 = scmp.eq.s32.totalorder %s21, 1
    %p186 = por %p184, %p185
    %p187 = scmp.ne.s32.totalorder %s178, %s179
    %p188 = scmp.eq.s32.totalorder %s21, 0
    %p189 = por %p187, %p188
    %p190 = scmp.ne.s32.totalorder %s178, %s179
    %p191 = scmp.eq.s32.totalorder %s22, 1
    %p192 = por %p190, %p191
    %p194 = scmp.ne.s32.totalorder %s179, %s193
    %p195 = scmp.eq.s32.totalorder %s22, 0
    %p196 = por %p194, %p195
    %s198 = sadd.s32 %s197, 1
    %p201 = scmp.eq.s32.totalorder %s16, 1
    %p202 = scmp.ne.s32.totalorder %s197, %s199
    %p203 = scmp.eq.s32.totalorder %s16, 0
    %p204 = por %p202, %p203
    %p205 = scmp.ne.s32.totalorder %s197, %s199
    %p206 = scmp.eq.s32.totalorder %s21, 1
    %p207 = por %p205, %p206
    %p208 = scmp.ne.s32.totalorder %s199, %s200
    %p209 = scmp.eq.s32.totalorder %s21, 0
    %p210 = por %p208, %p209
    %p211 = scmp.ne.s32.totalorder %s199, %s200
    %p212 = scmp.eq.s32.totalorder %s22, 1
    %p213 = por %p211, %p212
    %p215 = scmp.ne.s32.totalorder %s200, %s214
    %p216 = scmp.eq.s32.totalorder %s22, 0
    %p217 = por %p215, %p216
    %s219 = sadd.s32 %s218, 1
    %p222 = scmp.eq.s32.totalorder %s16, 1
    %p223 = scmp.ne.s32.totalorder %s218, %s220
    %p224 = scmp.eq.s32.totalorder %s16, 0
    %p225 = por %p223, %p224
    %p226 = scmp.ne.s32.totalorder %s218, %s220
    %p227 = scmp.eq.s32.totalorder %s21, 1
    %p228 = por %p226, %p227
    %p229 = scmp.ne.s32.totalorder %s220, %s221
    %p230 = scmp.eq.s32.totalorder %s21, 0
    %p231 = por %p229, %p230
    %p232 = scmp.ne.s32.totalorder %s220, %s221
    %p233 = scmp.eq.s32.totalorder %s22, 1
    %p234 = por %p232, %p233
    %p236 = scmp.ne.s32.totalorder %s221, %s235
    %p237 = scmp.eq.s32.totalorder %s22, 0
    %p238 = por %p236, %p237
    %s239 = ssub.s32 %s16, %s23
    %p240 = scmp.eq.s32.totalorder %s239, 0
    %s242 = sadd.s32 %s241, 1
    %s243 = scalar_select %p240, %s241, %s242
    %p246 = pneg %p240
    %p247 = scmp.eq.s32.totalorder %s16, 1
    %p248 = por %p246, %p247
    %p249 = scmp.ne.s32.totalorder %s241, %s244
    %p250 = scmp.eq.s32.totalorder %s16, 0
    %p251 = por %p249, %p250
    %p252 = scmp.ne.s32.totalorder %s241, %s244
    %p253 = scmp.eq.s32.totalorder %s21, 1
    %p254 = por %p252, %p253
    %p255 = scmp.ne.s32.totalorder %s244, %s245
    %p256 = scmp.eq.s32.totalorder %s21, 0
    %p257 = por %p255, %p256
    %p258 = scmp.ne.s32.totalorder %s244, %s245
    %p259 = scmp.eq.s32.totalorder %s22, 1
    %p260 = por %p258, %p259
    %p262 = scmp.ne.s32.totalorder %s245, %s261
    %p263 = scmp.eq.s32.totalorder %s22, 0
    %p264 = por %p262, %p263
    %p265 = scmp.le.s32.totalorder 1, %s16
    %p266 = scmp.lt.s32.totalorder %s16, 3
    %p267 = pnand %p265, %p266
    %p268 = pneg %p267
    // Predicated region
    $region9: #{nonbottleneck1d_forward.1} parent=5 // pred_check
      _
    $region10: #{nonbottleneck1d_forward.1} parent=5 // pred_check_branch
      %270 = sbr.rel (%p267) target = $region12
    $region11: #{nonbottleneck1d_forward.1} parent=5 // pred_region
      %s271 = ssub.s32 %s16, 1
      // Predicated region
      $region13: #{nonbottleneck1d_forward.1} parent=11 // pred_check
        %p272 = pneg %p63
      $region14: #{nonbottleneck1d_forward.1} parent=11 // pred_check_branch
        %274 = sbr.rel (%p272) target = $region16
      $region15: #{nonbottleneck1d_forward.1} parent=11 // pred_region
        _
      $region16: #{nonbottleneck1d_forward.1} parent=11 // pred_fallthru
        _
      // Predicated region
      $region17: #{nonbottleneck1d_forward.1} parent=11 // pred_check
        %p275 = pneg %p84
      $region18: #{nonbottleneck1d_forward.1} parent=11 // pred_check_branch
        %277 = sbr.rel (%p275) target = $region20
      $region19: #{nonbottleneck1d_forward.1} parent=11 // pred_region
        _
      $region20: #{nonbottleneck1d_forward.1} parent=11 // pred_fallthru
        _
      // Predicated region
      $region21: #{nonbottleneck1d_forward.1} parent=11 // pred_check
        %p278 = pneg %p105
      $region22: #{nonbottleneck1d_forward.1} parent=11 // pred_check_branch
        %280 = sbr.rel (%p278) target = $region24
      $region23: #{nonbottleneck1d_forward.1} parent=11 // pred_region
        _
      $region24: #{nonbottleneck1d_forward.1} parent=11 // pred_fallthru
        _
      // Predicated region
      $region25: #{nonbottleneck1d_forward.1} parent=11 // pred_check
        %p281 = pneg %p126
      $region26: #{nonbottleneck1d_forward.1} parent=11 // pred_check_branch
        %283 = sbr.rel (%p281) target = $region28
      $region27: #{nonbottleneck1d_forward.1} parent=11 // pred_region
        _
      $region28: #{nonbottleneck1d_forward.1} parent=11 // pred_fallthru
        _
      // Predicated region
      $region29: #{nonbottleneck1d_forward.1} parent=11 // pred_check
        %p284 = pneg %p147
      $region30: #{nonbottleneck1d_forward.1} parent=11 // pred_check_branch
        %286 = sbr.rel (%p284) target = $region32
      $region31: #{nonbottleneck1d_forward.1} parent=11 // pred_region
        _
      $region32: #{nonbottleneck1d_forward.1} parent=11 // pred_fallthru
        _
      // Predicated region
      $region33: #{nonbottleneck1d_forward.1} parent=11 // pred_check
        %p287 = pneg %p168
      $region34: #{nonbottleneck1d_forward.1} parent=11 // pred_check_branch
        %289 = sbr.rel (%p287) target = $region36
      $region35: #{nonbottleneck1d_forward.1} parent=11 // pred_region
        _
      $region36: #{nonbottleneck1d_forward.1} parent=11 // pred_fallthru
        _
      // Predicated region
      $region37: #{nonbottleneck1d_forward.1} parent=11 // pred_check
        %p290 = pneg %p189
      $region38: #{nonbottleneck1d_forward.1} parent=11 // pred_check_branch
        %292 = sbr.rel (%p290) target = $region40
      $region39: #{nonbottleneck1d_forward.1} parent=11 // pred_region
        _
      $region40: #{nonbottleneck1d_forward.1} parent=11 // pred_fallthru
        _
      // Predicated region
      $region41: #{nonbottleneck1d_forward.1} parent=11 // pred_check
        %p293 = pneg %p210
      $region42: #{nonbottleneck1d_forward.1} parent=11 // pred_check_branch
        %295 = sbr.rel (%p293) target = $region44
      $region43: #{nonbottleneck1d_forward.1} parent=11 // pred_region
        _
      $region44: #{nonbottleneck1d_forward.1} parent=11 // pred_fallthru
        _
      // Predicated region
      $region45: #{nonbottleneck1d_forward.1} parent=11 // pred_check
        %p296 = pneg %p231
      $region46: #{nonbottleneck1d_forward.1} parent=11 // pred_check_branch
        %298 = sbr.rel (%p296) target = $region48
      $region47: #{nonbottleneck1d_forward.1} parent=11 // pred_region
        _
      $region48: #{nonbottleneck1d_forward.1} parent=11 // pred_fallthru
        _
    $region12: #{nonbottleneck1d_forward.1} parent=5 // pred_fallthru
      _
    %p299 = scmp.lt.s32.totalorder %s16, 2
    // Predicated region
    $region49: #{nonbottleneck1d_forward.1} parent=5 // pred_check
      %p300 = pneg %p299
    $region50: #{nonbottleneck1d_forward.1} parent=5 // pred_check_branch
      %302 = sbr.rel (%p300) target = $region52
    $region51: #{nonbottleneck1d_forward.1} parent=5 // pred_region
      // Predicated region
      $region53: #{nonbottleneck1d_forward.1} parent=51 // pred_check
        %p303 = pneg %p36
      $region54: #{nonbottleneck1d_forward.1} parent=51 // pred_check_branch
        %305 = sbr.rel (%p303) target = $region56
      $region55: #{nonbottleneck1d_forward.1} parent=51 // pred_region
        %p306 = scmp.lt.s32.totalorder %s16, 1
        %s307 = scalar_select %p306, %s16, 1
        %s308 = smul.addr %s307, 41
        %s309 = smul.addr %s308, 8
        %s310 = scalar_lea.vmem %s0, %s309
      $region56: #{nonbottleneck1d_forward.1} parent=51 // pred_fallthru
        _
    $region52: #{nonbottleneck1d_forward.1} parent=5 // pred_fallthru
      _
    %p311 = scmp.le.s32.totalorder 1, %s16
    %p312 = scmp.lt.s32.totalorder %s16, 3
    %p313 = pnand %p311, %p312
    %p314 = pneg %p313
    // Predicated region
    $region57: #{nonbottleneck1d_forward.1} parent=5 // pred_check
      _
    $region58: #{nonbottleneck1d_forward.1} parent=5 // pred_check_branch
      %316 = sbr.rel (%p313) target = $region60
    $region59: #{nonbottleneck1d_forward.1} parent=5 // pred_region
      %s317 = ssub.s32 %s16, 1
      %p318 = scmp.lt.s32.totalorder %s21, 1
      %s319 = scalar_select %p318, %s21, 1
      %s320 = smul.addr %s319, 41
      %s321 = smul.addr %s320, 8
      %s322 = scalar_lea.vmem %s0, %s321
      %p323 = pneg %p42
      %p324 = pneg %p39
      %p325 = pneg %p63
      %p326 = pneg %p60
      %p327 = pneg %p84
      %p328 = pneg %p81
      %p329 = pneg %p105
      %p330 = pneg %p102
      %p331 = pneg %p126
      %p332 = pneg %p123
      %p333 = pneg %p147
      %p334 = pneg %p144
      %p335 = pneg %p168
      %p336 = pneg %p165
      %p337 = pneg %p189
      %p338 = pneg %p186
      %p339 = pneg %p210
      %p340 = pneg %p207
      %p341 = pneg %p231
      %p342 = pneg %p228
      %p343 = pneg %p257
      %p344 = pneg %p254
      %p345 = scmp.lt.s32.totalorder %s21, 1
      %s346 = scalar_select %p345, %s21, 1
      %s347 = smul.addr %s346, 36
      %s348 = smul.addr %s347, 8
      %s349 = scalar_lea.vmem %s10, %s348
      %p350 = scmp.lt.s32.totalorder %s21, 1
      %s351 = scalar_select %p350, %s21, 1
      %s352 = smul.addr %s351, 41
      %s353 = smul.addr %s352, 8
      %s354 = scalar_lea.vmem %s0, %s353
      %p355 = scmp.lt.s32.totalorder %s21, 1
      %s356 = scalar_select %p355, %s21, 1
      %s357 = smul.addr %s356, 36
      %s358 = smul.addr %s357, 8
      %s359 = scalar_lea.vmem %s10, %s358
      %v361 = vld [vmem:[%s9] sm:$0xff]
      %v362 = vld [vmem:[%s9 + $0x8] sm:$0xff]
      %v363 = vld [vmem:[%s9 + $0x10] sm:$0xff]
      %v364 = vld [vmem:[%s9 + $0x18] sm:$0xff]
      %v365 = vld [vmem:[%s9 + $0x20] sm:$0xff]
      %v366 = vld [vmem:[%s9 + $0x28] sm:$0xff]
      %v367 = vld [vmem:[%s9 + $0x30] sm:$0xff]
      %v368 = vld [vmem:[%s9 + $0x38] sm:$0xff]
      %v369 = vld [vmem:[%s9 + $0x40] sm:$0xff]
      %v370 = vld [vmem:[%s9 + $0x48] sm:$0xff]
      %v371 = vld [vmem:[%s9 + $0x50] sm:$0xff]
      %v372 = vld [vmem:[%s9 + $0x58] sm:$0xff]
      %v373 = vld [vmem:[%s9 + $0x60] sm:$0xff]
      %v374 = vld [vmem:[%s9 + $0x68] sm:$0xff]
      %v375 = vld [vmem:[%s9 + $0x70] sm:$0xff]
      %v376 = vld [vmem:[%s9 + $0x78] sm:$0xff]
      %v377 = vld [vmem:[%s9 + $0x80] sm:$0xff]
      %v378 = vld [vmem:[%s9 + $0x88] sm:$0xff]
      %v379 = vld [vmem:[%s9 + $0x90] sm:$0xff]
      %v380 = vld [vmem:[%s9 + $0x98] sm:$0xff]
      %v381 = vld [vmem:[%s9 + $0xa0] sm:$0xff]
      %v382 = vld [vmem:[%s9 + $0xa8] sm:$0xff]
      %v383 = vld [vmem:[%s9 + $0xb0] sm:$0xff]
      %v384 = vld [vmem:[%s9 + $0xb8] sm:$0xff]
      %v385 = vld [vmem:[%s9 + $0xc0] sm:$0xff]
      %v386 = vld [vmem:[%s9 + $0xc8] sm:$0xff]
      %v387 = vld [vmem:[%s9 + $0xd0] sm:$0xff]
      %v388 = vld [vmem:[%s9 + $0xd8] sm:$0xff]
      %v389 = vld [vmem:[%s9 + $0xe0] sm:$0xff]
      %v390 = vld [vmem:[%s9 + $0xe8] sm:$0xff]
      %v391 = vld [vmem:[%s9 + $0xf0] sm:$0xff]
      %v392 = vld [vmem:[%s9 + $0xf8] sm:$0xff]
      %v393 = vld [vmem:[%s9 + $0x100] sm:$0xff]
      %v394 = vld [vmem:[%s9 + $0x108] sm:$0xff]
      %v395 = vld [vmem:[%s9 + $0x110] sm:$0xff]
      %v396 = vld [vmem:[%s9 + $0x118] sm:$0xff]
      %v397 = vld [vmem:[%s354] sm:$0xff]
      %v398 = vld [vmem:[%s354 + $0x8] sm:$0xff]
      %v399 = vld [vmem:[%s354 + $0x10] sm:$0xff]
      %v400 = vld [vmem:[%s354 + $0x18] sm:$0xff]
      %v401 = vld [vmem:[%s354 + $0x20] sm:$0xff]
      %v402 = vld [vmem:[%s354 + $0x28] sm:$0xff]
      %v403 = vld [vmem:[%s354 + $0x30] sm:$0xff]
      %v404 = vld [vmem:[%s354 + $0x38] sm:$0xff]
      %v405 = vld [vmem:[%s354 + $0x40] sm:$0xff]
      %v406 = vld [vmem:[%s354 + $0x48] sm:$0xff]
      %v407 = vld [vmem:[%s354 + $0x50] sm:$0xff]
      %v408 = vld [vmem:[%s354 + $0x58] sm:$0xff]
      %v409 = vld [vmem:[%s354 + $0x60] sm:$0xff]
      %v410 = vld [vmem:[%s354 + $0x68] sm:$0xff]
      %v411 = vld [vmem:[%s354 + $0x70] sm:$0xff]
      %v412 = vld [vmem:[%s354 + $0x78] sm:$0xff]
      %v413 = vld [vmem:[%s354 + $0x80] sm:$0xff]
      %v414 = vld [vmem:[%s354 + $0x88] sm:$0xff]
      %v415 = vld [vmem:[%s354 + $0x90] sm:$0xff]
      %v416 = vld [vmem:[%s354 + $0x98] sm:$0xff]
      %v417 = vld [vmem:[%s354 + $0xa0] sm:$0xff]
      %v418 = vld [vmem:[%s354 + $0xa8] sm:$0xff]
      %v419 = vld [vmem:[%s354 + $0xb0] sm:$0xff]
      %v420 = vld [vmem:[%s354 + $0xb8] sm:$0xff]
      %v421 = vld [vmem:[%s354 + $0xc0] sm:$0xff]
      %v422 = vld [vmem:[%s354 + $0xc8] sm:$0xff]
      %v423 = vld [vmem:[%s354 + $0xd0] sm:$0xff]
      %v424 = vld [vmem:[%s354 + $0xd8] sm:$0xff]
      %v425 = vld [vmem:[%s354 + $0xe0] sm:$0xff]
      %v426 = vld [vmem:[%s354 + $0xe8] sm:$0xff]
      %v427 = vld [vmem:[%s354 + $0xf0] sm:$0xff]
      %v428 = vld [vmem:[%s354 + $0xf8] sm:$0xff]
      %v429 = vld [vmem:[%s354 + $0x100] sm:$0xff]
      %v430 = vld [vmem:[%s354 + $0x108] sm:$0xff]
      %v431 = vld [vmem:[%s354 + $0x110] sm:$0xff]
      %v432 = vld [vmem:[%s354 + $0x118] sm:$0xff]
      %v433 = vpack.c.bf16 %v398, %v397
      %v434 = vpack.c.bf16 %v400, %v399
      %v435 = vpack.c.bf16 %v402, %v401
      %v436 = vpack.c.bf16 %v404, %v403
      %v437 = vpack.c.bf16 %v406, %v405
      %v438 = vpack.c.bf16 %v408, %v407
      %v439 = vpack.c.bf16 %v410, %v409
      %v440 = vpack.c.bf16 %v412, %v411
      %v441 = vpack.c.bf16 %v414, %v413
      %v442 = vpack.c.bf16 %v416, %v415
      %v443 = vpack.c.bf16 %v418, %v417
      %v444 = vpack.c.bf16 %v420, %v419
      %v445 = vpack.c.bf16 %v422, %v421
      %v446 = vpack.c.bf16 %v424, %v423
      %v447 = vpack.c.bf16 %v426, %v425
      %v448 = vpack.c.bf16 %v428, %v427
      %v449 = vpack.c.bf16 %v430, %v429
      %v450 = vpack.c.bf16 %v432, %v431
      %v451 = vld [vmem:[%s1] sm:$0xf]
      %v452 = vld [vmem:[%s1 + $0x4] sm:$0xf]
      %v453 = vld [vmem:[%s1 + $0x8] sm:$0xf]
      %v454 = vld [vmem:[%s1 + $0xc] sm:$0xf]
      %v455 = vld [vmem:[%s1 + $0x10] sm:$0xf]
      %v456 = vld [vmem:[%s1 + $0x14] sm:$0xf]
      %v457 = vld [vmem:[%s1 + $0x18] sm:$0xf]
      %v458 = vld [vmem:[%s1 + $0x1c] sm:$0xf]
      %v459 = vld [vmem:[%s1 + $0x20] sm:$0xf]
      %v460 = vld [vmem:[%s1 + $0x24] sm:$0xf]
      %v461 = vld [vmem:[%s1 + $0x28] sm:$0xf]
      %v462 = vld [vmem:[%s1 + $0x2c] sm:$0xf]
      %v463 = vld [vmem:[%s1 + $0x30] sm:$0xf]
      %v464 = vld [vmem:[%s1 + $0x34] sm:$0xf]
      %v465 = vld [vmem:[%s1 + $0x38] sm:$0xf]
      %v466 = vld [vmem:[%s1 + $0x3c] sm:$0xf]
      %v467 = vld [vmem:[%s354 + $0x12] sm:$0xff]
      %v468 = vld [vmem:[%s354 + $0x1a] sm:$0xff]
      %v469 = vld [vmem:[%s354 + $0x22] sm:$0xff]
      %v470 = vld [vmem:[%s354 + $0x2a] sm:$0xff]
      %v471 = vld [vmem:[%s354 + $0x32] sm:$0xff]
      %v472 = vld [vmem:[%s354 + $0x3a] sm:$0xff]
      %v473 = vld [vmem:[%s354 + $0x42] sm:$0xff]
      %v474 = vld [vmem:[%s354 + $0x4a] sm:$0xff]
      %v475 = vld [vmem:[%s354 + $0x52] sm:$0xff]
      %v476 = vld [vmem:[%s354 + $0x5a] sm:$0xff]
      %v477 = vld [vmem:[%s354 + $0x62] sm:$0xff]
      %v478 = vld [vmem:[%s354 + $0x6a] sm:$0xff]
      %v479 = vld [vmem:[%s354 + $0x72] sm:$0xff]
      %v480 = vld [vmem:[%s354 + $0x7a] sm:$0xff]
      %v481 = vld [vmem:[%s354 + $0x82] sm:$0xff]
      %v482 = vld [vmem:[%s354 + $0x8a] sm:$0xff]
      %v483 = vld [vmem:[%s354 + $0x92] sm:$0xff]
      %v484 = vld [vmem:[%s354 + $0x9a] sm:$0xff]
      %v485 = vld [vmem:[%s354 + $0xa2] sm:$0xff]
      %v486 = vld [vmem:[%s354 + $0xaa] sm:$0xff]
      %v487 = vld [vmem:[%s354 + $0xb2] sm:$0xff]
      %v488 = vld [vmem:[%s354 + $0xba] sm:$0xff]
      %v489 = vld [vmem:[%s354 + $0xc2] sm:$0xff]
      %v490 = vld [vmem:[%s354 + $0xca] sm:$0xff]
      %v491 = vld [vmem:[%s354 + $0xd2] sm:$0xff]
      %v492 = vld [vmem:[%s354 + $0xda] sm:$0xff]
      %v493 = vld [vmem:[%s354 + $0xe2] sm:$0xff]
      %v494 = vld [vmem:[%s354 + $0xea] sm:$0xff]
      %v495 = vld [vmem:[%s354 + $0xf2] sm:$0xff]
      %v496 = vld [vmem:[%s354 + $0xfa] sm:$0xff]
      %v497 = vld [vmem:[%s354 + $0x102] sm:$0xff]
      %v498 = vld [vmem:[%s354 + $0x10a] sm:$0xff]
      %v499 = vld [vmem:[%s354 + $0x112] sm:$0xff]
      %v500 = vld [vmem:[%s354 + $0x11a] sm:$0xff]
      %v501 = vld [vmem:[%s354 + $0x122] sm:$0xff]
      %v502 = vld [vmem:[%s354 + $0x12a] sm:$0xff]
      %v503 = vpack.c.bf16 %v468, %v467
      %v504 = vpack.c.bf16 %v470, %v469
      %v505 = vpack.c.bf16 %v472, %v471
      %v506 = vpack.c.bf16 %v474, %v473
      %v507 = vpack.c.bf16 %v476, %v475
      %v508 = vpack.c.bf16 %v478, %v477
      %v509 = vpack.c.bf16 %v480, %v479
      %v510 = vpack.c.bf16 %v482, %v481
      %v511 = vpack.c.bf16 %v484, %v483
      %v512 = vpack.c.bf16 %v486, %v485
      %v513 = vpack.c.bf16 %v488, %v487
      %v514 = vpack.c.bf16 %v490, %v489
      %v515 = vpack.c.bf16 %v492, %v491
      %v516 = vpack.c.bf16 %v494, %v493
      %v517 = vpack.c.bf16 %v496, %v495
      %v518 = vpack.c.bf16 %v498, %v497
      %v519 = vpack.c.bf16 %v500, %v499
      %v520 = vpack.c.bf16 %v502, %v501
      %s521 = scalar_lea.vmem %s1, 64
      %v522 = vld [vmem:[%s521] sm:$0xf]
      %v523 = vld [vmem:[%s521 + $0x4] sm:$0xf]
      %v524 = vld [vmem:[%s521 + $0x8] sm:$0xf]
      %v525 = vld [vmem:[%s521 + $0xc] sm:$0xf]
      %v526 = vld [vmem:[%s521 + $0x10] sm:$0xf]
      %v527 = vld [vmem:[%s521 + $0x14] sm:$0xf]
      %v528 = vld [vmem:[%s521 + $0x18] sm:$0xf]
      %v529 = vld [vmem:[%s521 + $0x1c] sm:$0xf]
      %v530 = vld [vmem:[%s521 + $0x20] sm:$0xf]
      %v531 = vld [vmem:[%s521 + $0x24] sm:$0xf]
      %v532 = vld [vmem:[%s521 + $0x28] sm:$0xf]
      %v533 = vld [vmem:[%s521 + $0x2c] sm:$0xf]
      %v534 = vld [vmem:[%s521 + $0x30] sm:$0xf]
      %v535 = vld [vmem:[%s521 + $0x34] sm:$0xf]
      %v536 = vld [vmem:[%s521 + $0x38] sm:$0xf]
      %v537 = vld [vmem:[%s521 + $0x3c] sm:$0xf]
      %v554 = vunpack.c.l.b16 %v522
      %v555 = vunpack.c.l.b16 %v523
      %v556 = vunpack.c.l.b16 %v524
      %v557 = vunpack.c.l.b16 %v525
      %v558 = vunpack.c.l.b16 %v526
      %v559 = vunpack.c.l.b16 %v527
      %v560 = vunpack.c.l.b16 %v528
      %v561 = vunpack.c.l.b16 %v529
      %v562 = vunpack.c.l.b16 %v530
      %v563 = vunpack.c.l.b16 %v531
      %v564 = vunpack.c.l.b16 %v532
      %v565 = vunpack.c.l.b16 %v533
      %v566 = vunpack.c.l.b16 %v534
      %v567 = vunpack.c.l.b16 %v535
      %v568 = vunpack.c.l.b16 %v536
      %v569 = vunpack.c.l.b16 %v537
      %v570 = vpack.c.b16 %v555, %v554
      %v571 = vpack.c.b16 %v557, %v556
      %v572 = vpack.c.b16 %v559, %v558
      %v573 = vpack.c.b16 %v561, %v560
      %v574 = vpack.c.b16 %v563, %v562
      %v575 = vpack.c.b16 %v565, %v564
      %v576 = vpack.c.b16 %v567, %v566
      %v577 = vpack.c.b16 %v569, %v568
      %586 = vmatprep.subr.bf16.mxu0 0
      %587 = vmatpush1.bf16.msra.mxu0 %v570
      %588 = vmatprep.subr.bf16.mxu0 0
      %589 = vmatpush1.bf16.msra.mxu0 %v571
      %590 = vmatprep.subr.bf16.mxu0 0
      %591 = vmatpush1.bf16.msra.mxu0 %v572
      %592 = vmatprep.subr.bf16.mxu0 0
      %593 = vmatpush1.bf16.msra.mxu0 %v573
      %594 = vmatprep.subr.bf16.mxu0 0
      %595 = vmatpush1.bf16.msra.mxu0 %v574
      %596 = vmatprep.subr.bf16.mxu0 0
      %597 = vmatpush1.bf16.msra.mxu0 %v575
      %598 = vmatprep.subr.bf16.mxu0 0
      %599 = vmatpush1.bf16.msra.mxu0 %v576
      %600 = vmatprep.subr.bf16.mxu0 0
      %601 = vmatpush1.bf16.msra.mxu0 %v577
      %602 = vmatprep.subr.bf16.mxu0 0
      %603 = vmatpush1.bf16.msra.mxu0 0
      %604 = vmatprep.subr.bf16.mxu0 0
      %605 = vmatpush1.bf16.msra.mxu0 0
      %606 = vmatprep.subr.bf16.mxu0 0
      %607 = vmatpush1.bf16.msra.mxu0 0
      %608 = vmatprep.subr.bf16.mxu0 0
      %609 = vmatpush1.bf16.msra.mxu0 0
      %610 = vmatprep.subr.bf16.mxu0 0
      %611 = vmatpush1.bf16.msra.mxu0 0
      %612 = vmatprep.subr.bf16.mxu0 0
      %613 = vmatpush1.bf16.msra.mxu0 0
      %614 = vmatprep.subr.bf16.mxu0 0
      %615 = vmatpush1.bf16.msra.mxu0 0
      %616 = vmatprep.subr.bf16.mxu0 0
      %617 = vmatpush1.bf16.msra.mxu0 0
      %618 = vmatprep.mubr.bf16.mxu0 0
      %619 = vmatmul.mubr.bf16.gmra.mrb[0].mxu0 %v503
      %v620 = vpop.f32.mrb[0].mxu0
      %v621 = vadd.f32 0.0, %v620
      %v622 = vpop.f32.mrb[0].mxu0
      %v623 = vpop.f32.mrb[0].mxu0
      %v624 = vadd.f32 0.0, %v623
      %v625 = vpop.f32.mrb[0].mxu0
      %626 = vmatprep.mubr.bf16.mxu0 0
      %627 = vmatmul.mubr.bf16.gmra.mrb[0].mxu0 %v504
      %v628 = vpop.f32.mrb[0].mxu0
      %v629 = vadd.f32 0.0, %v628
      %v630 = vpop.f32.mrb[0].mxu0
      %v631 = vpop.f32.mrb[0].mxu0
      %v632 = vadd.f32 0.0, %v631
      %v633 = vpop.f32.mrb[0].mxu0
      %634 = vmatprep.mubr.bf16.mxu0 0
      %635 = vmatmul.mubr.bf16.gmra.mrb[0].mxu0 %v505
      %v636 = vpop.f32.mrb[0].mxu0
      %v637 = vadd.f32 0.0, %v636
      %v638 = vpop.f32.mrb[0].mxu0
      %v639 = vpop.f32.mrb[0].mxu0
      %v640 = vadd.f32 0.0, %v639
      %v641 = vpop.f32.mrb[0].mxu0
      %642 = vmatprep.mubr.bf16.mxu0 0
      %643 = vmatmul.mubr.bf16.gmra.mrb[0].mxu0 %v506
      %v644 = vpop.f32.mrb[0].mxu0
      %v645 = vadd.f32 0.0, %v644
      %v646 = vpop.f32.mrb[0].mxu0
      %v647 = vpop.f32.mrb[0].mxu0
      %v648 = vadd.f32 0.0, %v647
      %v649 = vpop.f32.mrb[0].mxu0
      %650 = vmatprep.mubr.bf16.mxu0 0
      %651 = vmatmul.mubr.bf16.gmra.mrb[0].mxu0 %v507
      %v652 = vpop.f32.mrb[0].mxu0
      %v653 = vadd.f32 0.0, %v652
      %v654 = vpop.f32.mrb[0].mxu0
      %v655 = vpop.f32.mrb[0].mxu0
      %v656 = vadd.f32 0.0, %v655
      %v657 = vpop.f32.mrb[0].mxu0
      %658 = vmatprep.mubr.bf16.mxu0 0
      %659 = vmatmul.mubr.bf16.gmra.mrb[0].mxu0 %v508
      %v660 = vpop.f32.mrb[0].mxu0
      %v661 = vadd.f32 0.0, %v660
      %v662 = vpop.f32.mrb[0].mxu0
      %v663 = vpop.f32.mrb[0].mxu0
      %v664 = vadd.f32 0.0, %v663
      %v665 = vpop.f32.mrb[0].mxu0
      %666 = vmatprep.mubr.bf16.mxu0 0
      %667 = vmatmul.mubr.bf16.gmra.mrb[0].mxu0 %v509
      %v668 = vpop.f32.mrb[0].mxu0
      %v669 = vadd.f32 0.0, %v668
      %v670 = vpop.f32.mrb[0].mxu0
      %v671 = vpop.f32.mrb[0].mxu0
      %v672 = vadd.f32 0.0, %v671
      %v673 = vpop.f32.mrb[0].mxu0
      %674 = vmatprep.mubr.bf16.mxu0 0
      %675 = vmatmul.mubr.bf16.gmra.mrb[0].mxu0 %v510
      %v676 = vpop.f32.mrb[0].mxu0
      %v677 = vadd.f32 0.0, %v676
      %v678 = vpop.f32.mrb[0].mxu0
      %v679 = vpop.f32.mrb[0].mxu0
      %v680 = vadd.f32 0.0, %v679
      %v681 = vpop.f32.mrb[0].mxu0
      %682 = vmatprep.mubr.bf16.mxu0 0
      %683 = vmatmul.mubr.bf16.gmra.mrb[0].mxu0 %v511
      %v684 = vpop.f32.mrb[0].mxu0
      %v685 = vadd.f32 0.0, %v684
      %v686 = vpop.f32.mrb[0].mxu0
      %v687 = vpop.f32.mrb[0].mxu0
      %v688 = vadd.f32 0.0, %v687
      %v689 = vpop.f32.mrb[0].mxu0
      %690 = vmatprep.mubr.bf16.mxu0 0
      %691 = vmatmul.mubr.bf16.gmra.mrb[0].mxu0 %v512
      %v692 = vpop.f32.mrb[0].mxu0
      %v693 = vadd.f32 0.0, %v692
      %v694 = vpop.f32.mrb[0].mxu0
      %v695 = vpop.f32.mrb[0].mxu0
      %v696 = vadd.f32 0.0, %v695
      %v697 = vpop.f32.mrb[0].mxu0
      %698 = vmatprep.mubr.bf16.mxu0 0
      %699 = vmatmul.mubr.bf16.gmra.mrb[0].mxu0 %v513
      %v700 = vpop.f32.mrb[0].mxu0
      %v701 = vadd.f32 0.0, %v700
      %v702 = vpop.f32.mrb[0].mxu0
      %v703 = vpop.f32.mrb[0].mxu0
      %v704 = vadd.f32 0.0, %v703
      %v705 = vpop.f32.mrb[0].mxu0
      %706 = vmatprep.mubr.bf16.mxu0 0
      %707 = vmatmul.mubr.bf16.gmra.mrb[0].mxu0 %v514
      %v708 = vpop.f32.mrb[0].mxu0
      %v709 = vadd.f32 0.0, %v708
      %v710 = vpop.f32.mrb[0].mxu0
      %v711 = vpop.f32.mrb[0].mxu0
      %v712 = vadd.f32 0.0, %v711
      %v713 = vpop.f32.mrb[0].mxu0
      %714 = vmatprep.mubr.bf16.mxu0 0
      %715 = vmatmul.mubr.bf16.gmra.mrb[0].mxu0 %v515
      %v716 = vpop.f32.mrb[0].mxu0
      %v717 = vadd.f32 0.0, %v716
      %v718 = vpop.f32.mrb[0].mxu0
      %v719 = vpop.f32.mrb[0].mxu0
      %v720 = vadd.f32 0.0, %v719
      %v721 = vpop.f32.mrb[0].mxu0
      %722 = vmatprep.mubr.bf16.mxu0 0
      %723 = vmatmul.mubr.bf16.gmra.mrb[0].mxu0 %v516
      %v724 = vpop.f32.mrb[0].mxu0
      %v725 = vadd.f32 0.0, %v724
      %v726 = vpop.f32.mrb[0].mxu0
      %v727 = vpop.f32.mrb[0].mxu0
      %v728 = vadd.f32 0.0, %v727
      %v729 = vpop.f32.mrb[0].mxu0
      %730 = vmatprep.mubr.bf16.mxu0 0
      %731 = vmatmul.mubr.bf16.gmra.mrb[0].mxu0 %v517
      %v732 = vpop.f32.mrb[0].mxu0
      %v733 = vadd.f32 0.0, %v732
      %v734 = vpop.f32.mrb[0].mxu0
      %v735 = vpop.f32.mrb[0].mxu0
      %v736 = vadd.f32 0.0, %v735
      %v737 = vpop.f32.mrb[0].mxu0
      %738 = vmatprep.mubr.bf16.mxu0 0
      %739 = vmatmul.mubr.bf16.gmra.mrb[0].mxu0 %v518
      %v740 = vpop.f32.mrb[0].mxu0
      %v741 = vadd.f32 0.0, %v740
      %v742 = vpop.f32.mrb[0].mxu0
      %v743 = vpop.f32.mrb[0].mxu0
      %v744 = vadd.f32 0.0, %v743
      %v745 = vpop.f32.mrb[0].mxu0
      %746 = vmatprep.mubr.bf16.mxu0 0
      %747 = vmatmul.mubr.bf16.gmra.mrb[0].mxu0 %v519
      %v748 = vpop.f32.mrb[0].mxu0
      %v749 = vadd.f32 0.0, %v748
      %v750 = vpop.f32.mrb[0].mxu0
      %v751 = vpop.f32.mrb[0].mxu0
      %v752 = vadd.f32 0.0, %v751
      %v753 = vpop.f32.mrb[0].mxu0
      %754 = vmatprep.mubr.bf16.mxu0 0
      %755 = vmatmul.mubr.bf16.gmra.mrb[0].mxu0 %v520
      %v756 = vpop.f32.mrb[0].mxu0
      %v757 = vadd.f32 0.0, %v756
      %v758 = vpop.f32.mrb[0].mxu0
      %v759 = vpop.f32.mrb[0].mxu0
      %v760 = vadd.f32 0.0, %v759
      %v761 = vpop.f32.mrb[0].mxu0
      %762 = vdwg.mxu0
      %v779 = vunpack.c.l.b16 %v451
      %v780 = vunpack.c.l.b16 %v452
      %v781 = vunpack.c.l.b16 %v453
      %v782 = vunpack.c.l.b16 %v454
      %v783 = vunpack.c.l.b16 %v455
      %v784 = vunpack.c.l.b16 %v456
      %v785 = vunpack.c.l.b16 %v457
      %v786 = vunpack.c.l.b16 %v458
      %v787 = vunpack.c.l.b16 %v459
      %v788 = vunpack.c.l.b16 %v460
      %v789 = vunpack.c.l.b16 %v461
      %v790 = vunpack.c.l.b16 %v462
      %v791 = vunpack.c.l.b16 %v463
      %v792 = vunpack.c.l.b16 %v464
      %v793 = vunpack.c.l.b16 %v465
      %v794 = vunpack.c.l.b16 %v466
      %v795 = vpack.c.b16 %v780, %v779
      %v796 = vpack.c.b16 %v782, %v781
      %v797 = vpack.c.b16 %v784, %v783
      %v798 = vpack.c.b16 %v786, %v785
      %v799 = vpack.c.b16 %v788, %v787
      %v800 = vpack.c.b16 %v790, %v789
      %v801 = vpack.c.b16 %v792, %v791
      %v802 = vpack.c.b16 %v794, %v793
      %811 = vmatprep.subr.bf16.mxu0 0
      %812 = vmatpush1.bf16.msra.mxu0 %v795
      %813 = vmatprep.subr.bf16.mxu0 0
      %814 = vmatpush1.bf16.msra.mxu0 %v796
      %815 = vmatprep.subr.bf16.mxu0 0
      %816 = vmatpush1.bf16.msra.mxu0 %v797
      %817 = vmatprep.subr.bf16.mxu0 0
      %818 = vmatpush1.bf16.msra.mxu0 %v798
      %819 = vmatprep.subr.bf16.mxu0 0
      %820 = vmatpush1.bf16.msra.mxu0 %v799
      %821 = vmatprep.subr.bf16.mxu0 0
      %822 = vmatpush1.bf16.msra.mxu0 %v800
      %823 = vmatprep.subr.bf16.mxu0 0
      %824 = vmatpush1.bf16.msra.mxu0 %v801
      %825 = vmatprep.subr.bf16.mxu0 0
      %826 = vmatpush1.bf16.msra.mxu0 %v802
      %827 = vmatprep.subr.bf16.mxu0 0
      %828 = vmatpush1.bf16.msra.mxu0 0
      %829 = vmatprep.subr.bf16.mxu0 0
      %830 = vmatpush1.bf16.msra.mxu0 0
      %831 = vmatprep.subr.bf16.mxu0 0
      %832 = vmatpush1.bf16.msra.mxu0 0
      %833 = vmatprep.subr.bf16.mxu0 0
      %834 = vmatpush1.bf16.msra.mxu0 0
      %835 = vmatprep.subr.bf16.mxu0 0
      %836 = vmatpush1.bf16.msra.mxu0 0
      %837 = vmatprep.subr.bf16.mxu0 0
      %838 = vmatpush1.bf16.msra.mxu0 0
      %839 = vmatprep.subr.bf16.mxu0 0
      %840 = vmatpush1.bf16.msra.mxu0 0
      %841 = vmatprep.subr.bf16.mxu0 0
      %842 = vmatpush1.bf16.msra.mxu0 0
      %843 = vmatprep.mubr.bf16.mxu0 0
      %844 = vmatmul.mubr.bf16.gmra.mrb[0].mxu0 %v433
      %v845 = vpop.f32.mrb[0].mxu0
      %v846 = vadd.f32 %v621, %v845
      %v847 = vpop.f32.mrb[0].mxu0
      %v848 = vpop.f32.mrb[0].mxu0
      %v849 = vadd.f32 %v624, %v848
      %v850 = vpop.f32.mrb[0].mxu0
      %851 = vmatprep.mubr.bf16.mxu0 0
      %852 = vmatmul.mubr.bf16.gmra.mrb[0].mxu0 %v434
      %v853 = vpop.f32.mrb[0].mxu0
      %v854 = vadd.f32 %v629, %v853
      %v855 = vpop.f32.mrb[0].mxu0
      %v856 = vpop.f32.mrb[0].mxu0
      %v857 = vadd.f32 %v632, %v856
      %v858 = vpop.f32.mrb[0].mxu0
      %859 = vmatprep.mubr.bf16.mxu0 0
      %860 = vmatmul.mubr.bf16.gmra.mrb[0].mxu0 %v435
      %v861 = vpop.f32.mrb[0].mxu0
      %v862 = vadd.f32 %v637, %v861
      %v863 = vpop.f32.mrb[0].mxu0
      %v864 = vpop.f32.mrb[0].mxu0
      %v865 = vadd.f32 %v640, %v864
      %v866 = vpop.f32.mrb[0].mxu0
      %867 = vmatprep.mubr.bf16.mxu0 0
      %868 = vmatmul.mubr.bf16.gmra.mrb[0].mxu0 %v436
      %v869 = vpop.f32.mrb[0].mxu0
      %v870 = vadd.f32 %v645, %v869
      %v871 = vpop.f32.mrb[0].mxu0
      %v872 = vpop.f32.mrb[0].mxu0
      %v873 = vadd.f32 %v648, %v872
      %v874 = vpop.f32.mrb[0].mxu0
      %875 = vmatprep.mubr.bf16.mxu0 0
      %876 = vmatmul.mubr.bf16.gmra.mrb[0].mxu0 %v437
      %v877 = vpop.f32.mrb[0].mxu0
      %v878 = vadd.f32 %v653, %v877
      %v879 = vpop.f32.mrb[0].mxu0
      %v880 = vpop.f32.mrb[0].mxu0
      %v881 = vadd.f32 %v656, %v880
      %v882 = vpop.f32.mrb[0].mxu0
      %883 = vmatprep.mubr.bf16.mxu0 0
      %884 = vmatmul.mubr.bf16.gmra.mrb[0].mxu0 %v438
      %v885 = vpop.f32.mrb[0].mxu0
      %v886 = vadd.f32 %v661, %v885
      %v887 = vpop.f32.mrb[0].mxu0
      %v888 = vpop.f32.mrb[0].mxu0
      %v889 = vadd.f32 %v664, %v888
      %v890 = vpop.f32.mrb[0].mxu0
      %891 = vmatprep.mubr.bf16.mxu0 0
      %892 = vmatmul.mubr.bf16.gmra.mrb[0].mxu0 %v439
      %v893 = vpop.f32.mrb[0].mxu0
      %v894 = vadd.f32 %v669, %v893
      %v895 = vpop.f32.mrb[0].mxu0
      %v896 = vpop.f32.mrb[0].mxu0
      %v897 = vadd.f32 %v672, %v896
      %v898 = vpop.f32.mrb[0].mxu0
      %899 = vmatprep.mubr.bf16.mxu0 0
      %900 = vmatmul.mubr.bf16.gmra.mrb[0].mxu0 %v440
      %v901 = vpop.f32.mrb[0].mxu0
      %v902 = vadd.f32 %v677, %v901
      %v903 = vpop.f32.mrb[0].mxu0
      %v904 = vpop.f32.mrb[0].mxu0
      %v905 = vadd.f32 %v680, %v904
      %v906 = vpop.f32.mrb[0].mxu0
      %907 = vmatprep.mubr.bf16.mxu0 0
      %908 = vmatmul.mubr.bf16.gmra.mrb[0].mxu0 %v441
      %v909 = vpop.f32.mrb[0].mxu0
      %v910 = vadd.f32 %v685, %v909
      %v911 = vpop.f32.mrb[0].mxu0
      %v912 = vpop.f32.mrb[0].mxu0
      %v913 = vadd.f32 %v688, %v912
      %v914 = vpop.f32.mrb[0].mxu0
      %915 = vmatprep.mubr.bf16.mxu0 0
      %916 = vmatmul.mubr.bf16.gmra.mrb[0].mxu0 %v442
      %v917 = vpop.f32.mrb[0].mxu0
      %v918 = vadd.f32 %v693, %v917
      %v919 = vpop.f32.mrb[0].mxu0
      %v920 = vpop.f32.mrb[0].mxu0
      %v921 = vadd.f32 %v696, %v920
      %v922 = vpop.f32.mrb[0].mxu0
      %923 = vmatprep.mubr.bf16.mxu0 0
      %924 = vmatmul.mubr.bf16.gmra.mrb[0].mxu0 %v443
      %v925 = vpop.f32.mrb[0].mxu0
      %v926 = vadd.f32 %v701, %v925
      %v927 = vpop.f32.mrb[0].mxu0
      %v928 = vpop.f32.mrb[0].mxu0
      %v929 = vadd.f32 %v704, %v928
      %v930 = vpop.f32.mrb[0].mxu0
      %931 = vmatprep.mubr.bf16.mxu0 0
      %932 = vmatmul.mubr.bf16.gmra.mrb[0].mxu0 %v444
      %v933 = vpop.f32.mrb[0].mxu0
      %v934 = vadd.f32 %v709, %v933
      %v935 = vpop.f32.mrb[0].mxu0
      %v936 = vpop.f32.mrb[0].mxu0
      %v937 = vadd.f32 %v712, %v936
      %v938 = vpop.f32.mrb[0].mxu0
      %939 = vmatprep.mubr.bf16.mxu0 0
      %940 = vmatmul.mubr.bf16.gmra.mrb[0].mxu0 %v445
      %v941 = vpop.f32.mrb[0].mxu0
      %v942 = vadd.f32 %v717, %v941
      %v943 = vpop.f32.mrb[0].mxu0
      %v944 = vpop.f32.mrb[0].mxu0
      %v945 = vadd.f32 %v720, %v944
      %v946 = vpop.f32.mrb[0].mxu0
      %947 = vmatprep.mubr.bf16.mxu0 0
      %948 = vmatmul.mubr.bf16.gmra.mrb[0].mxu0 %v446
      %v949 = vpop.f32.mrb[0].mxu0
      %v950 = vadd.f32 %v725, %v949
      %v951 = vpop.f32.mrb[0].mxu0
      %v952 = vpop.f32.mrb[0].mxu0
      %v953 = vadd.f32 %v728, %v952
      %v954 = vpop.f32.mrb[0].mxu0
      %955 = vmatprep.mubr.bf16.mxu0 0
      %956 = vmatmul.mubr.bf16.gmra.mrb[0].mxu0 %v447
      %v957 = vpop.f32.mrb[0].mxu0
      %v958 = vadd.f32 %v733, %v957
      %v959 = vpop.f32.mrb[0].mxu0
      %v960 = vpop.f32.mrb[0].mxu0
      %v961 = vadd.f32 %v736, %v960
      %v962 = vpop.f32.mrb[0].mxu0
      %963 = vmatprep.mubr.bf16.mxu0 0
      %964 = vmatmul.mubr.bf16.gmra.mrb[0].mxu0 %v448
      %v965 = vpop.f32.mrb[0].mxu0
      %v966 = vadd.f32 %v741, %v965
      %v967 = vpop.f32.mrb[0].mxu0
      %v968 = vpop.f32.mrb[0].mxu0
      %v969 = vadd.f32 %v744, %v968
      %v970 = vpop.f32.mrb[0].mxu0
      %971 = vmatprep.mubr.bf16.mxu0 0
      %972 = vmatmul.mubr.bf16.gmra.mrb[0].mxu0 %v449
      %v973 = vpop.f32.mrb[0].mxu0
      %v974 = vadd.f32 %v749, %v973
      %v975 = vpop.f32.mrb[0].mxu0
      %v976 = vpop.f32.mrb[0].mxu0
      %v977 = vadd.f32 %v752, %v976
      %v978 = vpop.f32.mrb[0].mxu0
      %979 = vmatprep.mubr.bf16.mxu0 0
      %980 = vmatmul.mubr.bf16.gmra.mrb[0].mxu0 %v450
      %v981 = vpop.f32.mrb[0].mxu0
      %v982 = vadd.f32 %v757, %v981
      %v983 = vpop.f32.mrb[0].mxu0
      %v984 = vpop.f32.mrb[0].mxu0
      %v985 = vadd.f32 %v760, %v984
      %v986 = vpop.f32.mrb[0].mxu0
      %987 = vdwg.mxu0
      %v988 = vld [vmem:[%s354 + $0x24] sm:$0xff]
      %v989 = vld [vmem:[%s354 + $0x2c] sm:$0xff]
      %v990 = vld [vmem:[%s354 + $0x34] sm:$0xff]
      %v991 = vld [vmem:[%s354 + $0x3c] sm:$0xff]
      %v992 = vld [vmem:[%s354 + $0x44] sm:$0xff]
      %v993 = vld [vmem:[%s354 + $0x4c] sm:$0xff]
      %v994 = vld [vmem:[%s354 + $0x54] sm:$0xff]
      %v995 = vld [vmem:[%s354 + $0x5c] sm:$0xff]
      %v996 = vld [vmem:[%s354 + $0x64] sm:$0xff]
      %v997 = vld [vmem:[%s354 + $0x6c] sm:$0xff]
      %v998 = vld [vmem:[%s354 + $0x74] sm:$0xff]
      %v999 = vld [vmem:[%s354 + $0x7c] sm:$0xff]
      %v1000 = vld [vmem:[%s354 + $0x84] sm:$0xff]
      %v1001 = vld [vmem:[%s354 + $0x8c] sm:$0xff]
      %v1002 = vld [vmem:[%s354 + $0x94] sm:$0xff]
      %v1003 = vld [vmem:[%s354 + $0x9c] sm:$0xff]
      %v1004 = vld [vmem:[%s354 + $0xa4] sm:$0xff]
      %v1005 = vld [vmem:[%s354 + $0xac] sm:$0xff]
      %v1006 = vld [vmem:[%s354 + $0xb4] sm:$0xff]
      %v1007 = vld [vmem:[%s354 + $0xbc] sm:$0xff]
      %v1008 = vld [vmem:[%s354 + $0xc4] sm:$0xff]
      %v1009 = vld [vmem:[%s354 + $0xcc] sm:$0xff]
      %v1010 = vld [vmem:[%s354 + $0xd4] sm:$0xff]
      %v1011 = vld [vmem:[%s354 + $0xdc] sm:$0xff]
      %v1012 = vld [vmem:[%s354 + $0xe4] sm:$0xff]
      %v1013 = vld [vmem:[%s354 + $0xec] sm:$0xff]
      %v1014 = vld [vmem:[%s354 + $0xf4] sm:$0xff]
      %v1015 = vld [vmem:[%s354 + $0xfc] sm:$0xff]
      %v1016 = vld [vmem:[%s354 + $0x104] sm:$0xff]
      %v1017 = vld [vmem:[%s354 + $0x10c] sm:$0xff]
      %v1018 = vld [vmem:[%s354 + $0x114] sm:$0xff]
      %v1019 = vld [vmem:[%s354 + $0x11c] sm:$0xff]
      %v1020 = vld [vmem:[%s354 + $0x124] sm:$0xff]
      %v1021 = vld [vmem:[%s354 + $0x12c] sm:$0xff]
      %v1022 = vld [vmem:[%s354 + $0x134] sm:$0xff]
      %v1023 = vld [vmem:[%s354 + $0x13c] sm:$0xff]
      %v1024 = vpack.c.bf16 %v989, %v988
      %v1025 = vpack.c.bf16 %v991, %v990
      %v1026 = vpack.c.bf16 %v993, %v992
      %v1027 = vpack.c.bf16 %v995, %v994
      %v1028 = vpack.c.bf16 %v997, %v996
      %v1029 = vpack.c.bf16 %v999, %v998
      %v1030 = vpack.c.bf16 %v1001, %v1000
      %v1031 = vpack.c.bf16 %v1003, %v1002
      %v1032 = vpack.c.bf16 %v1005, %v1004
      %v1033 = vpack.c.bf16 %v1007, %v1006
      %v1034 = vpack.c.bf16 %v1009, %v1008
      %v1035 = vpack.c.bf16 %v1011, %v1010
      %v1036 = vpack.c.bf16 %v1013, %v1012
      %v1037 = vpack.c.bf16 %v1015, %v1014
      %v1038 = vpack.c.bf16 %v1017, %v1016
      %v1039 = vpack.c.bf16 %v1019, %v1018
      %v1040 = vpack.c.bf16 %v1021, %v1020
      %v1041 = vpack.c.bf16 %v1023, %v1022
      %s1042 = scalar_lea.vmem %s1, 128
      %v1043 = vld [vmem:[%s1042] sm:$0xf]
      %v1044 = vld [vmem:[%s1042 + $0x4] sm:$0xf]
      %v1045 = vld [vmem:[%s1042 + $0x8] sm:$0xf]
      %v1046 = vld [vmem:[%s1042 + $0xc] sm:$0xf]
      %v1047 = vld [vmem:[%s1042 + $0x10] sm:$0xf]
      %v1048 = vld [vmem:[%s1042 + $0x14] sm:$0xf]
      %v1049 = vld [vmem:[%s1042 + $0x18] sm:$0xf]
      %v1050 = vld [vmem:[%s1042 + $0x1c] sm:$0xf]
      %v1051 = vld [vmem:[%s1042 + $0x20] sm:$0xf]
      %v1052 = vld [vmem:[%s1042 + $0x24] sm:$0xf]
      %v1053 = vld [vmem:[%s1042 + $0x28] sm:$0xf]
      %v1054 = vld [vmem:[%s1042 + $0x2c] sm:$0xf]
      %v1055 = vld [vmem:[%s1042 + $0x30] sm:$0xf]
      %v1056 = vld [vmem:[%s1042 + $0x34] sm:$0xf]
      %v1057 = vld [vmem:[%s1042 + $0x38] sm:$0xf]
      %v1058 = vld [vmem:[%s1042 + $0x3c] sm:$0xf]
      %v1075 = vunpack.c.l.b16 %v1043
      %v1076 = vunpack.c.l.b16 %v1044
      %v1077 = vunpack.c.l.b16 %v1045
      %v1078 = vunpack.c.l.b16 %v1046
      %v1079 = vunpack.c.l.b16 %v1047
      %v1080 = vunpack.c.l.b16 %v1048
      %v1081 = vunpack.c.l.b16 %v1049
      %v1082 = vunpack.c.l.b16 %v1050
      %v1083 = vunpack.c.l.b16 %v1051
      %v1084 = vunpack.c.l.b16 %v1052
      %v1085 = vunpack.c.l.b16 %v1053
      %v1086 = vunpack.c.l.b16 %v1054
      %v1087 = vunpack.c.l.b16 %v1055
      %v1088 = vunpack.c.l.b16 %v1056
      %v1089 = vunpack.c.l.b16 %v1057
      %v1090 = vunpack.c.l.b16 %v1058
      %v1091 = vpack.c.b16 %v1076, %v1075
      %v1092 = vpack.c.b16 %v1078, %v1077
      %v1093 = vpack.c.b16 %v1080, %v1079
      %v1094 = vpack.c.b16 %v1082, %v1081
      %v1095 = vpack.c.b16 %v1084, %v1083
      %v1096 = vpack.c.b16 %v1086, %v1085
      %v1097 = vpack.c.b16 %v1088, %v1087
      %v1098 = vpack.c.b16 %v1090, %v1089
      %1107 = vmatprep.subr.bf16.mxu0 0
      %1108 = vmatpush1.bf16.msra.mxu0 %v1091
      %1109 = vmatprep.subr.bf16.mxu0 0
      %1110 = vmatpush1.bf16.msra.mxu0 %v1092
      %1111 = vmatprep.subr.bf16.mxu0 0
      %1112 = vmatpush1.bf16.msra.mxu0 %v1093
      %1113 = vmatprep.subr.bf16.mxu0 0
      %1114 = vmatpush1.bf16.msra.mxu0 %v1094
      %1115 = vmatprep.subr.bf16.mxu0 0
      %1116 = vmatpush1.bf16.msra.mxu0 %v1095
      %1117 = vmatprep.subr.bf16.mxu0 0
      %1118 = vmatpush1.bf16.msra.mxu0 %v1096
      %1119 = vmatprep.subr.bf16.mxu0 0
      %1120 = vmatpush1.bf16.msra.mxu0 %v1097
      %1121 = vmatprep.subr.bf16.mxu0 0
      %1122 = vmatpush1.bf16.msra.mxu0 %v1098
      %1123 = vmatprep.subr.bf16.mxu0 0
      %1124 = vmatpush1.bf16.msra.mxu0 0
      %1125 = vmatprep.subr.bf16.mxu0 0
      %1126 = vmatpush1.bf16.msra.mxu0 0
      %1127 = vmatprep.subr.bf16.mxu0 0
      %1128 = vmatpush1.bf16.msra.mxu0 0
      %1129 = vmatprep.subr.bf16.mxu0 0
      %1130 = vmatpush1.bf16.msra.mxu0 0
      %1131 = vmatprep.subr.bf16.mxu0 0
      %1132 = vmatpush1.bf16.msra.mxu0 0
      %1133 = vmatprep.subr.bf16.mxu0 0
      %1134 = vmatpush1.bf16.msra.mxu0 0
      %1135 = vmatprep.subr.bf16.mxu0 0
      %1136 = vmatpush1.bf16.msra.mxu0 0
      %1137 = vmatprep.subr.bf16.mxu0 0
      %1138 = vmatpush1.bf16.msra.mxu0 0
      %1139 = vmatprep.mubr.bf16.mxu0 0
      %1140 = vmatmul.mubr.bf16.gmra.mrb[0].mxu0 %v1024
      %v1141 = vpop.f32.mrb[0].mxu0
      %v1142 = vadd.f32 0.0, %v1141
      %v1143 = vpop.f32.mrb[0].mxu0
      %v1144 = vpop.f32.mrb[0].mxu0
      %v1145 = vadd.f32 0.0, %v1144
      %v1146 = vpop.f32.mrb[0].mxu0
      %1147 = vmatprep.mubr.bf16.mxu0 0
      %1148 = vmatmul.mubr.bf16.gmra.mrb[0].mxu0 %v1025
      %v1149 = vpop.f32.mrb[0].mxu0
      %v1150 = vadd.f32 0.0, %v1149
      %v1151 = vpop.f32.mrb[0].mxu0
      %v1152 = vpop.f32.mrb[0].mxu0
      %v1153 = vadd.f32 0.0, %v1152
      %v1154 = vpop.f32.mrb[0].mxu0
      %1155 = vmatprep.mubr.bf16.mxu0 0
      %1156 = vmatmul.mubr.bf16.gmra.mrb[0].mxu0 %v1026
      %v1157 = vpop.f32.mrb[0].mxu0
      %v1158 = vadd.f32 0.0, %v1157
      %v1159 = vpop.f32.mrb[0].mxu0
      %v1160 = vpop.f32.mrb[0].mxu0
      %v1161 = vadd.f32 0.0, %v1160
      %v1162 = vpop.f32.mrb[0].mxu0
      %1163 = vmatprep.mubr.bf16.mxu0 0
      %1164 = vmatmul.mubr.bf16.gmra.mrb[0].mxu0 %v1027
      %v1165 = vpop.f32.mrb[0].mxu0
      %v1166 = vadd.f32 0.0, %v1165
      %v1167 = vpop.f32.mrb[0].mxu0
      %v1168 = vpop.f32.mrb[0].mxu0
      %v1169 = vadd.f32 0.0, %v1168
      %v1170 = vpop.f32.mrb[0].mxu0
      %1171 = vmatprep.mubr.bf16.mxu0 0
      %1172 = vmatmul.mubr.bf16.gmra.mrb[0].mxu0 %v1028
      %v1173 = vpop.f32.mrb[0].mxu0
      %v1174 = vadd.f32 0.0, %v1173
      %v1175 = vpop.f32.mrb[0].mxu0
      %v1176 = vpop.f32.mrb[0].mxu0
      %v1177 = vadd.f32 0.0, %v1176
      %v1178 = vpop.f32.mrb[0].mxu0
      %1179 = vmatprep.mubr.bf16.mxu0 0
      %1180 = vmatmul.mubr.bf16.gmra.mrb[0].mxu0 %v1029
      %v1181 = vpop.f32.mrb[0].mxu0
      %v1182 = vadd.f32 0.0, %v1181
      %v1183 = vpop.f32.mrb[0].mxu0
      %v1184 = vpop.f32.mrb[0].mxu0
      %v1185 = vadd.f32 0.0, %v1184
      %v1186 = vpop.f32.mrb[0].mxu0
      %1187 = vmatprep.mubr.bf16.mxu0 0
      %1188 = vmatmul.mubr.bf16.gmra.mrb[0].mxu0 %v1030
      %v1189 = vpop.f32.mrb[0].mxu0
      %v1190 = vadd.f32 0.0, %v1189
      %v1191 = vpop.f32.mrb[0].mxu0
      %v1192 = vpop.f32.mrb[0].mxu0
      %v1193 = vadd.f32 0.0, %v1192
      %v1194 = vpop.f32.mrb[0].mxu0
      %1195 = vmatprep.mubr.bf16.mxu0 0
      %1196 = vmatmul.mubr.bf16.gmra.mrb[0].mxu0 %v1031
      %v1197 = vpop.f32.mrb[0].mxu0
      %v1198 = vadd.f32 0.0, %v1197
      %v1199 = vpop.f32.mrb[0].mxu0
      %v1200 = vpop.f32.mrb[0].mxu0
      %v1201 = vadd.f32 0.0, %v1200
      %v1202 = vpop.f32.mrb[0].mxu0
      %1203 = vmatprep.mubr.bf16.mxu0 0
      %1204 = vmatmul.mubr.bf16.gmra.mrb[0].mxu0 %v1032
      %v1205 = vpop.f32.mrb[0].mxu0
      %v1206 = vadd.f32 0.0, %v1205
      %v1207 = vpop.f32.mrb[0].mxu0
      %v1208 = vpop.f32.mrb[0].mxu0
      %v1209 = vadd.f32 0.0, %v1208
      %v1210 = vpop.f32.mrb[0].mxu0
      %1211 = vmatprep.mubr.bf16.mxu0 0
      %1212 = vmatmul.mubr.bf16.gmra.mrb[0].mxu0 %v1033
      %v1213 = vpop.f32.mrb[0].mxu0
      %v1214 = vadd.f32 0.0, %v1213
      %v1215 = vpop.f32.mrb[0].mxu0
      %v1216 = vpop.f32.mrb[0].mxu0
      %v1217 = vadd.f32 0.0, %v1216
      %v1218 = vpop.f32.mrb[0].mxu0
      %1219 = vmatprep.mubr.bf16.mxu0 0
      %1220 = vmatmul.mubr.bf16.gmra.mrb[0].mxu0 %v1034
      %v1221 = vpop.f32.mrb[0].mxu0
      %v1222 = vadd.f32 0.0, %v1221
      %v1223 = vpop.f32.mrb[0].mxu0
      %v1224 = vpop.f32.mrb[0].mxu0
      %v1225 = vadd.f32 0.0, %v1224
      %v1226 = vpop.f32.mrb[0].mxu0
      %1227 = vmatprep.mubr.bf16.mxu0 0
      %1228 = vmatmul.mubr.bf16.gmra.mrb[0].mxu0 %v1035
      %v1229 = vpop.f32.mrb[0].mxu0
      %v1230 = vadd.f32 0.0, %v1229
      %v1231 = vpop.f32.mrb[0].mxu0
      %v1232 = vpop.f32.mrb[0].mxu0
      %v1233 = vadd.f32 0.0, %v1232
      %v1234 = vpop.f32.mrb[0].mxu0
      %1235 = vmatprep.mubr.bf16.mxu0 0
      %1236 = vmatmul.mubr.bf16.gmra.mrb[0].mxu0 %v1036
      %v1237 = vpop.f32.mrb[0].mxu0
      %v1238 = vadd.f32 0.0, %v1237
      %v1239 = vpop.f32.mrb[0].mxu0
      %v1240 = vpop.f32.mrb[0].mxu0
      %v1241 = vadd.f32 0.0, %v1240
      %v1242 = vpop.f32.mrb[0].mxu0
      %1243 = vmatprep.mubr.bf16.mxu0 0
      %1244 = vmatmul.mubr.bf16.gmra.mrb[0].mxu0 %v1037
      %v1245 = vpop.f32.mrb[0].mxu0
      %v1246 = vadd.f32 0.0, %v1245
      %v1247 = vpop.f32.mrb[0].mxu0
      %v1248 = vpop.f32.mrb[0].mxu0
      %v1249 = vadd.f32 0.0, %v1248
      %v1250 = vpop.f32.mrb[0].mxu0
      %1251 = vmatprep.mubr.bf16.mxu0 0
      %1252 = vmatmul.mubr.bf16.gmra.mrb[0].mxu0 %v1038
      %v1253 = vpop.f32.mrb[0].mxu0
      %v1254 = vadd.f32 0.0, %v1253
      %v1255 = vpop.f32.mrb[0].mxu0
      %v1256 = vpop.f32.mrb[0].mxu0
      %v1257 = vadd.f32 0.0, %v1256
      %v1258 = vpop.f32.mrb[0].mxu0
      %1259 = vmatprep.mubr.bf16.mxu0 0
      %1260 = vmatmul.mubr.bf16.gmra.mrb[0].mxu0 %v1039
      %v1261 = vpop.f32.mrb[0].mxu0
      %v1262 = vadd.f32 0.0, %v1261
      %v1263 = vpop.f32.mrb[0].mxu0
      %v1264 = vpop.f32.mrb[0].mxu0
      %v1265 = vadd.f32 0.0, %v1264
      %v1266 = vpop.f32.mrb[0].mxu0
      %1267 = vmatprep.mubr.bf16.mxu0 0
      %1268 = vmatmul.mubr.bf16.gmra.mrb[0].mxu0 %v1040
      %v1269 = vpop.f32.mrb[0].mxu0
      %v1270 = vadd.f32 0.0, %v1269
      %v1271 = vpop.f32.mrb[0].mxu0
      %v1272 = vpop.f32.mrb[0].mxu0
      %v1273 = vadd.f32 0.0, %v1272
      %v1274 = vpop.f32.mrb[0].mxu0
      %1275 = vmatprep.mubr.bf16.mxu0 0
      %1276 = vmatmul.mubr.bf16.gmra.mrb[0].mxu0 %v1041
      %v1277 = vpop.f32.mrb[0].mxu0
      %v1278 = vadd.f32 0.0, %v1277
      %v1279 = vpop.f32.mrb[0].mxu0
      %v1280 = vpop.f32.mrb[0].mxu0
      %v1281 = vadd.f32 0.0, %v1280
      %v1282 = vpop.f32.mrb[0].mxu0
      %1283 = vdwg.mxu0
      %v1284 = vadd.f32 %v846, %v1142
      %v1285 = vadd.f32 %v849, %v1145
      %v1286 = vadd.f32 %v854, %v1150
      %v1287 = vadd.f32 %v857, %v1153
      %v1288 = vadd.f32 %v862, %v1158
      %v1289 = vadd.f32 %v865, %v1161
      %v1290 = vadd.f32 %v870, %v1166
      %v1291 = vadd.f32 %v873, %v1169
      %v1292 = vadd.f32 %v878, %v1174
      %v1293 = vadd.f32 %v881, %v1177
      %v1294 = vadd.f32 %v886, %v1182
      %v1295 = vadd.f32 %v889, %v1185
      %v1296 = vadd.f32 %v894, %v1190
      %v1297 = vadd.f32 %v897, %v1193
      %v1298 = vadd.f32 %v902, %v1198
      %v1299 = vadd.f32 %v905, %v1201
      %v1300 = vadd.f32 %v910, %v1206
      %v1301 = vadd.f32 %v913, %v1209
      %v1302 = vadd.f32 %v918, %v1214
      %v1303 = vadd.f32 %v921, %v1217
      %v1304 = vadd.f32 %v926, %v1222
      %v1305 = vadd.f32 %v929, %v1225
      %v1306 = vadd.f32 %v934, %v1230
      %v1307 = vadd.f32 %v937, %v1233
      %v1308 = vadd.f32 %v942, %v1238
      %v1309 = vadd.f32 %v945, %v1241
      %v1310 = vadd.f32 %v950, %v1246
      %v1311 = vadd.f32 %v953, %v1249
      %v1312 = vadd.f32 %v958, %v1254
      %v1313 = vadd.f32 %v961, %v1257
      %v1314 = vadd.f32 %v966, %v1262
      %v1315 = vadd.f32 %v969, %v1265
      %v1316 = vadd.f32 %v974, %v1270
      %v1317 = vadd.f32 %v977, %v1273
      %v1318 = vadd.f32 %v982, %v1278
      %v1319 = vadd.f32 %v985, %v1281
      %v1320 = vld [vmem:[%s5] sm:$0x1]
      %v1322 = vlaneseq
      %v1323 = vshrl.u32 %v1322, 7
      %v1324 = vsub.s32 0, %v1323
      %v1325 = vrot.slane %v1320, %v1324
      %v1327 = vadd.f32 %v1284, %v1325
      %v1328 = vadd.f32 %v1285, %v1325
      %v1329 = vadd.f32 %v1286, %v1325
      %v1330 = vadd.f32 %v1287, %v1325
      %v1331 = vadd.f32 %v1288, %v1325
      %v1332 = vadd.f32 %v1289, %v1325
      %v1333 = vadd.f32 %v1290, %v1325
      %v1334 = vadd.f32 %v1291, %v1325
      %v1335 = vadd.f32 %v1292, %v1325
      %v1336 = vadd.f32 %v1293, %v1325
      %v1337 = vadd.f32 %v1294, %v1325
      %v1338 = vadd.f32 %v1295, %v1325
      %v1339 = vadd.f32 %v1296, %v1325
      %v1340 = vadd.f32 %v1297, %v1325
      %v1341 = vadd.f32 %v1298, %v1325
      %v1342 = vadd.f32 %v1299, %v1325
      %v1343 = vadd.f32 %v1300, %v1325
      %v1344 = vadd.f32 %v1301, %v1325
      %v1345 = vadd.f32 %v1302, %v1325
      %v1346 = vadd.f32 %v1303, %v1325
      %v1347 = vadd.f32 %v1304, %v1325
      %v1348 = vadd.f32 %v1305, %v1325
      %v1349 = vadd.f32 %v1306, %v1325
      %v1350 = vadd.f32 %v1307, %v1325
      %v1351 = vadd.f32 %v1308, %v1325
      %v1352 = vadd.f32 %v1309, %v1325
      %v1353 = vadd.f32 %v1310, %v1325
      %v1354 = vadd.f32 %v1311, %v1325
      %v1355 = vadd.f32 %v1312, %v1325
      %v1356 = vadd.f32 %v1313, %v1325
      %v1357 = vadd.f32 %v1314, %v1325
      %v1358 = vadd.f32 %v1315, %v1325
      %v1359 = vadd.f32 %v1316, %v1325
      %v1360 = vadd.f32 %v1317, %v1325
      %v1361 = vadd.f32 %v1318, %v1325
      %v1362 = vadd.f32 %v1319, %v1325
      %v1363 = vmax.f32 %v1327, 0.0
      %v1364 = vmax.f32 %v1328, 0.0
      %v1365 = vmax.f32 %v1329, 0.0
      %v1366 = vmax.f32 %v1330, 0.0
      %v1367 = vmax.f32 %v1331, 0.0
      %v1368 = vmax.f32 %v1332, 0.0
      %v1369 = vmax.f32 %v1333, 0.0
      %v1370 = vmax.f32 %v1334, 0.0
      %v1371 = vmax.f32 %v1335, 0.0
      %v1372 = vmax.f32 %v1336, 0.0
      %v1373 = vmax.f32 %v1337, 0.0
      %v1374 = vmax.f32 %v1338, 0.0
      %v1375 = vmax.f32 %v1339, 0.0
      %v1376 = vmax.f32 %v1340, 0.0
      %v1377 = vmax.f32 %v1341, 0.0
      %v1378 = vmax.f32 %v1342, 0.0
      %v1379 = vmax.f32 %v1343, 0.0
      %v1380 = vmax.f32 %v1344, 0.0
      %v1381 = vmax.f32 %v1345, 0.0
      %v1382 = vmax.f32 %v1346, 0.0
      %v1383 = vmax.f32 %v1347, 0.0
      %v1384 = vmax.f32 %v1348, 0.0
      %v1385 = vmax.f32 %v1349, 0.0
      %v1386 = vmax.f32 %v1350, 0.0
      %v1387 = vmax.f32 %v1351, 0.0
      %v1388 = vmax.f32 %v1352, 0.0
      %v1389 = vmax.f32 %v1353, 0.0
      %v1390 = vmax.f32 %v1354, 0.0
      %v1391 = vmax.f32 %v1355, 0.0
      %v1392 = vmax.f32 %v1356, 0.0
      %v1393 = vmax.f32 %v1357, 0.0
      %v1394 = vmax.f32 %v1358, 0.0
      %v1395 = vmax.f32 %v1359, 0.0
      %v1396 = vmax.f32 %v1360, 0.0
      %v1397 = vmax.f32 %v1361, 0.0
      %v1398 = vmax.f32 %v1362, 0.0
      %1400 = vset.pattern.permute.xlu0 0
      %1401 = vperm.xlu0 %1400, %v361
      %v1402 = vpop.permute.xlu0 %1401
      %1405 = vset.pattern.permute.xlu0 0
      %1406 = vperm.xlu0 %1405, %v362
      %v1407 = vpop.permute.xlu0 %1406
      %1410 = vset.pattern.permute.xlu0 0
      %1411 = vperm.xlu0 %1410, %v363
      %v1412 = vpop.permute.xlu0 %1411
      %1415 = vset.pattern.permute.xlu0 0
      %1416 = vperm.xlu0 %1415, %v364
      %v1417 = vpop.permute.xlu0 %1416
      %1420 = vset.pattern.permute.xlu0 0
      %1421 = vperm.xlu0 %1420, %v365
      %v1422 = vpop.permute.xlu0 %1421
      %1425 = vset.pattern.permute.xlu0 0
      %1426 = vperm.xlu0 %1425, %v366
      %v1427 = vpop.permute.xlu0 %1426
      %1430 = vset.pattern.permute.xlu0 0
      %1431 = vperm.xlu0 %1430, %v367
      %v1432 = vpop.permute.xlu0 %1431
      %1435 = vset.pattern.permute.xlu0 0
      %1436 = vperm.xlu0 %1435, %v368
      %v1437 = vpop.permute.xlu0 %1436
      %1440 = vset.pattern.permute.xlu0 0
      %1441 = vperm.xlu0 %1440, %v369
      %v1442 = vpop.permute.xlu0 %1441
      %1445 = vset.pattern.permute.xlu0 0
      %1446 = vperm.xlu0 %1445, %v370
      %v1447 = vpop.permute.xlu0 %1446
      %1450 = vset.pattern.permute.xlu0 0
      %1451 = vperm.xlu0 %1450, %v371
      %v1452 = vpop.permute.xlu0 %1451
      %1455 = vset.pattern.permute.xlu0 0
      %1456 = vperm.xlu0 %1455, %v372
      %v1457 = vpop.permute.xlu0 %1456
      %1460 = vset.pattern.permute.xlu0 0
      %1461 = vperm.xlu0 %1460, %v373
      %v1462 = vpop.permute.xlu0 %1461
      %1465 = vset.pattern.permute.xlu0 0
      %1466 = vperm.xlu0 %1465, %v374
      %v1467 = vpop.permute.xlu0 %1466
      %1470 = vset.pattern.permute.xlu0 0
      %1471 = vperm.xlu0 %1470, %v375
      %v1472 = vpop.permute.xlu0 %1471
      %1475 = vset.pattern.permute.xlu0 0
      %1476 = vperm.xlu0 %1475, %v376
      %v1477 = vpop.permute.xlu0 %1476
      %1480 = vset.pattern.permute.xlu0 0
      %1481 = vperm.xlu0 %1480, %v377
      %v1482 = vpop.permute.xlu0 %1481
      %1485 = vset.pattern.permute.xlu0 0
      %1486 = vperm.xlu0 %1485, %v378
      %v1487 = vpop.permute.xlu0 %1486
      %1490 = vset.pattern.permute.xlu0 0
      %1491 = vperm.xlu0 %1490, %v379
      %v1492 = vpop.permute.xlu0 %1491
      %1495 = vset.pattern.permute.xlu0 0
      %1496 = vperm.xlu0 %1495, %v380
      %v1497 = vpop.permute.xlu0 %1496
      %1500 = vset.pattern.permute.xlu0 0
      %1501 = vperm.xlu0 %1500, %v381
      %v1502 = vpop.permute.xlu0 %1501
      %1505 = vset.pattern.permute.xlu0 0
      %1506 = vperm.xlu0 %1505, %v382
      %v1507 = vpop.permute.xlu0 %1506
      %1510 = vset.pattern.permute.xlu0 0
      %1511 = vperm.xlu0 %1510, %v383
      %v1512 = vpop.permute.xlu0 %1511
      %1515 = vset.pattern.permute.xlu0 0
      %1516 = vperm.xlu0 %1515, %v384
      %v1517 = vpop.permute.xlu0 %1516
      %1520 = vset.pattern.permute.xlu0 0
      %1521 = vperm.xlu0 %1520, %v385
      %v1522 = vpop.permute.xlu0 %1521
      %1525 = vset.pattern.permute.xlu0 0
      %1526 = vperm.xlu0 %1525, %v386
      %v1527 = vpop.permute.xlu0 %1526
      %1530 = vset.pattern.permute.xlu0 0
      %1531 = vperm.xlu0 %1530, %v387
      %v1532 = vpop.permute.xlu0 %1531
      %1535 = vset.pattern.permute.xlu0 0
      %1536 = vperm.xlu0 %1535, %v388
      %v1537 = vpop.permute.xlu0 %1536
      %1540 = vset.pattern.permute.xlu0 0
      %1541 = vperm.xlu0 %1540, %v389
      %v1542 = vpop.permute.xlu0 %1541
      %1545 = vset.pattern.permute.xlu0 0
      %1546 = vperm.xlu0 %1545, %v390
      %v1547 = vpop.permute.xlu0 %1546
      %1550 = vset.pattern.permute.xlu0 0
      %1551 = vperm.xlu0 %1550, %v391
      %v1552 = vpop.permute.xlu0 %1551
      %1555 = vset.pattern.permute.xlu0 0
      %1556 = vperm.xlu0 %1555, %v392
      %v1557 = vpop.permute.xlu0 %1556
      %1560 = vset.pattern.permute.xlu0 0
      %1561 = vperm.xlu0 %1560, %v393
      %v1562 = vpop.permute.xlu0 %1561
      %1565 = vset.pattern.permute.xlu0 0
      %1566 = vperm.xlu0 %1565, %v394
      %v1567 = vpop.permute.xlu0 %1566
      %1570 = vset.pattern.permute.xlu0 0
      %1571 = vperm.xlu0 %1570, %v395
      %v1572 = vpop.permute.xlu0 %1571
      %1575 = vset.pattern.permute.xlu0 0
      %1576 = vperm.xlu0 %1575, %v396
      %v1577 = vpop.permute.xlu0 %1576
      %v1579 = vmul.f32 %v1363, %v1402
      %v1580 = vmul.f32 %v1364, %v1407
      %v1581 = vmul.f32 %v1365, %v1412
      %v1582 = vmul.f32 %v1366, %v1417
      %v1583 = vmul.f32 %v1367, %v1422
      %v1584 = vmul.f32 %v1368, %v1427
      %v1585 = vmul.f32 %v1369, %v1432
      %v1586 = vmul.f32 %v1370, %v1437
      %v1587 = vmul.f32 %v1371, %v1442
      %v1588 = vmul.f32 %v1372, %v1447
      %v1589 = vmul.f32 %v1373, %v1452
      %v1590 = vmul.f32 %v1374, %v1457
      %v1591 = vmul.f32 %v1375, %v1462
      %v1592 = vmul.f32 %v1376, %v1467
      %v1593 = vmul.f32 %v1377, %v1472
      %v1594 = vmul.f32 %v1378, %v1477
      %v1595 = vmul.f32 %v1379, %v1482
      %v1596 = vmul.f32 %v1380, %v1487
      %v1597 = vmul.f32 %v1381, %v1492
      %v1598 = vmul.f32 %v1382, %v1497
      %v1599 = vmul.f32 %v1383, %v1502
      %v1600 = vmul.f32 %v1384, %v1507
      %v1601 = vmul.f32 %v1385, %v1512
      %v1602 = vmul.f32 %v1386, %v1517
      %v1603 = vmul.f32 %v1387, %v1522
      %v1604 = vmul.f32 %v1388, %v1527
      %v1605 = vmul.f32 %v1389, %v1532
      %v1606 = vmul.f32 %v1390, %v1537
      %v1607 = vmul.f32 %v1391, %v1542
      %v1608 = vmul.f32 %v1392, %v1547
      %v1609 = vmul.f32 %v1393, %v1552
      %v1610 = vmul.f32 %v1394, %v1557
      %v1611 = vmul.f32 %v1395, %v1562
      %v1612 = vmul.f32 %v1396, %v1567
      %v1613 = vmul.f32 %v1397, %v1572
      %v1614 = vmul.f32 %v1398, %v1577
      %1615 = vst [vmem:[#allocation2] sm:$0xff] 0.0
      %1616 = vst [vmem:[#allocation2 + $0x8] sm:$0xff] 0.0
      %1617 = vst [vmem:[#allocation2 + $0x10] sm:$0x3] 0.0
      %1618 = vst [vmem:[#allocation2 + $0x132] sm:$0xff] 0.0
      %1619 = vst [vmem:[#allocation2 + $0x13a] sm:$0xff] 0.0
      %1620 = vst [vmem:[#allocation2 + $0x142] sm:$0x3] 0.0
      %1621 = vst [vmem:[#allocation2 + $0x12] sm:$0xff] %v1579
      %1622 = vst [vmem:[#allocation2 + $0x1a] sm:$0xff] %v1580
      %1623 = vst [vmem:[#allocation2 + $0x22] sm:$0xff] %v1581
      %1624 = vst [vmem:[#allocation2 + $0x2a] sm:$0xff] %v1582
      %1625 = vst [vmem:[#allocation2 + $0x32] sm:$0xff] %v1583
      %1626 = vst [vmem:[#allocation2 + $0x3a] sm:$0xff] %v1584
      %1627 = vst [vmem:[#allocation2 + $0x42] sm:$0xff] %v1585
      %1628 = vst [vmem:[#allocation2 + $0x4a] sm:$0xff] %v1586
      %1629 = vst [vmem:[#allocation2 + $0x52] sm:$0xff] %v1587
      %1630 = vst [vmem:[#allocation2 + $0x5a] sm:$0xff] %v1588
      %1631 = vst [vmem:[#allocation2 + $0x62] sm:$0xff] %v1589
      %1632 = vst [vmem:[#allocation2 + $0x6a] sm:$0xff] %v1590
      %1633 = vst [vmem:[#allocation2 + $0x72] sm:$0xff] %v1591
      %1634 = vst [vmem:[#allocation2 + $0x7a] sm:$0xff] %v1592
      %1635 = vst [vmem:[#allocation2 + $0x82] sm:$0xff] %v1593
      %1636 = vst [vmem:[#allocation2 + $0x8a] sm:$0xff] %v1594
      %1637 = vst [vmem:[#allocation2 + $0x92] sm:$0xff] %v1595
      %1638 = vst [vmem:[#allocation2 + $0x9a] sm:$0xff] %v1596
      %1639 = vst [vmem:[#allocation2 + $0xa2] sm:$0xff] %v1597
      %1640 = vst [vmem:[#allocation2 + $0xaa] sm:$0xff] %v1598
      %1641 = vst [vmem:[#allocation2 + $0xb2] sm:$0xff] %v1599
      %1642 = vst [vmem:[#allocation2 + $0xba] sm:$0xff] %v1600
      %1643 = vst [vmem:[#allocation2 + $0xc2] sm:$0xff] %v1601
      %1644 = vst [vmem:[#allocation2 + $0xca] sm:$0xff] %v1602
      %1645 = vst [vmem:[#allocation2 + $0xd2] sm:$0xff] %v1603
      %1646 = vst [vmem:[#allocation2 + $0xda] sm:$0xff] %v1604
      %1647 = vst [vmem:[#allocation2 + $0xe2] sm:$0xff] %v1605
      %1648 = vst [vmem:[#allocation2 + $0xea] sm:$0xff] %v1606
      %1649 = vst [vmem:[#allocation2 + $0xf2] sm:$0xff] %v1607
      %1650 = vst [vmem:[#allocation2 + $0xfa] sm:$0xff] %v1608
      %1651 = vst [vmem:[#allocation2 + $0x102] sm:$0xff] %v1609
      %1652 = vst [vmem:[#allocation2 + $0x10a] sm:$0xff] %v1610
      %1653 = vst [vmem:[#allocation2 + $0x112] sm:$0xff] %v1611
      %1654 = vst [vmem:[#allocation2 + $0x11a] sm:$0xff] %v1612
      %1655 = vst [vmem:[#allocation2 + $0x122] sm:$0xff] %v1613
      %1656 = vst [vmem:[#allocation2 + $0x12a] sm:$0xff] %v1614
      %v1657 = vld [vmem:[#allocation2 + $0x11] sm:$0xff]
      %v1658 = vld [vmem:[#allocation2 + $0x19] sm:$0xff]
      %v1659 = vld [vmem:[#allocation2 + $0x21] sm:$0xff]
      %v1660 = vld [vmem:[#allocation2 + $0x29] sm:$0xff]
      %v1661 = vld [vmem:[#allocation2 + $0x31] sm:$0xff]
      %v1662 = vld [vmem:[#allocation2 + $0x39] sm:$0xff]
      %v1663 = vld [vmem:[#allocation2 + $0x41] sm:$0xff]
      %v1664 = vld [vmem:[#allocation2 + $0x49] sm:$0xff]
      %v1665 = vld [vmem:[#allocation2 + $0x51] sm:$0xff]
      %v1666 = vld [vmem:[#allocation2 + $0x59] sm:$0xff]
      %v1667 = vld [vmem:[#allocation2 + $0x61] sm:$0xff]
      %v1668 = vld [vmem:[#allocation2 + $0x69] sm:$0xff]
      %v1669 = vld [vmem:[#allocation2 + $0x71] sm:$0xff]
      %v1670 = vld [vmem:[#allocation2 + $0x79] sm:$0xff]
      %v1671 = vld [vmem:[#allocation2 + $0x81] sm:$0xff]
      %v1672 = vld [vmem:[#allocation2 + $0x89] sm:$0xff]
      %v1673 = vld [vmem:[#allocation2 + $0x91] sm:$0xff]
      %v1674 = vld [vmem:[#allocation2 + $0x99] sm:$0xff]
      %v1675 = vld [vmem:[#allocation2 + $0xa1] sm:$0xff]
      %v1676 = vld [vmem:[#allocation2 + $0xa9] sm:$0xff]
      %v1677 = vld [vmem:[#allocation2 + $0xb1] sm:$0xff]
      %v1678 = vld [vmem:[#allocation2 + $0xb9] sm:$0xff]
      %v1679 = vld [vmem:[#allocation2 + $0xc1] sm:$0xff]
      %v1680 = vld [vmem:[#allocation2 + $0xc9] sm:$0xff]
      %v1681 = vld [vmem:[#allocation2 + $0xd1] sm:$0xff]
      %v1682 = vld [vmem:[#allocation2 + $0xd9] sm:$0xff]
      %v1683 = vld [vmem:[#allocation2 + $0xe1] sm:$0xff]
      %v1684 = vld [vmem:[#allocation2 + $0xe9] sm:$0xff]
      %v1685 = vld [vmem:[#allocation2 + $0xf1] sm:$0xff]
      %v1686 = vld [vmem:[#allocation2 + $0xf9] sm:$0xff]
      %v1687 = vld [vmem:[#allocation2 + $0x101] sm:$0xff]
      %v1688 = vld [vmem:[#allocation2 + $0x109] sm:$0xff]
      %v1689 = vld [vmem:[#allocation2 + $0x111] sm:$0xff]
      %v1690 = vld [vmem:[#allocation2 + $0x119] sm:$0xff]
      %v1691 = vld [vmem:[#allocation2 + $0x121] sm:$0xff]
      %v1692 = vld [vmem:[#allocation2 + $0x129] sm:$0xff]
      %v1693 = vpack.c.bf16 %v1658, %v1657
      %v1694 = vpack.c.bf16 %v1660, %v1659
      %v1695 = vpack.c.bf16 %v1662, %v1661
      %v1696 = vpack.c.bf16 %v1664, %v1663
      %v1697 = vpack.c.bf16 %v1666, %v1665
      %v1698 = vpack.c.bf16 %v1668, %v1667
      %v1699 = vpack.c.bf16 %v1670, %v1669
      %v1700 = vpack.c.bf16 %v1672, %v1671
      %v1701 = vpack.c.bf16 %v1674, %v1673
      %v1702 = vpack.c.bf16 %v1676, %v1675
      %v1703 = vpack.c.bf16 %v1678, %v1677
      %v1704 = vpack.c.bf16 %v1680, %v1679
      %v1705 = vpack.c.bf16 %v1682, %v1681
      %v1706 = vpack.c.bf16 %v1684, %v1683
      %v1707 = vpack.c.bf16 %v1686, %v1685
      %v1708 = vpack.c.bf16 %v1688, %v1687
      %v1709 = vpack.c.bf16 %v1690, %v1689
      %v1710 = vpack.c.bf16 %v1692, %v1691
      %v1711 = vld [vmem:[%s2] sm:$0xf]
      %v1712 = vld [vmem:[%s2 + $0x4] sm:$0xf]
      %v1713 = vld [vmem:[%s2 + $0x8] sm:$0xf]
      %v1714 = vld [vmem:[%s2 + $0xc] sm:$0xf]
      %v1715 = vld [vmem:[%s2 + $0x10] sm:$0xf]
      %v1716 = vld [vmem:[%s2 + $0x14] sm:$0xf]
      %v1717 = vld [vmem:[%s2 + $0x18] sm:$0xf]
      %v1718 = vld [vmem:[%s2 + $0x1c] sm:$0xf]
      %v1719 = vld [vmem:[%s2 + $0x20] sm:$0xf]
      %v1720 = vld [vmem:[%s2 + $0x24] sm:$0xf]
      %v1721 = vld [vmem:[%s2 + $0x28] sm:$0xf]
      %v1722 = vld [vmem:[%s2 + $0x2c] sm:$0xf]
      %v1723 = vld [vmem:[%s2 + $0x30] sm:$0xf]
      %v1724 = vld [vmem:[%s2 + $0x34] sm:$0xf]
      %v1725 = vld [vmem:[%s2 + $0x38] sm:$0xf]
      %v1726 = vld [vmem:[%s2 + $0x3c] sm:$0xf]
      %v1727 = vld [vmem:[#allocation2 + $0x12] sm:$0xff]
      %v1728 = vld [vmem:[#allocation2 + $0x1a] sm:$0xff]
      %v1729 = vld [vmem:[#allocation2 + $0x22] sm:$0xff]
      %v1730 = vld [vmem:[#allocation2 + $0x2a] sm:$0xff]
      %v1731 = vld [vmem:[#allocation2 + $0x32] sm:$0xff]
      %v1732 = vld [vmem:[#allocation2 + $0x3a] sm:$0xff]
      %v1733 = vld [vmem:[#allocation2 + $0x42] sm:$0xff]
      %v1734 = vld [vmem:[#allocation2 + $0x4a] sm:$0xff]
      %v1735 = vld [vmem:[#allocation2 + $0x52] sm:$0xff]
      %v1736 = vld [vmem:[#allocation2 + $0x5a] sm:$0xff]
      %v1737 = vld [vmem:[#allocation2 + $0x62] sm:$0xff]
      %v1738 = vld [vmem:[#allocation2 + $0x6a] sm:$0xff]
      %v1739 = vld [vmem:[#allocation2 + $0x72] sm:$0xff]
      %v1740 = vld [vmem:[#allocation2 + $0x7a] sm:$0xff]
      %v1741 = vld [vmem:[#allocation2 + $0x82] sm:$0xff]
      %v1742 = vld [vmem:[#allocation2 + $0x8a] sm:$0xff]
      %v1743 = vld [vmem:[#allocation2 + $0x92] sm:$0xff]
      %v1744 = vld [vmem:[#allocation2 + $0x9a] sm:$0xff]
      %v1745 = vld [vmem:[#allocation2 + $0xa2] sm:$0xff]
      %v1746 = vld [vmem:[#allocation2 + $0xaa] sm:$0xff]
      %v1747 = vld [vmem:[#allocation2 + $0xb2] sm:$0xff]
      %v1748 = vld [vmem:[#allocation2 + $0xba] sm:$0xff]
      %v1749 = vld [vmem:[#allocation2 + $0xc2] sm:$0xff]
      %v1750 = vld [vmem:[#allocation2 + $0xca] sm:$0xff]
      %v1751 = vld [vmem:[#allocation2 + $0xd2] sm:$0xff]
      %v1752 = vld [vmem:[#allocation2 + $0xda] sm:$0xff]
      %v1753 = vld [vmem:[#allocation2 + $0xe2] sm:$0xff]
      %v1754 = vld [vmem:[#allocation2 + $0xea] sm:$0xff]
      %v1755 = vld [vmem:[#allocation2 + $0xf2] sm:$0xff]
      %v1756 = vld [vmem:[#allocation2 + $0xfa] sm:$0xff]
      %v1757 = vld [vmem:[#allocation2 + $0x102] sm:$0xff]
      %v1758 = vld [vmem:[#allocation2 + $0x10a] sm:$0xff]
      %v1759 = vld [vmem:[#allocation2 + $0x112] sm:$0xff]
      %v1760 = vld [vmem:[#allocation2 + $0x11a] sm:$0xff]
      %v1761 = vld [vmem:[#allocation2 + $0x122] sm:$0xff]
      %v1762 = vld [vmem:[#allocation2 + $0x12a] sm:$0xff]
      %v1763 = vpack.c.bf16 %v1728, %v1727
      %v1764 = vpack.c.bf16 %v1730, %v1729
      %v1765 = vpack.c.bf16 %v1732, %v1731
      %v1766 = vpack.c.bf16 %v1734, %v1733
      %v1767 = vpack.c.bf16 %v1736, %v1735
      %v1768 = vpack.c.bf16 %v1738, %v1737
      %v1769 = vpack.c.bf16 %v1740, %v1739
      %v1770 = vpack.c.bf16 %v1742, %v1741
      %v1771 = vpack.c.bf16 %v1744, %v1743
      %v1772 = vpack.c.bf16 %v1746, %v1745
      %v1773 = vpack.c.bf16 %v1748, %v1747
      %v1774 = vpack.c.bf16 %v1750, %v1749
      %v1775 = vpack.c.bf16 %v1752, %v1751
      %v1776 = vpack.c.bf16 %v1754, %v1753
      %v1777 = vpack.c.bf16 %v1756, %v1755
      %v1778 = vpack.c.bf16 %v1758, %v1757
      %v1779 = vpack.c.bf16 %v1760, %v1759
      %v1780 = vpack.c.bf16 %v1762, %v1761
      %s1781 = scalar_lea.vmem %s2, 64
      %v1782 = vld [vmem:[%s1781] sm:$0xf]
      %v1783 = vld [vmem:[%s1781 + $0x4] sm:$0xf]
      %v1784 = vld [vmem:[%s1781 + $0x8] sm:$0xf]
      %v1785 = vld [vmem:[%s1781 + $0xc] sm:$0xf]
      %v1786 = vld [vmem:[%s1781 + $0x10] sm:$0xf]
      %v1787 = vld [vmem:[%s1781 + $0x14] sm:$0xf]
      %v1788 = vld [vmem:[%s1781 + $0x18] sm:$0xf]
      %v1789 = vld [vmem:[%s1781 + $0x1c] sm:$0xf]
      %v1790 = vld [vmem:[%s1781 + $0x20] sm:$0xf]
      %v1791 = vld [vmem:[%s1781 + $0x24] sm:$0xf]
      %v1792 = vld [vmem:[%s1781 + $0x28] sm:$0xf]
      %v1793 = vld [vmem:[%s1781 + $0x2c] sm:$0xf]
      %v1794 = vld [vmem:[%s1781 + $0x30] sm:$0xf]
      %v1795 = vld [vmem:[%s1781 + $0x34] sm:$0xf]
      %v1796 = vld [vmem:[%s1781 + $0x38] sm:$0xf]
      %v1797 = vld [vmem:[%s1781 + $0x3c] sm:$0xf]
      %v1814 = vunpack.c.l.b16 %v1782
      %v1815 = vunpack.c.l.b16 %v1783
      %v1816 = vunpack.c.l.b16 %v1784
      %v1817 = vunpack.c.l.b16 %v1785
      %v1818 = vunpack.c.l.b16 %v1786
      %v1819 = vunpack.c.l.b16 %v1787
      %v1820 = vunpack.c.l.b16 %v1788
      %v1821 = vunpack.c.l.b16 %v1789
      %v1822 = vunpack.c.l.b16 %v1790
      %v1823 = vunpack.c.l.b16 %v1791
      %v1824 = vunpack.c.l.b16 %v1792
      %v1825 = vunpack.c.l.b16 %v1793
      %v1826 = vunpack.c.l.b16 %v1794
      %v1827 = vunpack.c.l.b16 %v1795
      %v1828 = vunpack.c.l.b16 %v1796
      %v1829 = vunpack.c.l.b16 %v1797
      %v1830 = vpack.c.b16 %v1815, %v1814
      %v1831 = vpack.c.b16 %v1817, %v1816
      %v1832 = vpack.c.b16 %v1819, %v1818
      %v1833 = vpack.c.b16 %v1821, %v1820
      %v1834 = vpack.c.b16 %v1823, %v1822
      %v1835 = vpack.c.b16 %v1825, %v1824
      %v1836 = vpack.c.b16 %v1827, %v1826
      %v1837 = vpack.c.b16 %v1829, %v1828
      %1846 = vmatprep.subr.bf16.mxu0 0
      %1847 = vmatpush1.bf16.msra.mxu0 %v1830
      %1848 = vmatprep.subr.bf16.mxu0 0
      %1849 = vmatpush1.bf16.msra.mxu0 %v1831
      %1850 = vmatprep.subr.bf16.mxu0 0
      %1851 = vmatpush1.bf16.msra.mxu0 %v1832
      %1852 = vmatprep.subr.bf16.mxu0 0
      %1853 = vmatpush1.bf16.msra.mxu0 %v1833
      %1854 = vmatprep.subr.bf16.mxu0 0
      %1855 = vmatpush1.bf16.msra.mxu0 %v1834
      %1856 = vmatprep.subr.bf16.mxu0 0
      %1857 = vmatpush1.bf16.msra.mxu0 %v1835
      %1858 = vmatprep.subr.bf16.mxu0 0
      %1859 = vmatpush1.bf16.msra.mxu0 %v1836
      %1860 = vmatprep.subr.bf16.mxu0 0
      %1861 = vmatpush1.bf16.msra.mxu0 %v1837
      %1862 = vmatprep.subr.bf16.mxu0 0
      %1863 = vmatpush1.bf16.msra.mxu0 0
      %1864 = vmatprep.subr.bf16.mxu0 0
      %1865 = vmatpush1.bf16.msra.mxu0 0
      %1866 = vmatprep.subr.bf16.mxu0 0
      %1867 = vmatpush1.bf16.msra.mxu0 0
      %1868 = vmatprep.subr.bf16.mxu0 0
      %1869 = vmatpush1.bf16.msra.mxu0 0
      %1870 = vmatprep.subr.bf16.mxu0 0
      %1871 = vmatpush1.bf16.msra.mxu0 0
      %1872 = vmatprep.subr.bf16.mxu0 0
      %1873 = vmatpush1.bf16.msra.mxu0 0
      %1874 = vmatprep.subr.bf16.mxu0 0
      %1875 = vmatpush1.bf16.msra.mxu0 0
      %1876 = vmatprep.subr.bf16.mxu0 0
      %1877 = vmatpush1.bf16.msra.mxu0 0
      %1878 = vmatprep.mubr.bf16.mxu0 0
      %1879 = vmatmul.mubr.bf16.gmra.mrb[0].mxu0 %v1763
      %v1880 = vpop.f32.mrb[0].mxu0
      %v1881 = vadd.f32 0.0, %v1880
      %v1882 = vpop.f32.mrb[0].mxu0
      %v1883 = vpop.f32.mrb[0].mxu0
      %v1884 = vadd.f32 0.0, %v1883
      %v1885 = vpop.f32.mrb[0].mxu0
      %1886 = vmatprep.mubr.bf16.mxu0 0
      %1887 = vmatmul.mubr.bf16.gmra.mrb[0].mxu0 %v1764
      %v1888 = vpop.f32.mrb[0].mxu0
      %v1889 = vadd.f32 0.0, %v1888
      %v1890 = vpop.f32.mrb[0].mxu0
      %v1891 = vpop.f32.mrb[0].mxu0
      %v1892 = vadd.f32 0.0, %v1891
      %v1893 = vpop.f32.mrb[0].mxu0
      %1894 = vmatprep.mubr.bf16.mxu0 0
      %1895 = vmatmul.mubr.bf16.gmra.mrb[0].mxu0 %v1765
      %v1896 = vpop.f32.mrb[0].mxu0
      %v1897 = vadd.f32 0.0, %v1896
      %v1898 = vpop.f32.mrb[0].mxu0
      %v1899 = vpop.f32.mrb[0].mxu0
      %v1900 = vadd.f32 0.0, %v1899
      %v1901 = vpop.f32.mrb[0].mxu0
      %1902 = vmatprep.mubr.bf16.mxu0 0
      %1903 = vmatmul.mubr.bf16.gmra.mrb[0].mxu0 %v1766
      %v1904 = vpop.f32.mrb[0].mxu0
      %v1905 = vadd.f32 0.0, %v1904
      %v1906 = vpop.f32.mrb[0].mxu0
      %v1907 = vpop.f32.mrb[0].mxu0
      %v1908 = vadd.f32 0.0, %v1907
      %v1909 = vpop.f32.mrb[0].mxu0
      %1910 = vmatprep.mubr.bf16.mxu0 0
      %1911 = vmatmul.mubr.bf16.gmra.mrb[0].mxu0 %v1767
      %v1912 = vpop.f32.mrb[0].mxu0
      %v1913 = vadd.f32 0.0, %v1912
      %v1914 = vpop.f32.mrb[0].mxu0
      %v1915 = vpop.f32.mrb[0].mxu0
      %v1916 = vadd.f32 0.0, %v1915
      %v1917 = vpop.f32.mrb[0].mxu0
      %1918 = vmatprep.mubr.bf16.mxu0 0
      %1919 = vmatmul.mubr.bf16.gmra.mrb[0].mxu0 %v1768
      %v1920 = vpop.f32.mrb[0].mxu0
      %v1921 = vadd.f32 0.0, %v1920
      %v1922 = vpop.f32.mrb[0].mxu0
      %v1923 = vpop.f32.mrb[0].mxu0
      %v1924 = vadd.f32 0.0, %v1923
      %v1925 = vpop.f32.mrb[0].mxu0
      %1926 = vmatprep.mubr.bf16.mxu0 0
      %1927 = vmatmul.mubr.bf16.gmra.mrb[0].mxu0 %v1769
      %v1928 = vpop.f32.mrb[0].mxu0
      %v1929 = vadd.f32 0.0, %v1928
      %v1930 = vpop.f32.mrb[0].mxu0
      %v1931 = vpop.f32.mrb[0].mxu0
      %v1932 = vadd.f32 0.0, %v1931
      %v1933 = vpop.f32.mrb[0].mxu0
      %1934 = vmatprep.mubr.bf16.mxu0 0
      %1935 = vmatmul.mubr.bf16.gmra.mrb[0].mxu0 %v1770
      %v1936 = vpop.f32.mrb[0].mxu0
      %v1937 = vadd.f32 0.0, %v1936
      %v1938 = vpop.f32.mrb[0].mxu0
      %v1939 = vpop.f32.mrb[0].mxu0
      %v1940 = vadd.f32 0.0, %v1939
      %v1941 = vpop.f32.mrb[0].mxu0
      %1942 = vmatprep.mubr.bf16.mxu0 0
      %1943 = vmatmul.mubr.bf16.gmra.mrb[0].mxu0 %v1771
      %v1944 = vpop.f32.mrb[0].mxu0
      %v1945 = vadd.f32 0.0, %v1944
      %v1946 = vpop.f32.mrb[0].mxu0
      %v1947 = vpop.f32.mrb[0].mxu0
      %v1948 = vadd.f32 0.0, %v1947
      %v1949 = vpop.f32.mrb[0].mxu0
      %1950 = vmatprep.mubr.bf16.mxu0 0
      %1951 = vmatmul.mubr.bf16.gmra.mrb[0].mxu0 %v1772
      %v1952 = vpop.f32.mrb[0].mxu0
      %v1953 = vadd.f32 0.0, %v1952
      %v1954 = vpop.f32.mrb[0].mxu0
      %v1955 = vpop.f32.mrb[0].mxu0
      %v1956 = vadd.f32 0.0, %v1955
      %v1957 = vpop.f32.mrb[0].mxu0
      %1958 = vmatprep.mubr.bf16.mxu0 0
      %1959 = vmatmul.mubr.bf16.gmra.mrb[0].mxu0 %v1773
      %v1960 = vpop.f32.mrb[0].mxu0
      %v1961 = vadd.f32 0.0, %v1960
      %v1962 = vpop.f32.mrb[0].mxu0
      %v1963 = vpop.f32.mrb[0].mxu0
      %v1964 = vadd.f32 0.0, %v1963
      %v1965 = vpop.f32.mrb[0].mxu0
      %1966 = vmatprep.mubr.bf16.mxu0 0
      %1967 = vmatmul.mubr.bf16.gmra.mrb[0].mxu0 %v1774
      %v1968 = vpop.f32.mrb[0].mxu0
      %v1969 = vadd.f32 0.0, %v1968
      %v1970 = vpop.f32.mrb[0].mxu0
      %v1971 = vpop.f32.mrb[0].mxu0
      %v1972 = vadd.f32 0.0, %v1971
      %v1973 = vpop.f32.mrb[0].mxu0
      %1974 = vmatprep.mubr.bf16.mxu0 0
      %1975 = vmatmul.mubr.bf16.gmra.mrb[0].mxu0 %v1775
      %v1976 = vpop.f32.mrb[0].mxu0
      %v1977 = vadd.f32 0.0, %v1976
      %v1978 = vpop.f32.mrb[0].mxu0
      %v1979 = vpop.f32.mrb[0].mxu0
      %v1980 = vadd.f32 0.0, %v1979
      %v1981 = vpop.f32.mrb[0].mxu0
      %1982 = vmatprep.mubr.bf16.mxu0 0
      %1983 = vmatmul.mubr.bf16.gmra.mrb[0].mxu0 %v1776
      %v1984 = vpop.f32.mrb[0].mxu0
      %v1985 = vadd.f32 0.0, %v1984
      %v1986 = vpop.f32.mrb[0].mxu0
      %v1987 = vpop.f32.mrb[0].mxu0
      %v1988 = vadd.f32 0.0, %v1987
      %v1989 = vpop.f32.mrb[0].mxu0
      %1990 = vmatprep.mubr.bf16.mxu0 0
      %1991 = vmatmul.mubr.bf16.gmra.mrb[0].mxu0 %v1777
      %v1992 = vpop.f32.mrb[0].mxu0
      %v1993 = vadd.f32 0.0, %v1992
      %v1994 = vpop.f32.mrb[0].mxu0
      %v1995 = vpop.f32.mrb[0].mxu0
      %v1996 = vadd.f32 0.0, %v1995
      %v1997 = vpop.f32.mrb[0].mxu0
      %1998 = vmatprep.mubr.bf16.mxu0 0
      %1999 = vmatmul.mubr.bf16.gmra.mrb[0].mxu0 %v1778
      %v2000 = vpop.f32.mrb[0].mxu0
      %v2001 = vadd.f32 0.0, %v2000
      %v2002 = vpop.f32.mrb[0].mxu0
      %v2003 = vpop.f32.mrb[0].mxu0
      %v2004 = vadd.f32 0.0, %v2003
      %v2005 = vpop.f32.mrb[0].mxu0
      %2006 = vmatprep.mubr.bf16.mxu0 0
      %2007 = vmatmul.mubr.bf16.gmra.mrb[0].mxu0 %v1779
      %v2008 = vpop.f32.mrb[0].mxu0
      %v2009 = vadd.f32 0.0, %v2008
      %v2010 = vpop.f32.mrb[0].mxu0
      %v2011 = vpop.f32.mrb[0].mxu0
      %v2012 = vadd.f32 0.0, %v2011
      %v2013 = vpop.f32.mrb[0].mxu0
      %2014 = vmatprep.mubr.bf16.mxu0 0
      %2015 = vmatmul.mubr.bf16.gmra.mrb[0].mxu0 %v1780
      %v2016 = vpop.f32.mrb[0].mxu0
      %v2017 = vadd.f32 0.0, %v2016
      %v2018 = vpop.f32.mrb[0].mxu0
      %v2019 = vpop.f32.mrb[0].mxu0
      %v2020 = vadd.f32 0.0, %v2019
      %v2021 = vpop.f32.mrb[0].mxu0
      %2022 = vdwg.mxu0
      %v2039 = vunpack.c.l.b16 %v1711
      %v2040 = vunpack.c.l.b16 %v1712
      %v2041 = vunpack.c.l.b16 %v1713
      %v2042 = vunpack.c.l.b16 %v1714
      %v2043 = vunpack.c.l.b16 %v1715
      %v2044 = vunpack.c.l.b16 %v1716
      %v2045 = vunpack.c.l.b16 %v1717
      %v2046 = vunpack.c.l.b16 %v1718
      %v2047 = vunpack.c.l.b16 %v1719
      %v2048 = vunpack.c.l.b16 %v1720
      %v2049 = vunpack.c.l.b16 %v1721
      %v2050 = vunpack.c.l.b16 %v1722
      %v2051 = vunpack.c.l.b16 %v1723
      %v2052 = vunpack.c.l.b16 %v1724
      %v2053 = vunpack.c.l.b16 %v1725
      %v2054 = vunpack.c.l.b16 %v1726
      %v2055 = vpack.c.b16 %v2040, %v2039
      %v2056 = vpack.c.b16 %v2042, %v2041
      %v2057 = vpack.c.b16 %v2044, %v2043
      %v2058 = vpack.c.b16 %v2046, %v2045
      %v2059 = vpack.c.b16 %v2048, %v2047
      %v2060 = vpack.c.b16 %v2050, %v2049
      %v2061 = vpack.c.b16 %v2052, %v2051
      %v2062 = vpack.c.b16 %v2054, %v2053
      %2071 = vmatprep.subr.bf16.mxu0 0
      %2072 = vmatpush1.bf16.msra.mxu0 %v2055
      %2073 = vmatprep.subr.bf16.mxu0 0
      %2074 = vmatpush1.bf16.msra.mxu0 %v2056
      %2075 = vmatprep.subr.bf16.mxu0 0
      %2076 = vmatpush1.bf16.msra.mxu0 %v2057
      %2077 = vmatprep.subr.bf16.mxu0 0
      %2078 = vmatpush1.bf16.msra.mxu0 %v2058
      %2079 = vmatprep.subr.bf16.mxu0 0
      %2080 = vmatpush1.bf16.msra.mxu0 %v2059
      %2081 = vmatprep.subr.bf16.mxu0 0
      %2082 = vmatpush1.bf16.msra.mxu0 %v2060
      %2083 = vmatprep.subr.bf16.mxu0 0
      %2084 = vmatpush1.bf16.msra.mxu0 %v2061
      %2085 = vmatprep.subr.bf16.mxu0 0
      %2086 = vmatpush1.bf16.msra.mxu0 %v2062
      %2087 = vmatprep.subr.bf16.mxu0 0
      %2088 = vmatpush1.bf16.msra.mxu0 0
      %2089 = vmatprep.subr.bf16.mxu0 0
      %2090 = vmatpush1.bf16.msra.mxu0 0
      %2091 = vmatprep.subr.bf16.mxu0 0
      %2092 = vmatpush1.bf16.msra.mxu0 0
      %2093 = vmatprep.subr.bf16.mxu0 0
      %2094 = vmatpush1.bf16.msra.mxu0 0
      %2095 = vmatprep.subr.bf16.mxu0 0
      %2096 = vmatpush1.bf16.msra.mxu0 0
      %2097 = vmatprep.subr.bf16.mxu0 0
      %2098 = vmatpush1.bf16.msra.mxu0 0
      %2099 = vmatprep.subr.bf16.mxu0 0
      %2100 = vmatpush1.bf16.msra.mxu0 0
      %2101 = vmatprep.subr.bf16.mxu0 0
      %2102 = vmatpush1.bf16.msra.mxu0 0
      %2103 = vmatprep.mubr.bf16.mxu0 0
      %2104 = vmatmul.mubr.bf16.gmra.mrb[0].mxu0 %v1693
      %v2105 = vpop.f32.mrb[0].mxu0
      %v2106 = vadd.f32 %v1881, %v2105
      %v2107 = vpop.f32.mrb[0].mxu0
      %v2108 = vpop.f32.mrb[0].mxu0
      %v2109 = vadd.f32 %v1884, %v2108
      %v2110 = vpop.f32.mrb[0].mxu0
      %2111 = vmatprep.mubr.bf16.mxu0 0
      %2112 = vmatmul.mubr.bf16.gmra.mrb[0].mxu0 %v1694
      %v2113 = vpop.f32.mrb[0].mxu0
      %v2114 = vadd.f32 %v1889, %v2113
      %v2115 = vpop.f32.mrb[0].mxu0
      %v2116 = vpop.f32.mrb[0].mxu0
      %v2117 = vadd.f32 %v1892, %v2116
      %v2118 = vpop.f32.mrb[0].mxu0
      %2119 = vmatprep.mubr.bf16.mxu0 0
      %2120 = vmatmul.mubr.bf16.gmra.mrb[0].mxu0 %v1695
      %v2121 = vpop.f32.mrb[0].mxu0
      %v2122 = vadd.f32 %v1897, %v2121
      %v2123 = vpop.f32.mrb[0].mxu0
      %v2124 = vpop.f32.mrb[0].mxu0
      %v2125 = vadd.f32 %v1900, %v2124
      %v2126 = vpop.f32.mrb[0].mxu0
      %2127 = vmatprep.mubr.bf16.mxu0 0
      %2128 = vmatmul.mubr.bf16.gmra.mrb[0].mxu0 %v1696
      %v2129 = vpop.f32.mrb[0].mxu0
      %v2130 = vadd.f32 %v1905, %v2129
      %v2131 = vpop.f32.mrb[0].mxu0
      %v2132 = vpop.f32.mrb[0].mxu0
      %v2133 = vadd.f32 %v1908, %v2132
      %v2134 = vpop.f32.mrb[0].mxu0
      %2135 = vmatprep.mubr.bf16.mxu0 0
      %2136 = vmatmul.mubr.bf16.gmra.mrb[0].mxu0 %v1697
      %v2137 = vpop.f32.mrb[0].mxu0
      %v2138 = vadd.f32 %v1913, %v2137
      %v2139 = vpop.f32.mrb[0].mxu0
      %v2140 = vpop.f32.mrb[0].mxu0
      %v2141 = vadd.f32 %v1916, %v2140
      %v2142 = vpop.f32.mrb[0].mxu0
      %2143 = vmatprep.mubr.bf16.mxu0 0
      %2144 = vmatmul.mubr.bf16.gmra.mrb[0].mxu0 %v1698
      %v2145 = vpop.f32.mrb[0].mxu0
      %v2146 = vadd.f32 %v1921, %v2145
      %v2147 = vpop.f32.mrb[0].mxu0
      %v2148 = vpop.f32.mrb[0].mxu0
      %v2149 = vadd.f32 %v1924, %v2148
      %v2150 = vpop.f32.mrb[0].mxu0
      %2151 = vmatprep.mubr.bf16.mxu0 0
      %2152 = vmatmul.mubr.bf16.gmra.mrb[0].mxu0 %v1699
      %v2153 = vpop.f32.mrb[0].mxu0
      %v2154 = vadd.f32 %v1929, %v2153
      %v2155 = vpop.f32.mrb[0].mxu0
      %v2156 = vpop.f32.mrb[0].mxu0
      %v2157 = vadd.f32 %v1932, %v2156
      %v2158 = vpop.f32.mrb[0].mxu0
      %2159 = vmatprep.mubr.bf16.mxu0 0
      %2160 = vmatmul.mubr.bf16.gmra.mrb[0].mxu0 %v1700
      %v2161 = vpop.f32.mrb[0].mxu0
      %v2162 = vadd.f32 %v1937, %v2161
      %v2163 = vpop.f32.mrb[0].mxu0
      %v2164 = vpop.f32.mrb[0].mxu0
      %v2165 = vadd.f32 %v1940, %v2164
      %v2166 = vpop.f32.mrb[0].mxu0
      %2167 = vmatprep.mubr.bf16.mxu0 0
      %2168 = vmatmul.mubr.bf16.gmra.mrb[0].mxu0 %v1701
      %v2169 = vpop.f32.mrb[0].mxu0
      %v2170 = vadd.f32 %v1945, %v2169
      %v2171 = vpop.f32.mrb[0].mxu0
      %v2172 = vpop.f32.mrb[0].mxu0
      %v2173 = vadd.f32 %v1948, %v2172
      %v2174 = vpop.f32.mrb[0].mxu0
      %2175 = vmatprep.mubr.bf16.mxu0 0
      %2176 = vmatmul.mubr.bf16.gmra.mrb[0].mxu0 %v1702
      %v2177 = vpop.f32.mrb[0].mxu0
      %v2178 = vadd.f32 %v1953, %v2177
      %v2179 = vpop.f32.mrb[0].mxu0
      %v2180 = vpop.f32.mrb[0].mxu0
      %v2181 = vadd.f32 %v1956, %v2180
      %v2182 = vpop.f32.mrb[0].mxu0
      %2183 = vmatprep.mubr.bf16.mxu0 0
      %2184 = vmatmul.mubr.bf16.gmra.mrb[0].mxu0 %v1703
      %v2185 = vpop.f32.mrb[0].mxu0
      %v2186 = vadd.f32 %v1961, %v2185
      %v2187 = vpop.f32.mrb[0].mxu0
      %v2188 = vpop.f32.mrb[0].mxu0
      %v2189 = vadd.f32 %v1964, %v2188
      %v2190 = vpop.f32.mrb[0].mxu0
      %2191 = vmatprep.mubr.bf16.mxu0 0
      %2192 = vmatmul.mubr.bf16.gmra.mrb[0].mxu0 %v1704
      %v2193 = vpop.f32.mrb[0].mxu0
      %v2194 = vadd.f32 %v1969, %v2193
      %v2195 = vpop.f32.mrb[0].mxu0
      %v2196 = vpop.f32.mrb[0].mxu0
      %v2197 = vadd.f32 %v1972, %v2196
      %v2198 = vpop.f32.mrb[0].mxu0
      %2199 = vmatprep.mubr.bf16.mxu0 0
      %2200 = vmatmul.mubr.bf16.gmra.mrb[0].mxu0 %v1705
      %v2201 = vpop.f32.mrb[0].mxu0
      %v2202 = vadd.f32 %v1977, %v2201
      %v2203 = vpop.f32.mrb[0].mxu0
      %v2204 = vpop.f32.mrb[0].mxu0
      %v2205 = vadd.f32 %v1980, %v2204
      %v2206 = vpop.f32.mrb[0].mxu0
      %2207 = vmatprep.mubr.bf16.mxu0 0
      %2208 = vmatmul.mubr.bf16.gmra.mrb[0].mxu0 %v1706
      %v2209 = vpop.f32.mrb[0].mxu0
      %v2210 = vadd.f32 %v1985, %v2209
      %v2211 = vpop.f32.mrb[0].mxu0
      %v2212 = vpop.f32.mrb[0].mxu0
      %v2213 = vadd.f32 %v1988, %v2212
      %v2214 = vpop.f32.mrb[0].mxu0
      %2215 = vmatprep.mubr.bf16.mxu0 0
      %2216 = vmatmul.mubr.bf16.gmra.mrb[0].mxu0 %v1707
      %v2217 = vpop.f32.mrb[0].mxu0
      %v2218 = vadd.f32 %v1993, %v2217
      %v2219 = vpop.f32.mrb[0].mxu0
      %v2220 = vpop.f32.mrb[0].mxu0
      %v2221 = vadd.f32 %v1996, %v2220
      %v2222 = vpop.f32.mrb[0].mxu0
      %2223 = vmatprep.mubr.bf16.mxu0 0
      %2224 = vmatmul.mubr.bf16.gmra.mrb[0].mxu0 %v1708
      %v2225 = vpop.f32.mrb[0].mxu0
      %v2226 = vadd.f32 %v2001, %v2225
      %v2227 = vpop.f32.mrb[0].mxu0
      %v2228 = vpop.f32.mrb[0].mxu0
      %v2229 = vadd.f32 %v2004, %v2228
      %v2230 = vpop.f32.mrb[0].mxu0
      %2231 = vmatprep.mubr.bf16.mxu0 0
      %2232 = vmatmul.mubr.bf16.gmra.mrb[0].mxu0 %v1709
      %v2233 = vpop.f32.mrb[0].mxu0
      %v2234 = vadd.f32 %v2009, %v2233
      %v2235 = vpop.f32.mrb[0].mxu0
      %v2236 = vpop.f32.mrb[0].mxu0
      %v2237 = vadd.f32 %v2012, %v2236
      %v2238 = vpop.f32.mrb[0].mxu0
      %2239 = vmatprep.mubr.bf16.mxu0 0
      %2240 = vmatmul.mubr.bf16.gmra.mrb[0].mxu0 %v1710
      %v2241 = vpop.f32.mrb[0].mxu0
      %v2242 = vadd.f32 %v2017, %v2241
      %v2243 = vpop.f32.mrb[0].mxu0
      %v2244 = vpop.f32.mrb[0].mxu0
      %v2245 = vadd.f32 %v2020, %v2244
      %v2246 = vpop.f32.mrb[0].mxu0
      %2247 = vdwg.mxu0
      %v2248 = vld [vmem:[#allocation2 + $0x13] sm:$0xff]
      %v2249 = vld [vmem:[#allocation2 + $0x1b] sm:$0xff]
      %v2250 = vld [vmem:[#allocation2 + $0x23] sm:$0xff]
      %v2251 = vld [vmem:[#allocation2 + $0x2b] sm:$0xff]
      %v2252 = vld [vmem:[#allocation2 + $0x33] sm:$0xff]
      %v2253 = vld [vmem:[#allocation2 + $0x3b] sm:$0xff]
      %v2254 = vld [vmem:[#allocation2 + $0x43] sm:$0xff]
      %v2255 = vld [vmem:[#allocation2 + $0x4b] sm:$0xff]
      %v2256 = vld [vmem:[#allocation2 + $0x53] sm:$0xff]
      %v2257 = vld [vmem:[#allocation2 + $0x5b] sm:$0xff]
      %v2258 = vld [vmem:[#allocation2 + $0x63] sm:$0xff]
      %v2259 = vld [vmem:[#allocation2 + $0x6b] sm:$0xff]
      %v2260 = vld [vmem:[#allocation2 + $0x73] sm:$0xff]
      %v2261 = vld [vmem:[#allocation2 + $0x7b] sm:$0xff]
      %v2262 = vld [vmem:[#allocation2 + $0x83] sm:$0xff]
      %v2263 = vld [vmem:[#allocation2 + $0x8b] sm:$0xff]
      %v2264 = vld [vmem:[#allocation2 + $0x93] sm:$0xff]
      %v2265 = vld [vmem:[#allocation2 + $0x9b] sm:$0xff]
      %v2266 = vld [vmem:[#allocation2 + $0xa3] sm:$0xff]
      %v2267 = vld [vmem:[#allocation2 + $0xab] sm:$0xff]
      %v2268 = vld [vmem:[#allocation2 + $0xb3] sm:$0xff]
      %v2269 = vld [vmem:[#allocation2 + $0xbb] sm:$0xff]
      %v2270 = vld [vmem:[#allocation2 + $0xc3] sm:$0xff]
      %v2271 = vld [vmem:[#allocation2 + $0xcb] sm:$0xff]
      %v2272 = vld [vmem:[#allocation2 + $0xd3] sm:$0xff]
      %v2273 = vld [vmem:[#allocation2 + $0xdb] sm:$0xff]
      %v2274 = vld [vmem:[#allocation2 + $0xe3] sm:$0xff]
      %v2275 = vld [vmem:[#allocation2 + $0xeb] sm:$0xff]
      %v2276 = vld [vmem:[#allocation2 + $0xf3] sm:$0xff]
      %v2277 = vld [vmem:[#allocation2 + $0xfb] sm:$0xff]
      %v2278 = vld [vmem:[#allocation2 + $0x103] sm:$0xff]
      %v2279 = vld [vmem:[#allocation2 + $0x10b] sm:$0xff]
      %v2280 = vld [vmem:[#allocation2 + $0x113] sm:$0xff]
      %v2281 = vld [vmem:[#allocation2 + $0x11b] sm:$0xff]
      %v2282 = vld [vmem:[#allocation2 + $0x123] sm:$0xff]
      %v2283 = vld [vmem:[#allocation2 + $0x12b] sm:$0xff]
      %v2284 = vpack.c.bf16 %v2249, %v2248
      %v2285 = vpack.c.bf16 %v2251, %v2250
      %v2286 = vpack.c.bf16 %v2253, %v2252
      %v2287 = vpack.c.bf16 %v2255, %v2254
      %v2288 = vpack.c.bf16 %v2257, %v2256
      %v2289 = vpack.c.bf16 %v2259, %v2258
      %v2290 = vpack.c.bf16 %v2261, %v2260
      %v2291 = vpack.c.bf16 %v2263, %v2262
      %v2292 = vpack.c.bf16 %v2265, %v2264
      %v2293 = vpack.c.bf16 %v2267, %v2266
      %v2294 = vpack.c.bf16 %v2269, %v2268
      %v2295 = vpack.c.bf16 %v2271, %v2270
      %v2296 = vpack.c.bf16 %v2273, %v2272
      %v2297 = vpack.c.bf16 %v2275, %v2274
      %v2298 = vpack.c.bf16 %v2277, %v2276
      %v2299 = vpack.c.bf16 %v2279, %v2278
      %v2300 = vpack.c.bf16 %v2281, %v2280
      %v2301 = vpack.c.bf16 %v2283, %v2282
      %s2302 = scalar_lea.vmem %s2, 128
      %v2303 = vld [vmem:[%s2302] sm:$0xf]
      %v2304 = vld [vmem:[%s2302 + $0x4] sm:$0xf]
      %v2305 = vld [vmem:[%s2302 + $0x8] sm:$0xf]
      %v2306 = vld [vmem:[%s2302 + $0xc] sm:$0xf]
      %v2307 = vld [vmem:[%s2302 + $0x10] sm:$0xf]
      %v2308 = vld [vmem:[%s2302 + $0x14] sm:$0xf]
      %v2309 = vld [vmem:[%s2302 + $0x18] sm:$0xf]
      %v2310 = vld [vmem:[%s2302 + $0x1c] sm:$0xf]
      %v2311 = vld [vmem:[%s2302 + $0x20] sm:$0xf]
      %v2312 = vld [vmem:[%s2302 + $0x24] sm:$0xf]
      %v2313 = vld [vmem:[%s2302 + $0x28] sm:$0xf]
      %v2314 = vld [vmem:[%s2302 + $0x2c] sm:$0xf]
      %v2315 = vld [vmem:[%s2302 + $0x30] sm:$0xf]
      %v2316 = vld [vmem:[%s2302 + $0x34] sm:$0xf]
      %v2317 = vld [vmem:[%s2302 + $0x38] sm:$0xf]
      %v2318 = vld [vmem:[%s2302 + $0x3c] sm:$0xf]
      %v2335 = vunpack.c.l.b16 %v2303
      %v2336 = vunpack.c.l.b16 %v2304
      %v2337 = vunpack.c.l.b16 %v2305
      %v2338 = vunpack.c.l.b16 %v2306
      %v2339 = vunpack.c.l.b16 %v2307
      %v2340 = vunpack.c.l.b16 %v2308
      %v2341 = vunpack.c.l.b16 %v2309
      %v2342 = vunpack.c.l.b16 %v2310
      %v2343 = vunpack.c.l.b16 %v2311
      %v2344 = vunpack.c.l.b16 %v2312
      %v2345 = vunpack.c.l.b16 %v2313
      %v2346 = vunpack.c.l.b16 %v2314
      %v2347 = vunpack.c.l.b16 %v2315
      %v2348 = vunpack.c.l.b16 %v2316
      %v2349 = vunpack.c.l.b16 %v2317
      %v2350 = vunpack.c.l.b16 %v2318
      %v2351 = vpack.c.b16 %v2336, %v2335
      %v2352 = vpack.c.b16 %v2338, %v2337
      %v2353 = vpack.c.b16 %v2340, %v2339
      %v2354 = vpack.c.b16 %v2342, %v2341
      %v2355 = vpack.c.b16 %v2344, %v2343
      %v2356 = vpack.c.b16 %v2346, %v2345
      %v2357 = vpack.c.b16 %v2348, %v2347
      %v2358 = vpack.c.b16 %v2350, %v2349
      %2367 = vmatprep.subr.bf16.mxu0 0
      %2368 = vmatpush1.bf16.msra.mxu0 %v2351
      %2369 = vmatprep.subr.bf16.mxu0 0
      %2370 = vmatpush1.bf16.msra.mxu0 %v2352
      %2371 = vmatprep.subr.bf16.mxu0 0
      %2372 = vmatpush1.bf16.msra.mxu0 %v2353
      %2373 = vmatprep.subr.bf16.mxu0 0
      %2374 = vmatpush1.bf16.msra.mxu0 %v2354
      %2375 = vmatprep.subr.bf16.mxu0 0
      %2376 = vmatpush1.bf16.msra.mxu0 %v2355
      %2377 = vmatprep.subr.bf16.mxu0 0
      %2378 = vmatpush1.bf16.msra.mxu0 %v2356
      %2379 = vmatprep.subr.bf16.mxu0 0
      %2380 = vmatpush1.bf16.msra.mxu0 %v2357
      %2381 = vmatprep.subr.bf16.mxu0 0
      %2382 = vmatpush1.bf16.msra.mxu0 %v2358
      %2383 = vmatprep.subr.bf16.mxu0 0
      %2384 = vmatpush1.bf16.msra.mxu0 0
      %2385 = vmatprep.subr.bf16.mxu0 0
      %2386 = vmatpush1.bf16.msra.mxu0 0
      %2387 = vmatprep.subr.bf16.mxu0 0
      %2388 = vmatpush1.bf16.msra.mxu0 0
      %2389 = vmatprep.subr.bf16.mxu0 0
      %2390 = vmatpush1.bf16.msra.mxu0 0
      %2391 = vmatprep.subr.bf16.mxu0 0
      %2392 = vmatpush1.bf16.msra.mxu0 0
      %2393 = vmatprep.subr.bf16.mxu0 0
      %2394 = vmatpush1.bf16.msra.mxu0 0
      %2395 = vmatprep.subr.bf16.mxu0 0
      %2396 = vmatpush1.bf16.msra.mxu0 0
      %2397 = vmatprep.subr.bf16.mxu0 0
      %2398 = vmatpush1.bf16.msra.mxu0 0
      %2399 = vmatprep.mubr.bf16.mxu0 0
      %2400 = vmatmul.mubr.bf16.gmra.mrb[0].mxu0 %v2284
      %v2401 = vpop.f32.mrb[0].mxu0
      %v2402 = vadd.f32 0.0, %v2401
      %v2403 = vpop.f32.mrb[0].mxu0
      %v2404 = vpop.f32.mrb[0].mxu0
      %v2405 = vadd.f32 0.0, %v2404
      %v2406 = vpop.f32.mrb[0].mxu0
      %2407 = vmatprep.mubr.bf16.mxu0 0
      %2408 = vmatmul.mubr.bf16.gmra.mrb[0].mxu0 %v2285
      %v2409 = vpop.f32.mrb[0].mxu0
      %v2410 = vadd.f32 0.0, %v2409
      %v2411 = vpop.f32.mrb[0].mxu0
      %v2412 = vpop.f32.mrb[0].mxu0
      %v2413 = vadd.f32 0.0, %v2412
      %v2414 = vpop.f32.mrb[0].mxu0
      %2415 = vmatprep.mubr.bf16.mxu0 0
      %2416 = vmatmul.mubr.bf16.gmra.mrb[0].mxu0 %v2286
      %v2417 = vpop.f32.mrb[0].mxu0
      %v2418 = vadd.f32 0.0, %v2417
      %v2419 = vpop.f32.mrb[0].mxu0
      %v2420 = vpop.f32.mrb[0].mxu0
      %v2421 = vadd.f32 0.0, %v2420
      %v2422 = vpop.f32.mrb[0].mxu0
      %2423 = vmatprep.mubr.bf16.mxu0 0
      %2424 = vmatmul.mubr.bf16.gmra.mrb[0].mxu0 %v2287
      %v2425 = vpop.f32.mrb[0].mxu0
      %v2426 = vadd.f32 0.0, %v2425
      %v2427 = vpop.f32.mrb[0].mxu0
      %v2428 = vpop.f32.mrb[0].mxu0
      %v2429 = vadd.f32 0.0, %v2428
      %v2430 = vpop.f32.mrb[0].mxu0
      %2431 = vmatprep.mubr.bf16.mxu0 0
      %2432 = vmatmul.mubr.bf16.gmra.mrb[0].mxu0 %v2288
      %v2433 = vpop.f32.mrb[0].mxu0
      %v2434 = vadd.f32 0.0, %v2433
      %v2435 = vpop.f32.mrb[0].mxu0
      %v2436 = vpop.f32.mrb[0].mxu0
      %v2437 = vadd.f32 0.0, %v2436
      %v2438 = vpop.f32.mrb[0].mxu0
      %2439 = vmatprep.mubr.bf16.mxu0 0
      %2440 = vmatmul.mubr.bf16.gmra.mrb[0].mxu0 %v2289
      %v2441 = vpop.f32.mrb[0].mxu0
      %v2442 = vadd.f32 0.0, %v2441
      %v2443 = vpop.f32.mrb[0].mxu0
      %v2444 = vpop.f32.mrb[0].mxu0
      %v2445 = vadd.f32 0.0, %v2444
      %v2446 = vpop.f32.mrb[0].mxu0
      %2447 = vmatprep.mubr.bf16.mxu0 0
      %2448 = vmatmul.mubr.bf16.gmra.mrb[0].mxu0 %v2290
      %v2449 = vpop.f32.mrb[0].mxu0
      %v2450 = vadd.f32 0.0, %v2449
      %v2451 = vpop.f32.mrb[0].mxu0
      %v2452 = vpop.f32.mrb[0].mxu0
      %v2453 = vadd.f32 0.0, %v2452
      %v2454 = vpop.f32.mrb[0].mxu0
      %2455 = vmatprep.mubr.bf16.mxu0 0
      %2456 = vmatmul.mubr.bf16.gmra.mrb[0].mxu0 %v2291
      %v2457 = vpop.f32.mrb[0].mxu0
      %v2458 = vadd.f32 0.0, %v2457
      %v2459 = vpop.f32.mrb[0].mxu0
      %v2460 = vpop.f32.mrb[0].mxu0
      %v2461 = vadd.f32 0.0, %v2460
      %v2462 = vpop.f32.mrb[0].mxu0
      %2463 = vmatprep.mubr.bf16.mxu0 0
      %2464 = vmatmul.mubr.bf16.gmra.mrb[0].mxu0 %v2292
      %v2465 = vpop.f32.mrb[0].mxu0
      %v2466 = vadd.f32 0.0, %v2465
      %v2467 = vpop.f32.mrb[0].mxu0
      %v2468 = vpop.f32.mrb[0].mxu0
      %v2469 = vadd.f32 0.0, %v2468
      %v2470 = vpop.f32.mrb[0].mxu0
      %2471 = vmatprep.mubr.bf16.mxu0 0
      %2472 = vmatmul.mubr.bf16.gmra.mrb[0].mxu0 %v2293
      %v2473 = vpop.f32.mrb[0].mxu0
      %v2474 = vadd.f32 0.0, %v2473
      %v2475 = vpop.f32.mrb[0].mxu0
      %v2476 = vpop.f32.mrb[0].mxu0
      %v2477 = vadd.f32 0.0, %v2476
      %v2478 = vpop.f32.mrb[0].mxu0
      %2479 = vmatprep.mubr.bf16.mxu0 0
      %2480 = vmatmul.mubr.bf16.gmra.mrb[0].mxu0 %v2294
      %v2481 = vpop.f32.mrb[0].mxu0
      %v2482 = vadd.f32 0.0, %v2481
      %v2483 = vpop.f32.mrb[0].mxu0
      %v2484 = vpop.f32.mrb[0].mxu0
      %v2485 = vadd.f32 0.0, %v2484
      %v2486 = vpop.f32.mrb[0].mxu0
      %2487 = vmatprep.mubr.bf16.mxu0 0
      %2488 = vmatmul.mubr.bf16.gmra.mrb[0].mxu0 %v2295
      %v2489 = vpop.f32.mrb[0].mxu0
      %v2490 = vadd.f32 0.0, %v2489
      %v2491 = vpop.f32.mrb[0].mxu0
      %v2492 = vpop.f32.mrb[0].mxu0
      %v2493 = vadd.f32 0.0, %v2492
      %v2494 = vpop.f32.mrb[0].mxu0
      %2495 = vmatprep.mubr.bf16.mxu0 0
      %2496 = vmatmul.mubr.bf16.gmra.mrb[0].mxu0 %v2296
      %v2497 = vpop.f32.mrb[0].mxu0
      %v2498 = vadd.f32 0.0, %v2497
      %v2499 = vpop.f32.mrb[0].mxu0
      %v2500 = vpop.f32.mrb[0].mxu0
      %v2501 = vadd.f32 0.0, %v2500
      %v2502 = vpop.f32.mrb[0].mxu0
      %2503 = vmatprep.mubr.bf16.mxu0 0
      %2504 = vmatmul.mubr.bf16.gmra.mrb[0].mxu0 %v2297
      %v2505 = vpop.f32.mrb[0].mxu0
      %v2506 = vadd.f32 0.0, %v2505
      %v2507 = vpop.f32.mrb[0].mxu0
      %v2508 = vpop.f32.mrb[0].mxu0
      %v2509 = vadd.f32 0.0, %v2508
      %v2510 = vpop.f32.mrb[0].mxu0
      %2511 = vmatprep.mubr.bf16.mxu0 0
      %2512 = vmatmul.mubr.bf16.gmra.mrb[0].mxu0 %v2298
      %v2513 = vpop.f32.mrb[0].mxu0
      %v2514 = vadd.f32 0.0, %v2513
      %v2515 = vpop.f32.mrb[0].mxu0
      %v2516 = vpop.f32.mrb[0].mxu0
      %v2517 = vadd.f32 0.0, %v2516
      %v2518 = vpop.f32.mrb[0].mxu0
      %2519 = vmatprep.mubr.bf16.mxu0 0
      %2520 = vmatmul.mubr.bf16.gmra.mrb[0].mxu0 %v2299
      %v2521 = vpop.f32.mrb[0].mxu0
      %v2522 = vadd.f32 0.0, %v2521
      %v2523 = vpop.f32.mrb[0].mxu0
      %v2524 = vpop.f32.mrb[0].mxu0
      %v2525 = vadd.f32 0.0, %v2524
      %v2526 = vpop.f32.mrb[0].mxu0
      %2527 = vmatprep.mubr.bf16.mxu0 0
      %2528 = vmatmul.mubr.bf16.gmra.mrb[0].mxu0 %v2300
      %v2529 = vpop.f32.mrb[0].mxu0
      %v2530 = vadd.f32 0.0, %v2529
      %v2531 = vpop.f32.mrb[0].mxu0
      %v2532 = vpop.f32.mrb[0].mxu0
      %v2533 = vadd.f32 0.0, %v2532
      %v2534 = vpop.f32.mrb[0].mxu0
      %2535 = vmatprep.mubr.bf16.mxu0 0
      %2536 = vmatmul.mubr.bf16.gmra.mrb[0].mxu0 %v2301
      %v2537 = vpop.f32.mrb[0].mxu0
      %v2538 = vadd.f32 0.0, %v2537
      %v2539 = vpop.f32.mrb[0].mxu0
      %v2540 = vpop.f32.mrb[0].mxu0
      %v2541 = vadd.f32 0.0, %v2540
      %v2542 = vpop.f32.mrb[0].mxu0
      %2543 = vdwg.mxu0
      %v2544 = vadd.f32 %v2106, %v2402
      %v2545 = vadd.f32 %v2109, %v2405
      %v2546 = vadd.f32 %v2114, %v2410
      %v2547 = vadd.f32 %v2117, %v2413
      %v2548 = vadd.f32 %v2122, %v2418
      %v2549 = vadd.f32 %v2125, %v2421
      %v2550 = vadd.f32 %v2130, %v2426
      %v2551 = vadd.f32 %v2133, %v2429
      %v2552 = vadd.f32 %v2138, %v2434
      %v2553 = vadd.f32 %v2141, %v2437
      %v2554 = vadd.f32 %v2146, %v2442
      %v2555 = vadd.f32 %v2149, %v2445
      %v2556 = vadd.f32 %v2154, %v2450
      %v2557 = vadd.f32 %v2157, %v2453
      %v2558 = vadd.f32 %v2162, %v2458
      %v2559 = vadd.f32 %v2165, %v2461
      %v2560 = vadd.f32 %v2170, %v2466
      %v2561 = vadd.f32 %v2173, %v2469
      %v2562 = vadd.f32 %v2178, %v2474
      %v2563 = vadd.f32 %v2181, %v2477
      %v2564 = vadd.f32 %v2186, %v2482
      %v2565 = vadd.f32 %v2189, %v2485
      %v2566 = vadd.f32 %v2194, %v2490
      %v2567 = vadd.f32 %v2197, %v2493
      %v2568 = vadd.f32 %v2202, %v2498
      %v2569 = vadd.f32 %v2205, %v2501
      %v2570 = vadd.f32 %v2210, %v2506
      %v2571 = vadd.f32 %v2213, %v2509
      %v2572 = vadd.f32 %v2218, %v2514
      %v2573 = vadd.f32 %v2221, %v2517
      %v2574 = vadd.f32 %v2226, %v2522
      %v2575 = vadd.f32 %v2229, %v2525
      %v2576 = vadd.f32 %v2234, %v2530
      %v2577 = vadd.f32 %v2237, %v2533
      %v2578 = vadd.f32 %v2242, %v2538
      %v2579 = vadd.f32 %v2245, %v2541
      %v2580 = vld [vmem:[%s6] sm:$0x1]
      %v2582 = vlaneseq
      %v2583 = vshrl.u32 %v2582, 7
      %v2584 = vsub.s32 0, %v2583
      %v2585 = vrot.slane %v2580, %v2584
      %v2587 = vadd.f32 %v2544, %v2585
      %v2588 = vadd.f32 %v2545, %v2585
      %v2589 = vadd.f32 %v2546, %v2585
      %v2590 = vadd.f32 %v2547, %v2585
      %v2591 = vadd.f32 %v2548, %v2585
      %v2592 = vadd.f32 %v2549, %v2585
      %v2593 = vadd.f32 %v2550, %v2585
      %v2594 = vadd.f32 %v2551, %v2585
      %v2595 = vadd.f32 %v2552, %v2585
      %v2596 = vadd.f32 %v2553, %v2585
      %v2597 = vadd.f32 %v2554, %v2585
      %v2598 = vadd.f32 %v2555, %v2585
      %v2599 = vadd.f32 %v2556, %v2585
      %v2600 = vadd.f32 %v2557, %v2585
      %v2601 = vadd.f32 %v2558, %v2585
      %v2602 = vadd.f32 %v2559, %v2585
      %v2603 = vadd.f32 %v2560, %v2585
      %v2604 = vadd.f32 %v2561, %v2585
      %v2605 = vadd.f32 %v2562, %v2585
      %v2606 = vadd.f32 %v2563, %v2585
      %v2607 = vadd.f32 %v2564, %v2585
      %v2608 = vadd.f32 %v2565, %v2585
      %v2609 = vadd.f32 %v2566, %v2585
      %v2610 = vadd.f32 %v2567, %v2585
      %v2611 = vadd.f32 %v2568, %v2585
      %v2612 = vadd.f32 %v2569, %v2585
      %v2613 = vadd.f32 %v2570, %v2585
      %v2614 = vadd.f32 %v2571, %v2585
      %v2615 = vadd.f32 %v2572, %v2585
      %v2616 = vadd.f32 %v2573, %v2585
      %v2617 = vadd.f32 %v2574, %v2585
      %v2618 = vadd.f32 %v2575, %v2585
      %v2619 = vadd.f32 %v2576, %v2585
      %v2620 = vadd.f32 %v2577, %v2585
      %v2621 = vadd.f32 %v2578, %v2585
      %v2622 = vadd.f32 %v2579, %v2585
      %v2623 = vmax.f32 %v2587, 0.0
      %v2624 = vmax.f32 %v2588, 0.0
      %v2625 = vmax.f32 %v2589, 0.0
      %v2626 = vmax.f32 %v2590, 0.0
      %v2627 = vmax.f32 %v2591, 0.0
      %v2628 = vmax.f32 %v2592, 0.0
      %v2629 = vmax.f32 %v2593, 0.0
      %v2630 = vmax.f32 %v2594, 0.0
      %v2631 = vmax.f32 %v2595, 0.0
      %v2632 = vmax.f32 %v2596, 0.0
      %v2633 = vmax.f32 %v2597, 0.0
      %v2634 = vmax.f32 %v2598, 0.0
      %v2635 = vmax.f32 %v2599, 0.0
      %v2636 = vmax.f32 %v2600, 0.0
      %v2637 = vmax.f32 %v2601, 0.0
      %v2638 = vmax.f32 %v2602, 0.0
      %v2639 = vmax.f32 %v2603, 0.0
      %v2640 = vmax.f32 %v2604, 0.0
      %v2641 = vmax.f32 %v2605, 0.0
      %v2642 = vmax.f32 %v2606, 0.0
      %v2643 = vmax.f32 %v2607, 0.0
      %v2644 = vmax.f32 %v2608, 0.0
      %v2645 = vmax.f32 %v2609, 0.0
      %v2646 = vmax.f32 %v2610, 0.0
      %v2647 = vmax.f32 %v2611, 0.0
      %v2648 = vmax.f32 %v2612, 0.0
      %v2649 = vmax.f32 %v2613, 0.0
      %v2650 = vmax.f32 %v2614, 0.0
      %v2651 = vmax.f32 %v2615, 0.0
      %v2652 = vmax.f32 %v2616, 0.0
      %v2653 = vmax.f32 %v2617, 0.0
      %v2654 = vmax.f32 %v2618, 0.0
      %v2655 = vmax.f32 %v2619, 0.0
      %v2656 = vmax.f32 %v2620, 0.0
      %v2657 = vmax.f32 %v2621, 0.0
      %v2658 = vmax.f32 %v2622, 0.0
      %v2659 = vmul.f32 %v2623, %v1402
      %v2660 = vmul.f32 %v2624, %v1407
      %v2661 = vmul.f32 %v2625, %v1412
      %v2662 = vmul.f32 %v2626, %v1417
      %v2663 = vmul.f32 %v2627, %v1422
      %v2664 = vmul.f32 %v2628, %v1427
      %v2665 = vmul.f32 %v2629, %v1432
      %v2666 = vmul.f32 %v2630, %v1437
      %v2667 = vmul.f32 %v2631, %v1442
      %v2668 = vmul.f32 %v2632, %v1447
      %v2669 = vmul.f32 %v2633, %v1452
      %v2670 = vmul.f32 %v2634, %v1457
      %v2671 = vmul.f32 %v2635, %v1462
      %v2672 = vmul.f32 %v2636, %v1467
      %v2673 = vmul.f32 %v2637, %v1472
      %v2674 = vmul.f32 %v2638, %v1477
      %v2675 = vmul.f32 %v2639, %v1482
      %v2676 = vmul.f32 %v2640, %v1487
      %v2677 = vmul.f32 %v2641, %v1492
      %v2678 = vmul.f32 %v2642, %v1497
      %v2679 = vmul.f32 %v2643, %v1502
      %v2680 = vmul.f32 %v2644, %v1507
      %v2681 = vmul.f32 %v2645, %v1512
      %v2682 = vmul.f32 %v2646, %v1517
      %v2683 = vmul.f32 %v2647, %v1522
      %v2684 = vmul.f32 %v2648, %v1527
      %v2685 = vmul.f32 %v2649, %v1532
      %v2686 = vmul.f32 %v2650, %v1537
      %v2687 = vmul.f32 %v2651, %v1542
      %v2688 = vmul.f32 %v2652, %v1547
      %v2689 = vmul.f32 %v2653, %v1552
      %v2690 = vmul.f32 %v2654, %v1557
      %v2691 = vmul.f32 %v2655, %v1562
      %v2692 = vmul.f32 %v2656, %v1567
      %v2693 = vmul.f32 %v2657, %v1572
      %v2694 = vmul.f32 %v2658, %v1577
      %2695 = vst [vmem:[#allocation3] sm:$0xff] 0.0
      %2696 = vst [vmem:[#allocation3 + $0x8] sm:$0xff] 0.0
      %2697 = vst [vmem:[#allocation3 + $0x10] sm:$0x3] 0.0
      %2698 = vst [vmem:[#allocation3 + $0x132] sm:$0xff] 0.0
      %2699 = vst [vmem:[#allocation3 + $0x13a] sm:$0xff] 0.0
      %2700 = vst [vmem:[#allocation3 + $0x142] sm:$0x3] 0.0
      %2701 = vst [vmem:[#allocation3 + $0x12] sm:$0xff] %v2659
      %2702 = vst [vmem:[#allocation3 + $0x1a] sm:$0xff] %v2660
      %2703 = vst [vmem:[#allocation3 + $0x22] sm:$0xff] %v2661
      %2704 = vst [vmem:[#allocation3 + $0x2a] sm:$0xff] %v2662
      %2705 = vst [vmem:[#allocation3 + $0x32] sm:$0xff] %v2663
      %2706 = vst [vmem:[#allocation3 + $0x3a] sm:$0xff] %v2664
      %2707 = vst [vmem:[#allocation3 + $0x42] sm:$0xff] %v2665
      %2708 = vst [vmem:[#allocation3 + $0x4a] sm:$0xff] %v2666
      %2709 = vst [vmem:[#allocation3 + $0x52] sm:$0xff] %v2667
      %2710 = vst [vmem:[#allocation3 + $0x5a] sm:$0xff] %v2668
      %2711 = vst [vmem:[#allocation3 + $0x62] sm:$0xff] %v2669
      %2712 = vst [vmem:[#allocation3 + $0x6a] sm:$0xff] %v2670
      %2713 = vst [vmem:[#allocation3 + $0x72] sm:$0xff] %v2671
      %2714 = vst [vmem:[#allocation3 + $0x7a] sm:$0xff] %v2672
      %2715 = vst [vmem:[#allocation3 + $0x82] sm:$0xff] %v2673
      %2716 = vst [vmem:[#allocation3 + $0x8a] sm:$0xff] %v2674
      %2717 = vst [vmem:[#allocation3 + $0x92] sm:$0xff] %v2675
      %2718 = vst [vmem:[#allocation3 + $0x9a] sm:$0xff] %v2676
      %2719 = vst [vmem:[#allocation3 + $0xa2] sm:$0xff] %v2677
      %2720 = vst [vmem:[#allocation3 + $0xaa] sm:$0xff] %v2678
      %2721 = vst [vmem:[#allocation3 + $0xb2] sm:$0xff] %v2679
      %2722 = vst [vmem:[#allocation3 + $0xba] sm:$0xff] %v2680
      %2723 = vst [vmem:[#allocation3 + $0xc2] sm:$0xff] %v2681
      %2724 = vst [vmem:[#allocation3 + $0xca] sm:$0xff] %v2682
      %2725 = vst [vmem:[#allocation3 + $0xd2] sm:$0xff] %v2683
      %2726 = vst [vmem:[#allocation3 + $0xda] sm:$0xff] %v2684
      %2727 = vst [vmem:[#allocation3 + $0xe2] sm:$0xff] %v2685
      %2728 = vst [vmem:[#allocation3 + $0xea] sm:$0xff] %v2686
      %2729 = vst [vmem:[#allocation3 + $0xf2] sm:$0xff] %v2687
      %2730 = vst [vmem:[#allocation3 + $0xfa] sm:$0xff] %v2688
      %2731 = vst [vmem:[#allocation3 + $0x102] sm:$0xff] %v2689
      %2732 = vst [vmem:[#allocation3 + $0x10a] sm:$0xff] %v2690
      %2733 = vst [vmem:[#allocation3 + $0x112] sm:$0xff] %v2691
      %2734 = vst [vmem:[#allocation3 + $0x11a] sm:$0xff] %v2692
      %2735 = vst [vmem:[#allocation3 + $0x122] sm:$0xff] %v2693
      %2736 = vst [vmem:[#allocation3 + $0x12a] sm:$0xff] %v2694
      %v2737 = vld [vmem:[#allocation3] sm:$0xff]
      %v2738 = vld [vmem:[#allocation3 + $0x8] sm:$0xff]
      %v2739 = vld [vmem:[#allocation3 + $0x10] sm:$0xff]
      %v2740 = vld [vmem:[#allocation3 + $0x18] sm:$0xff]
      %v2741 = vld [vmem:[#allocation3 + $0x20] sm:$0xff]
      %v2742 = vld [vmem:[#allocation3 + $0x28] sm:$0xff]
      %v2743 = vld [vmem:[#allocation3 + $0x30] sm:$0xff]
      %v2744 = vld [vmem:[#allocation3 + $0x38] sm:$0xff]
      %v2745 = vld [vmem:[#allocation3 + $0x40] sm:$0xff]
      %v2746 = vld [vmem:[#allocation3 + $0x48] sm:$0xff]
      %v2747 = vld [vmem:[#allocation3 + $0x50] sm:$0xff]
      %v2748 = vld [vmem:[#allocation3 + $0x58] sm:$0xff]
      %v2749 = vld [vmem:[#allocation3 + $0x60] sm:$0xff]
      %v2750 = vld [vmem:[#allocation3 + $0x68] sm:$0xff]
      %v2751 = vld [vmem:[#allocation3 + $0x70] sm:$0xff]
      %v2752 = vld [vmem:[#allocation3 + $0x78] sm:$0xff]
      %v2753 = vld [vmem:[#allocation3 + $0x80] sm:$0xff]
      %v2754 = vld [vmem:[#allocation3 + $0x88] sm:$0xff]
      %v2755 = vld [vmem:[#allocation3 + $0x90] sm:$0xff]
      %v2756 = vld [vmem:[#allocation3 + $0x98] sm:$0xff]
      %v2757 = vld [vmem:[#allocation3 + $0xa0] sm:$0xff]
      %v2758 = vld [vmem:[#allocation3 + $0xa8] sm:$0xff]
      %v2759 = vld [vmem:[#allocation3 + $0xb0] sm:$0xff]
      %v2760 = vld [vmem:[#allocation3 + $0xb8] sm:$0xff]
      %v2761 = vld [vmem:[#allocation3 + $0xc0] sm:$0xff]
      %v2762 = vld [vmem:[#allocation3 + $0xc8] sm:$0xff]
      %v2763 = vld [vmem:[#allocation3 + $0xd0] sm:$0xff]
      %v2764 = vld [vmem:[#allocation3 + $0xd8] sm:$0xff]
      %v2765 = vld [vmem:[#allocation3 + $0xe0] sm:$0xff]
      %v2766 = vld [vmem:[#allocation3 + $0xe8] sm:$0xff]
      %v2767 = vld [vmem:[#allocation3 + $0xf0] sm:$0xff]
      %v2768 = vld [vmem:[#allocation3 + $0xf8] sm:$0xff]
      %v2769 = vld [vmem:[#allocation3 + $0x100] sm:$0xff]
      %v2770 = vld [vmem:[#allocation3 + $0x108] sm:$0xff]
      %v2771 = vld [vmem:[#allocation3 + $0x110] sm:$0xff]
      %v2772 = vld [vmem:[#allocation3 + $0x118] sm:$0xff]
      %v2773 = vpack.c.bf16 %v2738, %v2737
      %v2774 = vpack.c.bf16 %v2740, %v2739
      %v2775 = vpack.c.bf16 %v2742, %v2741
      %v2776 = vpack.c.bf16 %v2744, %v2743
      %v2777 = vpack.c.bf16 %v2746, %v2745
      %v2778 = vpack.c.bf16 %v2748, %v2747
      %v2779 = vpack.c.bf16 %v2750, %v2749
      %v2780 = vpack.c.bf16 %v2752, %v2751
      %v2781 = vpack.c.bf16 %v2754, %v2753
      %v2782 = vpack.c.bf16 %v2756, %v2755
      %v2783 = vpack.c.bf16 %v2758, %v2757
      %v2784 = vpack.c.bf16 %v2760, %v2759
      %v2785 = vpack.c.bf16 %v2762, %v2761
      %v2786 = vpack.c.bf16 %v2764, %v2763
      %v2787 = vpack.c.bf16 %v2766, %v2765
      %v2788 = vpack.c.bf16 %v2768, %v2767
      %v2789 = vpack.c.bf16 %v2770, %v2769
      %v2790 = vpack.c.bf16 %v2772, %v2771
      %v2791 = vld [vmem:[%s3] sm:$0xf]
      %v2792 = vld [vmem:[%s3 + $0x4] sm:$0xf]
      %v2793 = vld [vmem:[%s3 + $0x8] sm:$0xf]
      %v2794 = vld [vmem:[%s3 + $0xc] sm:$0xf]
      %v2795 = vld [vmem:[%s3 + $0x10] sm:$0xf]
      %v2796 = vld [vmem:[%s3 + $0x14] sm:$0xf]
      %v2797 = vld [vmem:[%s3 + $0x18] sm:$0xf]
      %v2798 = vld [vmem:[%s3 + $0x1c] sm:$0xf]
      %v2799 = vld [vmem:[%s3 + $0x20] sm:$0xf]
      %v2800 = vld [vmem:[%s3 + $0x24] sm:$0xf]
      %v2801 = vld [vmem:[%s3 + $0x28] sm:$0xf]
      %v2802 = vld [vmem:[%s3 + $0x2c] sm:$0xf]
      %v2803 = vld [vmem:[%s3 + $0x30] sm:$0xf]
      %v2804 = vld [vmem:[%s3 + $0x34] sm:$0xf]
      %v2805 = vld [vmem:[%s3 + $0x38] sm:$0xf]
      %v2806 = vld [vmem:[%s3 + $0x3c] sm:$0xf]
      %v2807 = vld [vmem:[#allocation3 + $0x12] sm:$0xff]
      %v2808 = vld [vmem:[#allocation3 + $0x1a] sm:$0xff]
      %v2809 = vld [vmem:[#allocation3 + $0x22] sm:$0xff]
      %v2810 = vld [vmem:[#allocation3 + $0x2a] sm:$0xff]
      %v2811 = vld [vmem:[#allocation3 + $0x32] sm:$0xff]
      %v2812 = vld [vmem:[#allocation3 + $0x3a] sm:$0xff]
      %v2813 = vld [vmem:[#allocation3 + $0x42] sm:$0xff]
      %v2814 = vld [vmem:[#allocation3 + $0x4a] sm:$0xff]
      %v2815 = vld [vmem:[#allocation3 + $0x52] sm:$0xff]
      %v2816 = vld [vmem:[#allocation3 + $0x5a] sm:$0xff]
      %v2817 = vld [vmem:[#allocation3 + $0x62] sm:$0xff]
      %v2818 = vld [vmem:[#allocation3 + $0x6a] sm:$0xff]
      %v2819 = vld [vmem:[#allocation3 + $0x72] sm:$0xff]
      %v2820 = vld [vmem:[#allocation3 + $0x7a] sm:$0xff]
      %v2821 = vld [vmem:[#allocation3 + $0x82] sm:$0xff]
      %v2822 = vld [vmem:[#allocation3 + $0x8a] sm:$0xff]
      %v2823 = vld [vmem:[#allocation3 + $0x92] sm:$0xff]
      %v2824 = vld [vmem:[#allocation3 + $0x9a] sm:$0xff]
      %v2825 = vld [vmem:[#allocation3 + $0xa2] sm:$0xff]
      %v2826 = vld [vmem:[#allocation3 + $0xaa] sm:$0xff]
      %v2827 = vld [vmem:[#allocation3 + $0xb2] sm:$0xff]
      %v2828 = vld [vmem:[#allocation3 + $0xba] sm:$0xff]
      %v2829 = vld [vmem:[#allocation3 + $0xc2] sm:$0xff]
      %v2830 = vld [vmem:[#allocation3 + $0xca] sm:$0xff]
      %v2831 = vld [vmem:[#allocation3 + $0xd2] sm:$0xff]
      %v2832 = vld [vmem:[#allocation3 + $0xda] sm:$0xff]
      %v2833 = vld [vmem:[#allocation3 + $0xe2] sm:$0xff]
      %v2834 = vld [vmem:[#allocation3 + $0xea] sm:$0xff]
      %v2835 = vld [vmem:[#allocation3 + $0xf2] sm:$0xff]
      %v2836 = vld [vmem:[#allocation3 + $0xfa] sm:$0xff]
      %v2837 = vld [vmem:[#allocation3 + $0x102] sm:$0xff]
      %v2838 = vld [vmem:[#allocation3 + $0x10a] sm:$0xff]
      %v2839 = vld [vmem:[#allocation3 + $0x112] sm:$0xff]
      %v2840 = vld [vmem:[#allocation3 + $0x11a] sm:$0xff]
      %v2841 = vld [vmem:[#allocation3 + $0x122] sm:$0xff]
      %v2842 = vld [vmem:[#allocation3 + $0x12a] sm:$0xff]
      %v2843 = vpack.c.bf16 %v2808, %v2807
      %v2844 = vpack.c.bf16 %v2810, %v2809
      %v2845 = vpack.c.bf16 %v2812, %v2811
      %v2846 = vpack.c.bf16 %v2814, %v2813
      %v2847 = vpack.c.bf16 %v2816, %v2815
      %v2848 = vpack.c.bf16 %v2818, %v2817
      %v2849 = vpack.c.bf16 %v2820, %v2819
      %v2850 = vpack.c.bf16 %v2822, %v2821
      %v2851 = vpack.c.bf16 %v2824, %v2823
      %v2852 = vpack.c.bf16 %v2826, %v2825
      %v2853 = vpack.c.bf16 %v2828, %v2827
      %v2854 = vpack.c.bf16 %v2830, %v2829
      %v2855 = vpack.c.bf16 %v2832, %v2831
      %v2856 = vpack.c.bf16 %v2834, %v2833
      %v2857 = vpack.c.bf16 %v2836, %v2835
      %v2858 = vpack.c.bf16 %v2838, %v2837
      %v2859 = vpack.c.bf16 %v2840, %v2839
      %v2860 = vpack.c.bf16 %v2842, %v2841
      %s2861 = scalar_lea.vmem %s3, 64
      %v2862 = vld [vmem:[%s2861] sm:$0xf]
      %v2863 = vld [vmem:[%s2861 + $0x4] sm:$0xf]
      %v2864 = vld [vmem:[%s2861 + $0x8] sm:$0xf]
      %v2865 = vld [vmem:[%s2861 + $0xc] sm:$0xf]
      %v2866 = vld [vmem:[%s2861 + $0x10] sm:$0xf]
      %v2867 = vld [vmem:[%s2861 + $0x14] sm:$0xf]
      %v2868 = vld [vmem:[%s2861 + $0x18] sm:$0xf]
      %v2869 = vld [vmem:[%s2861 + $0x1c] sm:$0xf]
      %v2870 = vld [vmem:[%s2861 + $0x20] sm:$0xf]
      %v2871 = vld [vmem:[%s2861 + $0x24] sm:$0xf]
      %v2872 = vld [vmem:[%s2861 + $0x28] sm:$0xf]
      %v2873 = vld [vmem:[%s2861 + $0x2c] sm:$0xf]
      %v2874 = vld [vmem:[%s2861 + $0x30] sm:$0xf]
      %v2875 = vld [vmem:[%s2861 + $0x34] sm:$0xf]
      %v2876 = vld [vmem:[%s2861 + $0x38] sm:$0xf]
      %v2877 = vld [vmem:[%s2861 + $0x3c] sm:$0xf]
      %v2894 = vunpack.c.l.b16 %v2862
      %v2895 = vunpack.c.l.b16 %v2863
      %v2896 = vunpack.c.l.b16 %v2864
      %v2897 = vunpack.c.l.b16 %v2865
      %v2898 = vunpack.c.l.b16 %v2866
      %v2899 = vunpack.c.l.b16 %v2867
      %v2900 = vunpack.c.l.b16 %v2868
      %v2901 = vunpack.c.l.b16 %v2869
      %v2902 = vunpack.c.l.b16 %v2870
      %v2903 = vunpack.c.l.b16 %v2871
      %v2904 = vunpack.c.l.b16 %v2872
      %v2905 = vunpack.c.l.b16 %v2873
      %v2906 = vunpack.c.l.b16 %v2874
      %v2907 = vunpack.c.l.b16 %v2875
      %v2908 = vunpack.c.l.b16 %v2876
      %v2909 = vunpack.c.l.b16 %v2877
      %v2910 = vpack.c.b16 %v2895, %v2894
      %v2911 = vpack.c.b16 %v2897, %v2896
      %v2912 = vpack.c.b16 %v2899, %v2898
      %v2913 = vpack.c.b16 %v2901, %v2900
      %v2914 = vpack.c.b16 %v2903, %v2902
      %v2915 = vpack.c.b16 %v2905, %v2904
      %v2916 = vpack.c.b16 %v2907, %v2906
      %v2917 = vpack.c.b16 %v2909, %v2908
      %2926 = vmatprep.subr.bf16.mxu0 0
      %2927 = vmatpush1.bf16.msra.mxu0 %v2910
      %2928 = vmatprep.subr.bf16.mxu0 0
      %2929 = vmatpush1.bf16.msra.mxu0 %v2911
      %2930 = vmatprep.subr.bf16.mxu0 0
      %2931 = vmatpush1.bf16.msra.mxu0 %v2912
      %2932 = vmatprep.subr.bf16.mxu0 0
      %2933 = vmatpush1.bf16.msra.mxu0 %v2913
      %2934 = vmatprep.subr.bf16.mxu0 0
      %2935 = vmatpush1.bf16.msra.mxu0 %v2914
      %2936 = vmatprep.subr.bf16.mxu0 0
      %2937 = vmatpush1.bf16.msra.mxu0 %v2915
      %2938 = vmatprep.subr.bf16.mxu0 0
      %2939 = vmatpush1.bf16.msra.mxu0 %v2916
      %2940 = vmatprep.subr.bf16.mxu0 0
      %2941 = vmatpush1.bf16.msra.mxu0 %v2917
      %2942 = vmatprep.subr.bf16.mxu0 0
      %2943 = vmatpush1.bf16.msra.mxu0 0
      %2944 = vmatprep.subr.bf16.mxu0 0
      %2945 = vmatpush1.bf16.msra.mxu0 0
      %2946 = vmatprep.subr.bf16.mxu0 0
      %2947 = vmatpush1.bf16.msra.mxu0 0
      %2948 = vmatprep.subr.bf16.mxu0 0
      %2949 = vmatpush1.bf16.msra.mxu0 0
      %2950 = vmatprep.subr.bf16.mxu0 0
      %2951 = vmatpush1.bf16.msra.mxu0 0
      %2952 = vmatprep.subr.bf16.mxu0 0
      %2953 = vmatpush1.bf16.msra.mxu0 0
      %2954 = vmatprep.subr.bf16.mxu0 0
      %2955 = vmatpush1.bf16.msra.mxu0 0
      %2956 = vmatprep.subr.bf16.mxu0 0
      %2957 = vmatpush1.bf16.msra.mxu0 0
      %2958 = vmatprep.mubr.bf16.mxu0 0
      %2959 = vmatmul.mubr.bf16.gmra.mrb[0].mxu0 %v2843
      %v2960 = vpop.f32.mrb[0].mxu0
      %v2961 = vadd.f32 0.0, %v2960
      %v2962 = vpop.f32.mrb[0].mxu0
      %v2963 = vpop.f32.mrb[0].mxu0
      %v2964 = vadd.f32 0.0, %v2963
      %v2965 = vpop.f32.mrb[0].mxu0
      %2966 = vmatprep.mubr.bf16.mxu0 0
      %2967 = vmatmul.mubr.bf16.gmra.mrb[0].mxu0 %v2844
      %v2968 = vpop.f32.mrb[0].mxu0
      %v2969 = vadd.f32 0.0, %v2968
      %v2970 = vpop.f32.mrb[0].mxu0
      %v2971 = vpop.f32.mrb[0].mxu0
      %v2972 = vadd.f32 0.0, %v2971
      %v2973 = vpop.f32.mrb[0].mxu0
      %2974 = vmatprep.mubr.bf16.mxu0 0
      %2975 = vmatmul.mubr.bf16.gmra.mrb[0].mxu0 %v2845
      %v2976 = vpop.f32.mrb[0].mxu0
      %v2977 = vadd.f32 0.0, %v2976
      %v2978 = vpop.f32.mrb[0].mxu0
      %v2979 = vpop.f32.mrb[0].mxu0
      %v2980 = vadd.f32 0.0, %v2979
      %v2981 = vpop.f32.mrb[0].mxu0
      %2982 = vmatprep.mubr.bf16.mxu0 0
      %2983 = vmatmul.mubr.bf16.gmra.mrb[0].mxu0 %v2846
      %v2984 = vpop.f32.mrb[0].mxu0
      %v2985 = vadd.f32 0.0, %v2984
      %v2986 = vpop.f32.mrb[0].mxu0
      %v2987 = vpop.f32.mrb[0].mxu0
      %v2988 = vadd.f32 0.0, %v2987
      %v2989 = vpop.f32.mrb[0].mxu0
      %2990 = vmatprep.mubr.bf16.mxu0 0
      %2991 = vmatmul.mubr.bf16.gmra.mrb[0].mxu0 %v2847
      %v2992 = vpop.f32.mrb[0].mxu0
      %v2993 = vadd.f32 0.0, %v2992
      %v2994 = vpop.f32.mrb[0].mxu0
      %v2995 = vpop.f32.mrb[0].mxu0
      %v2996 = vadd.f32 0.0, %v2995
      %v2997 = vpop.f32.mrb[0].mxu0
      %2998 = vmatprep.mubr.bf16.mxu0 0
      %2999 = vmatmul.mubr.bf16.gmra.mrb[0].mxu0 %v2848
      %v3000 = vpop.f32.mrb[0].mxu0
      %v3001 = vadd.f32 0.0, %v3000
      %v3002 = vpop.f32.mrb[0].mxu0
      %v3003 = vpop.f32.mrb[0].mxu0
      %v3004 = vadd.f32 0.0, %v3003
      %v3005 = vpop.f32.mrb[0].mxu0
      %3006 = vmatprep.mubr.bf16.mxu0 0
      %3007 = vmatmul.mubr.bf16.gmra.mrb[0].mxu0 %v2849
      %v3008 = vpop.f32.mrb[0].mxu0
      %v3009 = vadd.f32 0.0, %v3008
      %v3010 = vpop.f32.mrb[0].mxu0
      %v3011 = vpop.f32.mrb[0].mxu0
      %v3012 = vadd.f32 0.0, %v3011
      %v3013 = vpop.f32.mrb[0].mxu0
      %3014 = vmatprep.mubr.bf16.mxu0 0
      %3015 = vmatmul.mubr.bf16.gmra.mrb[0].mxu0 %v2850
      %v3016 = vpop.f32.mrb[0].mxu0
      %v3017 = vadd.f32 0.0, %v3016
      %v3018 = vpop.f32.mrb[0].mxu0
      %v3019 = vpop.f32.mrb[0].mxu0
      %v3020 = vadd.f32 0.0, %v3019
      %v3021 = vpop.f32.mrb[0].mxu0
      %3022 = vmatprep.mubr.bf16.mxu0 0
      %3023 = vmatmul.mubr.bf16.gmra.mrb[0].mxu0 %v2851
      %v3024 = vpop.f32.mrb[0].mxu0
      %v3025 = vadd.f32 0.0, %v3024
      %v3026 = vpop.f32.mrb[0].mxu0
      %v3027 = vpop.f32.mrb[0].mxu0
      %v3028 = vadd.f32 0.0, %v3027
      %v3029 = vpop.f32.mrb[0].mxu0
      %3030 = vmatprep.mubr.bf16.mxu0 0
      %3031 = vmatmul.mubr.bf16.gmra.mrb[0].mxu0 %v2852
      %v3032 = vpop.f32.mrb[0].mxu0
      %v3033 = vadd.f32 0.0, %v3032
      %v3034 = vpop.f32.mrb[0].mxu0
      %v3035 = vpop.f32.mrb[0].mxu0
      %v3036 = vadd.f32 0.0, %v3035
      %v3037 = vpop.f32.mrb[0].mxu0
      %3038 = vmatprep.mubr.bf16.mxu0 0
      %3039 = vmatmul.mubr.bf16.gmra.mrb[0].mxu0 %v2853
      %v3040 = vpop.f32.mrb[0].mxu0
      %v3041 = vadd.f32 0.0, %v3040
      %v3042 = vpop.f32.mrb[0].mxu0
      %v3043 = vpop.f32.mrb[0].mxu0
      %v3044 = vadd.f32 0.0, %v3043
      %v3045 = vpop.f32.mrb[0].mxu0
      %3046 = vmatprep.mubr.bf16.mxu0 0
      %3047 = vmatmul.mubr.bf16.gmra.mrb[0].mxu0 %v2854
      %v3048 = vpop.f32.mrb[0].mxu0
      %v3049 = vadd.f32 0.0, %v3048
      %v3050 = vpop.f32.mrb[0].mxu0
      %v3051 = vpop.f32.mrb[0].mxu0
      %v3052 = vadd.f32 0.0, %v3051
      %v3053 = vpop.f32.mrb[0].mxu0
      %3054 = vmatprep.mubr.bf16.mxu0 0
      %3055 = vmatmul.mubr.bf16.gmra.mrb[0].mxu0 %v2855
      %v3056 = vpop.f32.mrb[0].mxu0
      %v3057 = vadd.f32 0.0, %v3056
      %v3058 = vpop.f32.mrb[0].mxu0
      %v3059 = vpop.f32.mrb[0].mxu0
      %v3060 = vadd.f32 0.0, %v3059
      %v3061 = vpop.f32.mrb[0].mxu0
      %3062 = vmatprep.mubr.bf16.mxu0 0
      %3063 = vmatmul.mubr.bf16.gmra.mrb[0].mxu0 %v2856
      %v3064 = vpop.f32.mrb[0].mxu0
      %v3065 = vadd.f32 0.0, %v3064
      %v3066 = vpop.f32.mrb[0].mxu0
      %v3067 = vpop.f32.mrb[0].mxu0
      %v3068 = vadd.f32 0.0, %v3067
      %v3069 = vpop.f32.mrb[0].mxu0
      %3070 = vmatprep.mubr.bf16.mxu0 0
      %3071 = vmatmul.mubr.bf16.gmra.mrb[0].mxu0 %v2857
      %v3072 = vpop.f32.mrb[0].mxu0
      %v3073 = vadd.f32 0.0, %v3072
      %v3074 = vpop.f32.mrb[0].mxu0
      %v3075 = vpop.f32.mrb[0].mxu0
      %v3076 = vadd.f32 0.0, %v3075
      %v3077 = vpop.f32.mrb[0].mxu0
      %3078 = vmatprep.mubr.bf16.mxu0 0
      %3079 = vmatmul.mubr.bf16.gmra.mrb[0].mxu0 %v2858
      %v3080 = vpop.f32.mrb[0].mxu0
      %v3081 = vadd.f32 0.0, %v3080
      %v3082 = vpop.f32.mrb[0].mxu0
      %v3083 = vpop.f32.mrb[0].mxu0
      %v3084 = vadd.f32 0.0, %v3083
      %v3085 = vpop.f32.mrb[0].mxu0
      %3086 = vmatprep.mubr.bf16.mxu0 0
      %3087 = vmatmul.mubr.bf16.gmra.mrb[0].mxu0 %v2859
      %v3088 = vpop.f32.mrb[0].mxu0
      %v3089 = vadd.f32 0.0, %v3088
      %v3090 = vpop.f32.mrb[0].mxu0
      %v3091 = vpop.f32.mrb[0].mxu0
      %v3092 = vadd.f32 0.0, %v3091
      %v3093 = vpop.f32.mrb[0].mxu0
      %3094 = vmatprep.mubr.bf16.mxu0 0
      %3095 = vmatmul.mubr.bf16.gmra.mrb[0].mxu0 %v2860
      %v3096 = vpop.f32.mrb[0].mxu0
      %v3097 = vadd.f32 0.0, %v3096
      %v3098 = vpop.f32.mrb[0].mxu0
      %v3099 = vpop.f32.mrb[0].mxu0
      %v3100 = vadd.f32 0.0, %v3099
      %v3101 = vpop.f32.mrb[0].mxu0
      %3102 = vdwg.mxu0
      %v3119 = vunpack.c.l.b16 %v2791
      %v3120 = vunpack.c.l.b16 %v2792
      %v3121 = vunpack.c.l.b16 %v2793
      %v3122 = vunpack.c.l.b16 %v2794
      %v3123 = vunpack.c.l.b16 %v2795
      %v3124 = vunpack.c.l.b16 %v2796
      %v3125 = vunpack.c.l.b16 %v2797
      %v3126 = vunpack.c.l.b16 %v2798
      %v3127 = vunpack.c.l.b16 %v2799
      %v3128 = vunpack.c.l.b16 %v2800
      %v3129 = vunpack.c.l.b16 %v2801
      %v3130 = vunpack.c.l.b16 %v2802
      %v3131 = vunpack.c.l.b16 %v2803
      %v3132 = vunpack.c.l.b16 %v2804
      %v3133 = vunpack.c.l.b16 %v2805
      %v3134 = vunpack.c.l.b16 %v2806
      %v3135 = vpack.c.b16 %v3120, %v3119
      %v3136 = vpack.c.b16 %v3122, %v3121
      %v3137 = vpack.c.b16 %v3124, %v3123
      %v3138 = vpack.c.b16 %v3126, %v3125
      %v3139 = vpack.c.b16 %v3128, %v3127
      %v3140 = vpack.c.b16 %v3130, %v3129
      %v3141 = vpack.c.b16 %v3132, %v3131
      %v3142 = vpack.c.b16 %v3134, %v3133
      %3151 = vmatprep.subr.bf16.mxu0 0
      %3152 = vmatpush1.bf16.msra.mxu0 %v3135
      %3153 = vmatprep.subr.bf16.mxu0 0
      %3154 = vmatpush1.bf16.msra.mxu0 %v3136
      %3155 = vmatprep.subr.bf16.mxu0 0
      %3156 = vmatpush1.bf16.msra.mxu0 %v3137
      %3157 = vmatprep.subr.bf16.mxu0 0
      %3158 = vmatpush1.bf16.msra.mxu0 %v3138
      %3159 = vmatprep.subr.bf16.mxu0 0
      %3160 = vmatpush1.bf16.msra.mxu0 %v3139
      %3161 = vmatprep.subr.bf16.mxu0 0
      %3162 = vmatpush1.bf16.msra.mxu0 %v3140
      %3163 = vmatprep.subr.bf16.mxu0 0
      %3164 = vmatpush1.bf16.msra.mxu0 %v3141
      %3165 = vmatprep.subr.bf16.mxu0 0
      %3166 = vmatpush1.bf16.msra.mxu0 %v3142
      %3167 = vmatprep.subr.bf16.mxu0 0
      %3168 = vmatpush1.bf16.msra.mxu0 0
      %3169 = vmatprep.subr.bf16.mxu0 0
      %3170 = vmatpush1.bf16.msra.mxu0 0
      %3171 = vmatprep.subr.bf16.mxu0 0
      %3172 = vmatpush1.bf16.msra.mxu0 0
      %3173 = vmatprep.subr.bf16.mxu0 0
      %3174 = vmatpush1.bf16.msra.mxu0 0
      %3175 = vmatprep.subr.bf16.mxu0 0
      %3176 = vmatpush1.bf16.msra.mxu0 0
      %3177 = vmatprep.subr.bf16.mxu0 0
      %3178 = vmatpush1.bf16.msra.mxu0 0
      %3179 = vmatprep.subr.bf16.mxu0 0
      %3180 = vmatpush1.bf16.msra.mxu0 0
      %3181 = vmatprep.subr.bf16.mxu0 0
      %3182 = vmatpush1.bf16.msra.mxu0 0
      %3183 = vmatprep.mubr.bf16.mxu0 0
      %3184 = vmatmul.mubr.bf16.gmra.mrb[0].mxu0 %v2773
      %v3185 = vpop.f32.mrb[0].mxu0
      %v3186 = vadd.f32 %v2961, %v3185
      %v3187 = vpop.f32.mrb[0].mxu0
      %v3188 = vpop.f32.mrb[0].mxu0
      %v3189 = vadd.f32 %v2964, %v3188
      %v3190 = vpop.f32.mrb[0].mxu0
      %3191 = vmatprep.mubr.bf16.mxu0 0
      %3192 = vmatmul.mubr.bf16.gmra.mrb[0].mxu0 %v2774
      %v3193 = vpop.f32.mrb[0].mxu0
      %v3194 = vadd.f32 %v2969, %v3193
      %v3195 = vpop.f32.mrb[0].mxu0
      %v3196 = vpop.f32.mrb[0].mxu0
      %v3197 = vadd.f32 %v2972, %v3196
      %v3198 = vpop.f32.mrb[0].mxu0
      %3199 = vmatprep.mubr.bf16.mxu0 0
      %3200 = vmatmul.mubr.bf16.gmra.mrb[0].mxu0 %v2775
      %v3201 = vpop.f32.mrb[0].mxu0
      %v3202 = vadd.f32 %v2977, %v3201
      %v3203 = vpop.f32.mrb[0].mxu0
      %v3204 = vpop.f32.mrb[0].mxu0
      %v3205 = vadd.f32 %v2980, %v3204
      %v3206 = vpop.f32.mrb[0].mxu0
      %3207 = vmatprep.mubr.bf16.mxu0 0
      %3208 = vmatmul.mubr.bf16.gmra.mrb[0].mxu0 %v2776
      %v3209 = vpop.f32.mrb[0].mxu0
      %v3210 = vadd.f32 %v2985, %v3209
      %v3211 = vpop.f32.mrb[0].mxu0
      %v3212 = vpop.f32.mrb[0].mxu0
      %v3213 = vadd.f32 %v2988, %v3212
      %v3214 = vpop.f32.mrb[0].mxu0
      %3215 = vmatprep.mubr.bf16.mxu0 0
      %3216 = vmatmul.mubr.bf16.gmra.mrb[0].mxu0 %v2777
      %v3217 = vpop.f32.mrb[0].mxu0
      %v3218 = vadd.f32 %v2993, %v3217
      %v3219 = vpop.f32.mrb[0].mxu0
      %v3220 = vpop.f32.mrb[0].mxu0
      %v3221 = vadd.f32 %v2996, %v3220
      %v3222 = vpop.f32.mrb[0].mxu0
      %3223 = vmatprep.mubr.bf16.mxu0 0
      %3224 = vmatmul.mubr.bf16.gmra.mrb[0].mxu0 %v2778
      %v3225 = vpop.f32.mrb[0].mxu0
      %v3226 = vadd.f32 %v3001, %v3225
      %v3227 = vpop.f32.mrb[0].mxu0
      %v3228 = vpop.f32.mrb[0].mxu0
      %v3229 = vadd.f32 %v3004, %v3228
      %v3230 = vpop.f32.mrb[0].mxu0
      %3231 = vmatprep.mubr.bf16.mxu0 0
      %3232 = vmatmul.mubr.bf16.gmra.mrb[0].mxu0 %v2779
      %v3233 = vpop.f32.mrb[0].mxu0
      %v3234 = vadd.f32 %v3009, %v3233
      %v3235 = vpop.f32.mrb[0].mxu0
      %v3236 = vpop.f32.mrb[0].mxu0
      %v3237 = vadd.f32 %v3012, %v3236
      %v3238 = vpop.f32.mrb[0].mxu0
      %3239 = vmatprep.mubr.bf16.mxu0 0
      %3240 = vmatmul.mubr.bf16.gmra.mrb[0].mxu0 %v2780
      %v3241 = vpop.f32.mrb[0].mxu0
      %v3242 = vadd.f32 %v3017, %v3241
      %v3243 = vpop.f32.mrb[0].mxu0
      %v3244 = vpop.f32.mrb[0].mxu0
      %v3245 = vadd.f32 %v3020, %v3244
      %v3246 = vpop.f32.mrb[0].mxu0
      %3247 = vmatprep.mubr.bf16.mxu0 0
      %3248 = vmatmul.mubr.bf16.gmra.mrb[0].mxu0 %v2781
      %v3249 = vpop.f32.mrb[0].mxu0
      %v3250 = vadd.f32 %v3025, %v3249
      %v3251 = vpop.f32.mrb[0].mxu0
      %v3252 = vpop.f32.mrb[0].mxu0
      %v3253 = vadd.f32 %v3028, %v3252
      %v3254 = vpop.f32.mrb[0].mxu0
      %3255 = vmatprep.mubr.bf16.mxu0 0
      %3256 = vmatmul.mubr.bf16.gmra.mrb[0].mxu0 %v2782
      %v3257 = vpop.f32.mrb[0].mxu0
      %v3258 = vadd.f32 %v3033, %v3257
      %v3259 = vpop.f32.mrb[0].mxu0
      %v3260 = vpop.f32.mrb[0].mxu0
      %v3261 = vadd.f32 %v3036, %v3260
      %v3262 = vpop.f32.mrb[0].mxu0
      %3263 = vmatprep.mubr.bf16.mxu0 0
      %3264 = vmatmul.mubr.bf16.gmra.mrb[0].mxu0 %v2783
      %v3265 = vpop.f32.mrb[0].mxu0
      %v3266 = vadd.f32 %v3041, %v3265
      %v3267 = vpop.f32.mrb[0].mxu0
      %v3268 = vpop.f32.mrb[0].mxu0
      %v3269 = vadd.f32 %v3044, %v3268
      %v3270 = vpop.f32.mrb[0].mxu0
      %3271 = vmatprep.mubr.bf16.mxu0 0
      %3272 = vmatmul.mubr.bf16.gmra.mrb[0].mxu0 %v2784
      %v3273 = vpop.f32.mrb[0].mxu0
      %v3274 = vadd.f32 %v3049, %v3273
      %v3275 = vpop.f32.mrb[0].mxu0
      %v3276 = vpop.f32.mrb[0].mxu0
      %v3277 = vadd.f32 %v3052, %v3276
      %v3278 = vpop.f32.mrb[0].mxu0
      %3279 = vmatprep.mubr.bf16.mxu0 0
      %3280 = vmatmul.mubr.bf16.gmra.mrb[0].mxu0 %v2785
      %v3281 = vpop.f32.mrb[0].mxu0
      %v3282 = vadd.f32 %v3057, %v3281
      %v3283 = vpop.f32.mrb[0].mxu0
      %v3284 = vpop.f32.mrb[0].mxu0
      %v3285 = vadd.f32 %v3060, %v3284
      %v3286 = vpop.f32.mrb[0].mxu0
      %3287 = vmatprep.mubr.bf16.mxu0 0
      %3288 = vmatmul.mubr.bf16.gmra.mrb[0].mxu0 %v2786
      %v3289 = vpop.f32.mrb[0].mxu0
      %v3290 = vadd.f32 %v3065, %v3289
      %v3291 = vpop.f32.mrb[0].mxu0
      %v3292 = vpop.f32.mrb[0].mxu0
      %v3293 = vadd.f32 %v3068, %v3292
      %v3294 = vpop.f32.mrb[0].mxu0
      %3295 = vmatprep.mubr.bf16.mxu0 0
      %3296 = vmatmul.mubr.bf16.gmra.mrb[0].mxu0 %v2787
      %v3297 = vpop.f32.mrb[0].mxu0
      %v3298 = vadd.f32 %v3073, %v3297
      %v3299 = vpop.f32.mrb[0].mxu0
      %v3300 = vpop.f32.mrb[0].mxu0
      %v3301 = vadd.f32 %v3076, %v3300
      %v3302 = vpop.f32.mrb[0].mxu0
      %3303 = vmatprep.mubr.bf16.mxu0 0
      %3304 = vmatmul.mubr.bf16.gmra.mrb[0].mxu0 %v2788
      %v3305 = vpop.f32.mrb[0].mxu0
      %v3306 = vadd.f32 %v3081, %v3305
      %v3307 = vpop.f32.mrb[0].mxu0
      %v3308 = vpop.f32.mrb[0].mxu0
      %v3309 = vadd.f32 %v3084, %v3308
      %v3310 = vpop.f32.mrb[0].mxu0
      %3311 = vmatprep.mubr.bf16.mxu0 0
      %3312 = vmatmul.mubr.bf16.gmra.mrb[0].mxu0 %v2789
      %v3313 = vpop.f32.mrb[0].mxu0
      %v3314 = vadd.f32 %v3089, %v3313
      %v3315 = vpop.f32.mrb[0].mxu0
      %v3316 = vpop.f32.mrb[0].mxu0
      %v3317 = vadd.f32 %v3092, %v3316
      %v3318 = vpop.f32.mrb[0].mxu0
      %3319 = vmatprep.mubr.bf16.mxu0 0
      %3320 = vmatmul.mubr.bf16.gmra.mrb[0].mxu0 %v2790
      %v3321 = vpop.f32.mrb[0].mxu0
      %v3322 = vadd.f32 %v3097, %v3321
      %v3323 = vpop.f32.mrb[0].mxu0
      %v3324 = vpop.f32.mrb[0].mxu0
      %v3325 = vadd.f32 %v3100, %v3324
      %v3326 = vpop.f32.mrb[0].mxu0
      %3327 = vdwg.mxu0
      %v3328 = vld [vmem:[#allocation3 + $0x24] sm:$0xff]
      %v3329 = vld [vmem:[#allocation3 + $0x2c] sm:$0xff]
      %v3330 = vld [vmem:[#allocation3 + $0x34] sm:$0xff]
      %v3331 = vld [vmem:[#allocation3 + $0x3c] sm:$0xff]
      %v3332 = vld [vmem:[#allocation3 + $0x44] sm:$0xff]
      %v3333 = vld [vmem:[#allocation3 + $0x4c] sm:$0xff]
      %v3334 = vld [vmem:[#allocation3 + $0x54] sm:$0xff]
      %v3335 = vld [vmem:[#allocation3 + $0x5c] sm:$0xff]
      %v3336 = vld [vmem:[#allocation3 + $0x64] sm:$0xff]
      %v3337 = vld [vmem:[#allocation3 + $0x6c] sm:$0xff]
      %v3338 = vld [vmem:[#allocation3 + $0x74] sm:$0xff]
      %v3339 = vld [vmem:[#allocation3 + $0x7c] sm:$0xff]
      %v3340 = vld [vmem:[#allocation3 + $0x84] sm:$0xff]
      %v3341 = vld [vmem:[#allocation3 + $0x8c] sm:$0xff]
      %v3342 = vld [vmem:[#allocation3 + $0x94] sm:$0xff]
      %v3343 = vld [vmem:[#allocation3 + $0x9c] sm:$0xff]
      %v3344 = vld [vmem:[#allocation3 + $0xa4] sm:$0xff]
      %v3345 = vld [vmem:[#allocation3 + $0xac] sm:$0xff]
      %v3346 = vld [vmem:[#allocation3 + $0xb4] sm:$0xff]
      %v3347 = vld [vmem:[#allocation3 + $0xbc] sm:$0xff]
      %v3348 = vld [vmem:[#allocation3 + $0xc4] sm:$0xff]
      %v3349 = vld [vmem:[#allocation3 + $0xcc] sm:$0xff]
      %v3350 = vld [vmem:[#allocation3 + $0xd4] sm:$0xff]
      %v3351 = vld [vmem:[#allocation3 + $0xdc] sm:$0xff]
      %v3352 = vld [vmem:[#allocation3 + $0xe4] sm:$0xff]
      %v3353 = vld [vmem:[#allocation3 + $0xec] sm:$0xff]
      %v3354 = vld [vmem:[#allocation3 + $0xf4] sm:$0xff]
      %v3355 = vld [vmem:[#allocation3 + $0xfc] sm:$0xff]
      %v3356 = vld [vmem:[#allocation3 + $0x104] sm:$0xff]
      %v3357 = vld [vmem:[#allocation3 + $0x10c] sm:$0xff]
      %v3358 = vld [vmem:[#allocation3 + $0x114] sm:$0xff]
      %v3359 = vld [vmem:[#allocation3 + $0x11c] sm:$0xff]
      %v3360 = vld [vmem:[#allocation3 + $0x124] sm:$0xff]
      %v3361 = vld [vmem:[#allocation3 + $0x12c] sm:$0xff]
      %v3362 = vld [vmem:[#allocation3 + $0x134] sm:$0xff]
      %v3363 = vld [vmem:[#allocation3 + $0x13c] sm:$0xff]
      %v3364 = vpack.c.bf16 %v3329, %v3328
      %v3365 = vpack.c.bf16 %v3331, %v3330
      %v3366 = vpack.c.bf16 %v3333, %v3332
      %v3367 = vpack.c.bf16 %v3335, %v3334
      %v3368 = vpack.c.bf16 %v3337, %v3336
      %v3369 = vpack.c.bf16 %v3339, %v3338
      %v3370 = vpack.c.bf16 %v3341, %v3340
      %v3371 = vpack.c.bf16 %v3343, %v3342
      %v3372 = vpack.c.bf16 %v3345, %v3344
      %v3373 = vpack.c.bf16 %v3347, %v3346
      %v3374 = vpack.c.bf16 %v3349, %v3348
      %v3375 = vpack.c.bf16 %v3351, %v3350
      %v3376 = vpack.c.bf16 %v3353, %v3352
      %v3377 = vpack.c.bf16 %v3355, %v3354
      %v3378 = vpack.c.bf16 %v3357, %v3356
      %v3379 = vpack.c.bf16 %v3359, %v3358
      %v3380 = vpack.c.bf16 %v3361, %v3360
      %v3381 = vpack.c.bf16 %v3363, %v3362
      %s3382 = scalar_lea.vmem %s3, 128
      %v3383 = vld [vmem:[%s3382] sm:$0xf]
      %v3384 = vld [vmem:[%s3382 + $0x4] sm:$0xf]
      %v3385 = vld [vmem:[%s3382 + $0x8] sm:$0xf]
      %v3386 = vld [vmem:[%s3382 + $0xc] sm:$0xf]
      %v3387 = vld [vmem:[%s3382 + $0x10] sm:$0xf]
      %v3388 = vld [vmem:[%s3382 + $0x14] sm:$0xf]
      %v3389 = vld [vmem:[%s3382 + $0x18] sm:$0xf]
      %v3390 = vld [vmem:[%s3382 + $0x1c] sm:$0xf]
      %v3391 = vld [vmem:[%s3382 + $0x20] sm:$0xf]
      %v3392 = vld [vmem:[%s3382 + $0x24] sm:$0xf]
      %v3393 = vld [vmem:[%s3382 + $0x28] sm:$0xf]
      %v3394 = vld [vmem:[%s3382 + $0x2c] sm:$0xf]
      %v3395 = vld [vmem:[%s3382 + $0x30] sm:$0xf]
      %v3396 = vld [vmem:[%s3382 + $0x34] sm:$0xf]
      %v3397 = vld [vmem:[%s3382 + $0x38] sm:$0xf]
      %v3398 = vld [vmem:[%s3382 + $0x3c] sm:$0xf]
      %v3415 = vunpack.c.l.b16 %v3383
      %v3416 = vunpack.c.l.b16 %v3384
      %v3417 = vunpack.c.l.b16 %v3385
      %v3418 = vunpack.c.l.b16 %v3386
      %v3419 = vunpack.c.l.b16 %v3387
      %v3420 = vunpack.c.l.b16 %v3388
      %v3421 = vunpack.c.l.b16 %v3389
      %v3422 = vunpack.c.l.b16 %v3390
      %v3423 = vunpack.c.l.b16 %v3391
      %v3424 = vunpack.c.l.b16 %v3392
      %v3425 = vunpack.c.l.b16 %v3393
      %v3426 = vunpack.c.l.b16 %v3394
      %v3427 = vunpack.c.l.b16 %v3395
      %v3428 = vunpack.c.l.b16 %v3396
      %v3429 = vunpack.c.l.b16 %v3397
      %v3430 = vunpack.c.l.b16 %v3398
      %v3431 = vpack.c.b16 %v3416, %v3415
      %v3432 = vpack.c.b16 %v3418, %v3417
      %v3433 = vpack.c.b16 %v3420, %v3419
      %v3434 = vpack.c.b16 %v3422, %v3421
      %v3435 = vpack.c.b16 %v3424, %v3423
      %v3436 = vpack.c.b16 %v3426, %v3425
      %v3437 = vpack.c.b16 %v3428, %v3427
      %v3438 = vpack.c.b16 %v3430, %v3429
      %3447 = vmatprep.subr.bf16.mxu0 0
      %3448 = vmatpush1.bf16.msra.mxu0 %v3431
      %3449 = vmatprep.subr.bf16.mxu0 0
      %3450 = vmatpush1.bf16.msra.mxu0 %v3432
      %3451 = vmatprep.subr.bf16.mxu0 0
      %3452 = vmatpush1.bf16.msra.mxu0 %v3433
      %3453 = vmatprep.subr.bf16.mxu0 0
      %3454 = vmatpush1.bf16.msra.mxu0 %v3434
      %3455 = vmatprep.subr.bf16.mxu0 0
      %3456 = vmatpush1.bf16.msra.mxu0 %v3435
      %3457 = vmatprep.subr.bf16.mxu0 0
      %3458 = vmatpush1.bf16.msra.mxu0 %v3436
      %3459 = vmatprep.subr.bf16.mxu0 0
      %3460 = vmatpush1.bf16.msra.mxu0 %v3437
      %3461 = vmatprep.subr.bf16.mxu0 0
      %3462 = vmatpush1.bf16.msra.mxu0 %v3438
      %3463 = vmatprep.subr.bf16.mxu0 0
      %3464 = vmatpush1.bf16.msra.mxu0 0
      %3465 = vmatprep.subr.bf16.mxu0 0
      %3466 = vmatpush1.bf16.msra.mxu0 0
      %3467 = vmatprep.subr.bf16.mxu0 0
      %3468 = vmatpush1.bf16.msra.mxu0 0
      %3469 = vmatprep.subr.bf16.mxu0 0
      %3470 = vmatpush1.bf16.msra.mxu0 0
      %3471 = vmatprep.subr.bf16.mxu0 0
      %3472 = vmatpush1.bf16.msra.mxu0 0
      %3473 = vmatprep.subr.bf16.mxu0 0
      %3474 = vmatpush1.bf16.msra.mxu0 0
      %3475 = vmatprep.subr.bf16.mxu0 0
      %3476 = vmatpush1.bf16.msra.mxu0 0
      %3477 = vmatprep.subr.bf16.mxu0 0
      %3478 = vmatpush1.bf16.msra.mxu0 0
      %3479 = vmatprep.mubr.bf16.mxu0 0
      %3480 = vmatmul.mubr.bf16.gmra.mrb[0].mxu0 %v3364
      %v3481 = vpop.f32.mrb[0].mxu0
      %v3482 = vadd.f32 0.0, %v3481
      %v3483 = vpop.f32.mrb[0].mxu0
      %v3484 = vpop.f32.mrb[0].mxu0
      %v3485 = vadd.f32 0.0, %v3484
      %v3486 = vpop.f32.mrb[0].mxu0
      %3487 = vmatprep.mubr.bf16.mxu0 0
      %3488 = vmatmul.mubr.bf16.gmra.mrb[0].mxu0 %v3365
      %v3489 = vpop.f32.mrb[0].mxu0
      %v3490 = vadd.f32 0.0, %v3489
      %v3491 = vpop.f32.mrb[0].mxu0
      %v3492 = vpop.f32.mrb[0].mxu0
      %v3493 = vadd.f32 0.0, %v3492
      %v3494 = vpop.f32.mrb[0].mxu0
      %3495 = vmatprep.mubr.bf16.mxu0 0
      %3496 = vmatmul.mubr.bf16.gmra.mrb[0].mxu0 %v3366
      %v3497 = vpop.f32.mrb[0].mxu0
      %v3498 = vadd.f32 0.0, %v3497
      %v3499 = vpop.f32.mrb[0].mxu0
      %v3500 = vpop.f32.mrb[0].mxu0
      %v3501 = vadd.f32 0.0, %v3500
      %v3502 = vpop.f32.mrb[0].mxu0
      %3503 = vmatprep.mubr.bf16.mxu0 0
      %3504 = vmatmul.mubr.bf16.gmra.mrb[0].mxu0 %v3367
      %v3505 = vpop.f32.mrb[0].mxu0
      %v3506 = vadd.f32 0.0, %v3505
      %v3507 = vpop.f32.mrb[0].mxu0
      %v3508 = vpop.f32.mrb[0].mxu0
      %v3509 = vadd.f32 0.0, %v3508
      %v3510 = vpop.f32.mrb[0].mxu0
      %3511 = vmatprep.mubr.bf16.mxu0 0
      %3512 = vmatmul.mubr.bf16.gmra.mrb[0].mxu0 %v3368
      %v3513 = vpop.f32.mrb[0].mxu0
      %v3514 = vadd.f32 0.0, %v3513
      %v3515 = vpop.f32.mrb[0].mxu0
      %v3516 = vpop.f32.mrb[0].mxu0
      %v3517 = vadd.f32 0.0, %v3516
      %v3518 = vpop.f32.mrb[0].mxu0
      %3519 = vmatprep.mubr.bf16.mxu0 0
      %3520 = vmatmul.mubr.bf16.gmra.mrb[0].mxu0 %v3369
      %v3521 = vpop.f32.mrb[0].mxu0
      %v3522 = vadd.f32 0.0, %v3521
      %v3523 = vpop.f32.mrb[0].mxu0
      %v3524 = vpop.f32.mrb[0].mxu0
      %v3525 = vadd.f32 0.0, %v3524
      %v3526 = vpop.f32.mrb[0].mxu0
      %3527 = vmatprep.mubr.bf16.mxu0 0
      %3528 = vmatmul.mubr.bf16.gmra.mrb[0].mxu0 %v3370
      %v3529 = vpop.f32.mrb[0].mxu0
      %v3530 = vadd.f32 0.0, %v3529
      %v3531 = vpop.f32.mrb[0].mxu0
      %v3532 = vpop.f32.mrb[0].mxu0
      %v3533 = vadd.f32 0.0, %v3532
      %v3534 = vpop.f32.mrb[0].mxu0
      %3535 = vmatprep.mubr.bf16.mxu0 0
      %3536 = vmatmul.mubr.bf16.gmra.mrb[0].mxu0 %v3371
      %v3537 = vpop.f32.mrb[0].mxu0
      %v3538 = vadd.f32 0.0, %v3537
      %v3539 = vpop.f32.mrb[0].mxu0
      %v3540 = vpop.f32.mrb[0].mxu0
      %v3541 = vadd.f32 0.0, %v3540
      %v3542 = vpop.f32.mrb[0].mxu0
      %3543 = vmatprep.mubr.bf16.mxu0 0
      %3544 = vmatmul.mubr.bf16.gmra.mrb[0].mxu0 %v3372
      %v3545 = vpop.f32.mrb[0].mxu0
      %v3546 = vadd.f32 0.0, %v3545
      %v3547 = vpop.f32.mrb[0].mxu0
      %v3548 = vpop.f32.mrb[0].mxu0
      %v3549 = vadd.f32 0.0, %v3548
      %v3550 = vpop.f32.mrb[0].mxu0
      %3551 = vmatprep.mubr.bf16.mxu0 0
      %3552 = vmatmul.mubr.bf16.gmra.mrb[0].mxu0 %v3373
      %v3553 = vpop.f32.mrb[0].mxu0
      %v3554 = vadd.f32 0.0, %v3553
      %v3555 = vpop.f32.mrb[0].mxu0
      %v3556 = vpop.f32.mrb[0].mxu0
      %v3557 = vadd.f32 0.0, %v3556
      %v3558 = vpop.f32.mrb[0].mxu0
      %3559 = vmatprep.mubr.bf16.mxu0 0
      %3560 = vmatmul.mubr.bf16.gmra.mrb[0].mxu0 %v3374
      %v3561 = vpop.f32.mrb[0].mxu0
      %v3562 = vadd.f32 0.0, %v3561
      %v3563 = vpop.f32.mrb[0].mxu0
      %v3564 = vpop.f32.mrb[0].mxu0
      %v3565 = vadd.f32 0.0, %v3564
      %v3566 = vpop.f32.mrb[0].mxu0
      %3567 = vmatprep.mubr.bf16.mxu0 0
      %3568 = vmatmul.mubr.bf16.gmra.mrb[0].mxu0 %v3375
      %v3569 = vpop.f32.mrb[0].mxu0
      %v3570 = vadd.f32 0.0, %v3569
      %v3571 = vpop.f32.mrb[0].mxu0
      %v3572 = vpop.f32.mrb[0].mxu0
      %v3573 = vadd.f32 0.0, %v3572
      %v3574 = vpop.f32.mrb[0].mxu0
      %3575 = vmatprep.mubr.bf16.mxu0 0
      %3576 = vmatmul.mubr.bf16.gmra.mrb[0].mxu0 %v3376
      %v3577 = vpop.f32.mrb[0].mxu0
      %v3578 = vadd.f32 0.0, %v3577
      %v3579 = vpop.f32.mrb[0].mxu0
      %v3580 = vpop.f32.mrb[0].mxu0
      %v3581 = vadd.f32 0.0, %v3580
      %v3582 = vpop.f32.mrb[0].mxu0
      %3583 = vmatprep.mubr.bf16.mxu0 0
      %3584 = vmatmul.mubr.bf16.gmra.mrb[0].mxu0 %v3377
      %v3585 = vpop.f32.mrb[0].mxu0
      %v3586 = vadd.f32 0.0, %v3585
      %v3587 = vpop.f32.mrb[0].mxu0
      %v3588 = vpop.f32.mrb[0].mxu0
      %v3589 = vadd.f32 0.0, %v3588
      %v3590 = vpop.f32.mrb[0].mxu0
      %3591 = vmatprep.mubr.bf16.mxu0 0
      %3592 = vmatmul.mubr.bf16.gmra.mrb[0].mxu0 %v3378
      %v3593 = vpop.f32.mrb[0].mxu0
      %v3594 = vadd.f32 0.0, %v3593
      %v3595 = vpop.f32.mrb[0].mxu0
      %v3596 = vpop.f32.mrb[0].mxu0
      %v3597 = vadd.f32 0.0, %v3596
      %v3598 = vpop.f32.mrb[0].mxu0
      %3599 = vmatprep.mubr.bf16.mxu0 0
      %3600 = vmatmul.mubr.bf16.gmra.mrb[0].mxu0 %v3379
      %v3601 = vpop.f32.mrb[0].mxu0
      %v3602 = vadd.f32 0.0, %v3601
      %v3603 = vpop.f32.mrb[0].mxu0
      %v3604 = vpop.f32.mrb[0].mxu0
      %v3605 = vadd.f32 0.0, %v3604
      %v3606 = vpop.f32.mrb[0].mxu0
      %3607 = vmatprep.mubr.bf16.mxu0 0
      %3608 = vmatmul.mubr.bf16.gmra.mrb[0].mxu0 %v3380
      %v3609 = vpop.f32.mrb[0].mxu0
      %v3610 = vadd.f32 0.0, %v3609
      %v3611 = vpop.f32.mrb[0].mxu0
      %v3612 = vpop.f32.mrb[0].mxu0
      %v3613 = vadd.f32 0.0, %v3612
      %v3614 = vpop.f32.mrb[0].mxu0
      %3615 = vmatprep.mubr.bf16.mxu0 0
      %3616 = vmatmul.mubr.bf16.gmra.mrb[0].mxu0 %v3381
      %v3617 = vpop.f32.mrb[0].mxu0
      %v3618 = vadd.f32 0.0, %v3617
      %v3619 = vpop.f32.mrb[0].mxu0
      %v3620 = vpop.f32.mrb[0].mxu0
      %v3621 = vadd.f32 0.0, %v3620
      %v3622 = vpop.f32.mrb[0].mxu0
      %3623 = vdwg.mxu0
      %v3624 = vadd.f32 %v3186, %v3482
      %v3625 = vadd.f32 %v3189, %v3485
      %v3626 = vadd.f32 %v3194, %v3490
      %v3627 = vadd.f32 %v3197, %v3493
      %v3628 = vadd.f32 %v3202, %v3498
      %v3629 = vadd.f32 %v3205, %v3501
      %v3630 = vadd.f32 %v3210, %v3506
      %v3631 = vadd.f32 %v3213, %v3509
      %v3632 = vadd.f32 %v3218, %v3514
      %v3633 = vadd.f32 %v3221, %v3517
      %v3634 = vadd.f32 %v3226, %v3522
      %v3635 = vadd.f32 %v3229, %v3525
      %v3636 = vadd.f32 %v3234, %v3530
      %v3637 = vadd.f32 %v3237, %v3533
      %v3638 = vadd.f32 %v3242, %v3538
      %v3639 = vadd.f32 %v3245, %v3541
      %v3640 = vadd.f32 %v3250, %v3546
      %v3641 = vadd.f32 %v3253, %v3549
      %v3642 = vadd.f32 %v3258, %v3554
      %v3643 = vadd.f32 %v3261, %v3557
      %v3644 = vadd.f32 %v3266, %v3562
      %v3645 = vadd.f32 %v3269, %v3565
      %v3646 = vadd.f32 %v3274, %v3570
      %v3647 = vadd.f32 %v3277, %v3573
      %v3648 = vadd.f32 %v3282, %v3578
      %v3649 = vadd.f32 %v3285, %v3581
      %v3650 = vadd.f32 %v3290, %v3586
      %v3651 = vadd.f32 %v3293, %v3589
      %v3652 = vadd.f32 %v3298, %v3594
      %v3653 = vadd.f32 %v3301, %v3597
      %v3654 = vadd.f32 %v3306, %v3602
      %v3655 = vadd.f32 %v3309, %v3605
      %v3656 = vadd.f32 %v3314, %v3610
      %v3657 = vadd.f32 %v3317, %v3613
      %v3658 = vadd.f32 %v3322, %v3618
      %v3659 = vadd.f32 %v3325, %v3621
      %v3660 = vld [vmem:[%s7] sm:$0x1]
      %v3662 = vlaneseq
      %v3663 = vshrl.u32 %v3662, 7
      %v3664 = vsub.s32 0, %v3663
      %v3665 = vrot.slane %v3660, %v3664
      %v3667 = vadd.f32 %v3624, %v3665
      %v3668 = vadd.f32 %v3625, %v3665
      %v3669 = vadd.f32 %v3626, %v3665
      %v3670 = vadd.f32 %v3627, %v3665
      %v3671 = vadd.f32 %v3628, %v3665
      %v3672 = vadd.f32 %v3629, %v3665
      %v3673 = vadd.f32 %v3630, %v3665
      %v3674 = vadd.f32 %v3631, %v3665
      %v3675 = vadd.f32 %v3632, %v3665
      %v3676 = vadd.f32 %v3633, %v3665
      %v3677 = vadd.f32 %v3634, %v3665
      %v3678 = vadd.f32 %v3635, %v3665
      %v3679 = vadd.f32 %v3636, %v3665
      %v3680 = vadd.f32 %v3637, %v3665
      %v3681 = vadd.f32 %v3638, %v3665
      %v3682 = vadd.f32 %v3639, %v3665
      %v3683 = vadd.f32 %v3640, %v3665
      %v3684 = vadd.f32 %v3641, %v3665
      %v3685 = vadd.f32 %v3642, %v3665
      %v3686 = vadd.f32 %v3643, %v3665
      %v3687 = vadd.f32 %v3644, %v3665
      %v3688 = vadd.f32 %v3645, %v3665
      %v3689 = vadd.f32 %v3646, %v3665
      %v3690 = vadd.f32 %v3647, %v3665
      %v3691 = vadd.f32 %v3648, %v3665
      %v3692 = vadd.f32 %v3649, %v3665
      %v3693 = vadd.f32 %v3650, %v3665
      %v3694 = vadd.f32 %v3651, %v3665
      %v3695 = vadd.f32 %v3652, %v3665
      %v3696 = vadd.f32 %v3653, %v3665
      %v3697 = vadd.f32 %v3654, %v3665
      %v3698 = vadd.f32 %v3655, %v3665
      %v3699 = vadd.f32 %v3656, %v3665
      %v3700 = vadd.f32 %v3657, %v3665
      %v3701 = vadd.f32 %v3658, %v3665
      %v3702 = vadd.f32 %v3659, %v3665
      %v3703 = vmax.f32 %v3667, 0.0
      %v3704 = vmax.f32 %v3668, 0.0
      %v3705 = vmax.f32 %v3669, 0.0
      %v3706 = vmax.f32 %v3670, 0.0
      %v3707 = vmax.f32 %v3671, 0.0
      %v3708 = vmax.f32 %v3672, 0.0
      %v3709 = vmax.f32 %v3673, 0.0
      %v3710 = vmax.f32 %v3674, 0.0
      %v3711 = vmax.f32 %v3675, 0.0
      %v3712 = vmax.f32 %v3676, 0.0
      %v3713 = vmax.f32 %v3677, 0.0
      %v3714 = vmax.f32 %v3678, 0.0
      %v3715 = vmax.f32 %v3679, 0.0
      %v3716 = vmax.f32 %v3680, 0.0
      %v3717 = vmax.f32 %v3681, 0.0
      %v3718 = vmax.f32 %v3682, 0.0
      %v3719 = vmax.f32 %v3683, 0.0
      %v3720 = vmax.f32 %v3684, 0.0
      %v3721 = vmax.f32 %v3685, 0.0
      %v3722 = vmax.f32 %v3686, 0.0
      %v3723 = vmax.f32 %v3687, 0.0
      %v3724 = vmax.f32 %v3688, 0.0
      %v3725 = vmax.f32 %v3689, 0.0
      %v3726 = vmax.f32 %v3690, 0.0
      %v3727 = vmax.f32 %v3691, 0.0
      %v3728 = vmax.f32 %v3692, 0.0
      %v3729 = vmax.f32 %v3693, 0.0
      %v3730 = vmax.f32 %v3694, 0.0
      %v3731 = vmax.f32 %v3695, 0.0
      %v3732 = vmax.f32 %v3696, 0.0
      %v3733 = vmax.f32 %v3697, 0.0
      %v3734 = vmax.f32 %v3698, 0.0
      %v3735 = vmax.f32 %v3699, 0.0
      %v3736 = vmax.f32 %v3700, 0.0
      %v3737 = vmax.f32 %v3701, 0.0
      %v3738 = vmax.f32 %v3702, 0.0
      %v3739 = vmul.f32 %v3703, %v1402
      %v3740 = vmul.f32 %v3704, %v1407
      %v3741 = vmul.f32 %v3705, %v1412
      %v3742 = vmul.f32 %v3706, %v1417
      %v3743 = vmul.f32 %v3707, %v1422
      %v3744 = vmul.f32 %v3708, %v1427
      %v3745 = vmul.f32 %v3709, %v1432
      %v3746 = vmul.f32 %v3710, %v1437
      %v3747 = vmul.f32 %v3711, %v1442
      %v3748 = vmul.f32 %v3712, %v1447
      %v3749 = vmul.f32 %v3713, %v1452
      %v3750 = vmul.f32 %v3714, %v1457
      %v3751 = vmul.f32 %v3715, %v1462
      %v3752 = vmul.f32 %v3716, %v1467
      %v3753 = vmul.f32 %v3717, %v1472
      %v3754 = vmul.f32 %v3718, %v1477
      %v3755 = vmul.f32 %v3719, %v1482
      %v3756 = vmul.f32 %v3720, %v1487
      %v3757 = vmul.f32 %v3721, %v1492
      %v3758 = vmul.f32 %v3722, %v1497
      %v3759 = vmul.f32 %v3723, %v1502
      %v3760 = vmul.f32 %v3724, %v1507
      %v3761 = vmul.f32 %v3725, %v1512
      %v3762 = vmul.f32 %v3726, %v1517
      %v3763 = vmul.f32 %v3727, %v1522
      %v3764 = vmul.f32 %v3728, %v1527
      %v3765 = vmul.f32 %v3729, %v1532
      %v3766 = vmul.f32 %v3730, %v1537
      %v3767 = vmul.f32 %v3731, %v1542
      %v3768 = vmul.f32 %v3732, %v1547
      %v3769 = vmul.f32 %v3733, %v1552
      %v3770 = vmul.f32 %v3734, %v1557
      %v3771 = vmul.f32 %v3735, %v1562
      %v3772 = vmul.f32 %v3736, %v1567
      %v3773 = vmul.f32 %v3737, %v1572
      %v3774 = vmul.f32 %v3738, %v1577
      %3775 = vst [vmem:[#allocation2] sm:$0xff] 0.0
      %3776 = vst [vmem:[#allocation2 + $0x8] sm:$0xff] 0.0
      %3777 = vst [vmem:[#allocation2 + $0x10] sm:$0x3] 0.0
      %3778 = vst [vmem:[#allocation2 + $0x132] sm:$0xff] 0.0
      %3779 = vst [vmem:[#allocation2 + $0x13a] sm:$0xff] 0.0
      %3780 = vst [vmem:[#allocation2 + $0x142] sm:$0x3] 0.0
      %3781 = vst [vmem:[#allocation2 + $0x12] sm:$0xff] %v3739
      %3782 = vst [vmem:[#allocation2 + $0x1a] sm:$0xff] %v3740
      %3783 = vst [vmem:[#allocation2 + $0x22] sm:$0xff] %v3741
      %3784 = vst [vmem:[#allocation2 + $0x2a] sm:$0xff] %v3742
      %3785 = vst [vmem:[#allocation2 + $0x32] sm:$0xff] %v3743
      %3786 = vst [vmem:[#allocation2 + $0x3a] sm:$0xff] %v3744
      %3787 = vst [vmem:[#allocation2 + $0x42] sm:$0xff] %v3745
      %3788 = vst [vmem:[#allocation2 + $0x4a] sm:$0xff] %v3746
      %3789 = vst [vmem:[#allocation2 + $0x52] sm:$0xff] %v3747
      %3790 = vst [vmem:[#allocation2 + $0x5a] sm:$0xff] %v3748
      %3791 = vst [vmem:[#allocation2 + $0x62] sm:$0xff] %v3749
      %3792 = vst [vmem:[#allocation2 + $0x6a] sm:$0xff] %v3750
      %3793 = vst [vmem:[#allocation2 + $0x72] sm:$0xff] %v3751
      %3794 = vst [vmem:[#allocation2 + $0x7a] sm:$0xff] %v3752
      %3795 = vst [vmem:[#allocation2 + $0x82] sm:$0xff] %v3753
      %3796 = vst [vmem:[#allocation2 + $0x8a] sm:$0xff] %v3754
      %3797 = vst [vmem:[#allocation2 + $0x92] sm:$0xff] %v3755
      %3798 = vst [vmem:[#allocation2 + $0x9a] sm:$0xff] %v3756
      %3799 = vst [vmem:[#allocation2 + $0xa2] sm:$0xff] %v3757
      %3800 = vst [vmem:[#allocation2 + $0xaa] sm:$0xff] %v3758
      %3801 = vst [vmem:[#allocation2 + $0xb2] sm:$0xff] %v3759
      %3802 = vst [vmem:[#allocation2 + $0xba] sm:$0xff] %v3760
      %3803 = vst [vmem:[#allocation2 + $0xc2] sm:$0xff] %v3761
      %3804 = vst [vmem:[#allocation2 + $0xca] sm:$0xff] %v3762
      %3805 = vst [vmem:[#allocation2 + $0xd2] sm:$0xff] %v3763
      %3806 = vst [vmem:[#allocation2 + $0xda] sm:$0xff] %v3764
      %3807 = vst [vmem:[#allocation2 + $0xe2] sm:$0xff] %v3765
      %3808 = vst [vmem:[#allocation2 + $0xea] sm:$0xff] %v3766
      %3809 = vst [vmem:[#allocation2 + $0xf2] sm:$0xff] %v3767
      %3810 = vst [vmem:[#allocation2 + $0xfa] sm:$0xff] %v3768
      %3811 = vst [vmem:[#allocation2 + $0x102] sm:$0xff] %v3769
      %3812 = vst [vmem:[#allocation2 + $0x10a] sm:$0xff] %v3770
      %3813 = vst [vmem:[#allocation2 + $0x112] sm:$0xff] %v3771
      %3814 = vst [vmem:[#allocation2 + $0x11a] sm:$0xff] %v3772
      %3815 = vst [vmem:[#allocation2 + $0x122] sm:$0xff] %v3773
      %3816 = vst [vmem:[#allocation2 + $0x12a] sm:$0xff] %v3774
      %v3817 = vld [vmem:[#allocation2 + $0x11] sm:$0xff]
      %v3818 = vld [vmem:[#allocation2 + $0x19] sm:$0xff]
      %v3819 = vld [vmem:[#allocation2 + $0x21] sm:$0xff]
      %v3820 = vld [vmem:[#allocation2 + $0x29] sm:$0xff]
      %v3821 = vld [vmem:[#allocation2 + $0x31] sm:$0xff]
      %v3822 = vld [vmem:[#allocation2 + $0x39] sm:$0xff]
      %v3823 = vld [vmem:[#allocation2 + $0x41] sm:$0xff]
      %v3824 = vld [vmem:[#allocation2 + $0x49] sm:$0xff]
      %v3825 = vld [vmem:[#allocation2 + $0x51] sm:$0xff]
      %v3826 = vld [vmem:[#allocation2 + $0x59] sm:$0xff]
      %v3827 = vld [vmem:[#allocation2 + $0x61] sm:$0xff]
      %v3828 = vld [vmem:[#allocation2 + $0x69] sm:$0xff]
      %v3829 = vld [vmem:[#allocation2 + $0x71] sm:$0xff]
      %v3830 = vld [vmem:[#allocation2 + $0x79] sm:$0xff]
      %v3831 = vld [vmem:[#allocation2 + $0x81] sm:$0xff]
      %v3832 = vld [vmem:[#allocation2 + $0x89] sm:$0xff]
      %v3833 = vld [vmem:[#allocation2 + $0x91] sm:$0xff]
      %v3834 = vld [vmem:[#allocation2 + $0x99] sm:$0xff]
      %v3835 = vld [vmem:[#allocation2 + $0xa1] sm:$0xff]
      %v3836 = vld [vmem:[#allocation2 + $0xa9] sm:$0xff]
      %v3837 = vld [vmem:[#allocation2 + $0xb1] sm:$0xff]
      %v3838 = vld [vmem:[#allocation2 + $0xb9] sm:$0xff]
      %v3839 = vld [vmem:[#allocation2 + $0xc1] sm:$0xff]
      %v3840 = vld [vmem:[#allocation2 + $0xc9] sm:$0xff]
      %v3841 = vld [vmem:[#allocation2 + $0xd1] sm:$0xff]
      %v3842 = vld [vmem:[#allocation2 + $0xd9] sm:$0xff]
      %v3843 = vld [vmem:[#allocation2 + $0xe1] sm:$0xff]
      %v3844 = vld [vmem:[#allocation2 + $0xe9] sm:$0xff]
      %v3845 = vld [vmem:[#allocation2 + $0xf1] sm:$0xff]
      %v3846 = vld [vmem:[#allocation2 + $0xf9] sm:$0xff]
      %v3847 = vld [vmem:[#allocation2 + $0x101] sm:$0xff]
      %v3848 = vld [vmem:[#allocation2 + $0x109] sm:$0xff]
      %v3849 = vld [vmem:[#allocation2 + $0x111] sm:$0xff]
      %v3850 = vld [vmem:[#allocation2 + $0x119] sm:$0xff]
      %v3851 = vld [vmem:[#allocation2 + $0x121] sm:$0xff]
      %v3852 = vld [vmem:[#allocation2 + $0x129] sm:$0xff]
      %v3853 = vpack.c.bf16 %v3818, %v3817
      %v3854 = vpack.c.bf16 %v3820, %v3819
      %v3855 = vpack.c.bf16 %v3822, %v3821
      %v3856 = vpack.c.bf16 %v3824, %v3823
      %v3857 = vpack.c.bf16 %v3826, %v3825
      %v3858 = vpack.c.bf16 %v3828, %v3827
      %v3859 = vpack.c.bf16 %v3830, %v3829
      %v3860 = vpack.c.bf16 %v3832, %v3831
      %v3861 = vpack.c.bf16 %v3834, %v3833
      %v3862 = vpack.c.bf16 %v3836, %v3835
      %v3863 = vpack.c.bf16 %v3838, %v3837
      %v3864 = vpack.c.bf16 %v3840, %v3839
      %v3865 = vpack.c.bf16 %v3842, %v3841
      %v3866 = vpack.c.bf16 %v3844, %v3843
      %v3867 = vpack.c.bf16 %v3846, %v3845
      %v3868 = vpack.c.bf16 %v3848, %v3847
      %v3869 = vpack.c.bf16 %v3850, %v3849
      %v3870 = vpack.c.bf16 %v3852, %v3851
      %v3871 = vld [vmem:[%s4] sm:$0xf]
      %v3872 = vld [vmem:[%s4 + $0x4] sm:$0xf]
      %v3873 = vld [vmem:[%s4 + $0x8] sm:$0xf]
      %v3874 = vld [vmem:[%s4 + $0xc] sm:$0xf]
      %v3875 = vld [vmem:[%s4 + $0x10] sm:$0xf]
      %v3876 = vld [vmem:[%s4 + $0x14] sm:$0xf]
      %v3877 = vld [vmem:[%s4 + $0x18] sm:$0xf]
      %v3878 = vld [vmem:[%s4 + $0x1c] sm:$0xf]
      %v3879 = vld [vmem:[%s4 + $0x20] sm:$0xf]
      %v3880 = vld [vmem:[%s4 + $0x24] sm:$0xf]
      %v3881 = vld [vmem:[%s4 + $0x28] sm:$0xf]
      %v3882 = vld [vmem:[%s4 + $0x2c] sm:$0xf]
      %v3883 = vld [vmem:[%s4 + $0x30] sm:$0xf]
      %v3884 = vld [vmem:[%s4 + $0x34] sm:$0xf]
      %v3885 = vld [vmem:[%s4 + $0x38] sm:$0xf]
      %v3886 = vld [vmem:[%s4 + $0x3c] sm:$0xf]
      %v3887 = vld [vmem:[#allocation2 + $0x12] sm:$0xff]
      %v3888 = vld [vmem:[#allocation2 + $0x1a] sm:$0xff]
      %v3889 = vld [vmem:[#allocation2 + $0x22] sm:$0xff]
      %v3890 = vld [vmem:[#allocation2 + $0x2a] sm:$0xff]
      %v3891 = vld [vmem:[#allocation2 + $0x32] sm:$0xff]
      %v3892 = vld [vmem:[#allocation2 + $0x3a] sm:$0xff]
      %v3893 = vld [vmem:[#allocation2 + $0x42] sm:$0xff]
      %v3894 = vld [vmem:[#allocation2 + $0x4a] sm:$0xff]
      %v3895 = vld [vmem:[#allocation2 + $0x52] sm:$0xff]
      %v3896 = vld [vmem:[#allocation2 + $0x5a] sm:$0xff]
      %v3897 = vld [vmem:[#allocation2 + $0x62] sm:$0xff]
      %v3898 = vld [vmem:[#allocation2 + $0x6a] sm:$0xff]
      %v3899 = vld [vmem:[#allocation2 + $0x72] sm:$0xff]
      %v3900 = vld [vmem:[#allocation2 + $0x7a] sm:$0xff]
      %v3901 = vld [vmem:[#allocation2 + $0x82] sm:$0xff]
      %v3902 = vld [vmem:[#allocation2 + $0x8a] sm:$0xff]
      %v3903 = vld [vmem:[#allocation2 + $0x92] sm:$0xff]
      %v3904 = vld [vmem:[#allocation2 + $0x9a] sm:$0xff]
      %v3905 = vld [vmem:[#allocation2 + $0xa2] sm:$0xff]
      %v3906 = vld [vmem:[#allocation2 + $0xaa] sm:$0xff]
      %v3907 = vld [vmem:[#allocation2 + $0xb2] sm:$0xff]
      %v3908 = vld [vmem:[#allocation2 + $0xba] sm:$0xff]
      %v3909 = vld [vmem:[#allocation2 + $0xc2] sm:$0xff]
      %v3910 = vld [vmem:[#allocation2 + $0xca] sm:$0xff]
      %v3911 = vld [vmem:[#allocation2 + $0xd2] sm:$0xff]
      %v3912 = vld [vmem:[#allocation2 + $0xda] sm:$0xff]
      %v3913 = vld [vmem:[#allocation2 + $0xe2] sm:$0xff]
      %v3914 = vld [vmem:[#allocation2 + $0xea] sm:$0xff]
      %v3915 = vld [vmem:[#allocation2 + $0xf2] sm:$0xff]
      %v3916 = vld [vmem:[#allocation2 + $0xfa] sm:$0xff]
      %v3917 = vld [vmem:[#allocation2 + $0x102] sm:$0xff]
      %v3918 = vld [vmem:[#allocation2 + $0x10a] sm:$0xff]
      %v3919 = vld [vmem:[#allocation2 + $0x112] sm:$0xff]
      %v3920 = vld [vmem:[#allocation2 + $0x11a] sm:$0xff]
      %v3921 = vld [vmem:[#allocation2 + $0x122] sm:$0xff]
      %v3922 = vld [vmem:[#allocation2 + $0x12a] sm:$0xff]
      %v3923 = vpack.c.bf16 %v3888, %v3887
      %v3924 = vpack.c.bf16 %v3890, %v3889
      %v3925 = vpack.c.bf16 %v3892, %v3891
      %v3926 = vpack.c.bf16 %v3894, %v3893
      %v3927 = vpack.c.bf16 %v3896, %v3895
      %v3928 = vpack.c.bf16 %v3898, %v3897
      %v3929 = vpack.c.bf16 %v3900, %v3899
      %v3930 = vpack.c.bf16 %v3902, %v3901
      %v3931 = vpack.c.bf16 %v3904, %v3903
      %v3932 = vpack.c.bf16 %v3906, %v3905
      %v3933 = vpack.c.bf16 %v3908, %v3907
      %v3934 = vpack.c.bf16 %v3910, %v3909
      %v3935 = vpack.c.bf16 %v3912, %v3911
      %v3936 = vpack.c.bf16 %v3914, %v3913
      %v3937 = vpack.c.bf16 %v3916, %v3915
      %v3938 = vpack.c.bf16 %v3918, %v3917
      %v3939 = vpack.c.bf16 %v3920, %v3919
      %v3940 = vpack.c.bf16 %v3922, %v3921
      %s3941 = scalar_lea.vmem %s4, 64
      %v3942 = vld [vmem:[%s3941] sm:$0xf]
      %v3943 = vld [vmem:[%s3941 + $0x4] sm:$0xf]
      %v3944 = vld [vmem:[%s3941 + $0x8] sm:$0xf]
      %v3945 = vld [vmem:[%s3941 + $0xc] sm:$0xf]
      %v3946 = vld [vmem:[%s3941 + $0x10] sm:$0xf]
      %v3947 = vld [vmem:[%s3941 + $0x14] sm:$0xf]
      %v3948 = vld [vmem:[%s3941 + $0x18] sm:$0xf]
      %v3949 = vld [vmem:[%s3941 + $0x1c] sm:$0xf]
      %v3950 = vld [vmem:[%s3941 + $0x20] sm:$0xf]
      %v3951 = vld [vmem:[%s3941 + $0x24] sm:$0xf]
      %v3952 = vld [vmem:[%s3941 + $0x28] sm:$0xf]
      %v3953 = vld [vmem:[%s3941 + $0x2c] sm:$0xf]
      %v3954 = vld [vmem:[%s3941 + $0x30] sm:$0xf]
      %v3955 = vld [vmem:[%s3941 + $0x34] sm:$0xf]
      %v3956 = vld [vmem:[%s3941 + $0x38] sm:$0xf]
      %v3957 = vld [vmem:[%s3941 + $0x3c] sm:$0xf]
      %v3974 = vunpack.c.l.b16 %v3942
      %v3975 = vunpack.c.l.b16 %v3943
      %v3976 = vunpack.c.l.b16 %v3944
      %v3977 = vunpack.c.l.b16 %v3945
      %v3978 = vunpack.c.l.b16 %v3946
      %v3979 = vunpack.c.l.b16 %v3947
      %v3980 = vunpack.c.l.b16 %v3948
      %v3981 = vunpack.c.l.b16 %v3949
      %v3982 = vunpack.c.l.b16 %v3950
      %v3983 = vunpack.c.l.b16 %v3951
      %v3984 = vunpack.c.l.b16 %v3952
      %v3985 = vunpack.c.l.b16 %v3953
      %v3986 = vunpack.c.l.b16 %v3954
      %v3987 = vunpack.c.l.b16 %v3955
      %v3988 = vunpack.c.l.b16 %v3956
      %v3989 = vunpack.c.l.b16 %v3957
      %v3990 = vpack.c.b16 %v3975, %v3974
      %v3991 = vpack.c.b16 %v3977, %v3976
      %v3992 = vpack.c.b16 %v3979, %v3978
      %v3993 = vpack.c.b16 %v3981, %v3980
      %v3994 = vpack.c.b16 %v3983, %v3982
      %v3995 = vpack.c.b16 %v3985, %v3984
      %v3996 = vpack.c.b16 %v3987, %v3986
      %v3997 = vpack.c.b16 %v3989, %v3988
      %4006 = vmatprep.subr.bf16.mxu0 0
      %4007 = vmatpush1.bf16.msra.mxu0 %v3990
      %4008 = vmatprep.subr.bf16.mxu0 0
      %4009 = vmatpush1.bf16.msra.mxu0 %v3991
      %4010 = vmatprep.subr.bf16.mxu0 0
      %4011 = vmatpush1.bf16.msra.mxu0 %v3992
      %4012 = vmatprep.subr.bf16.mxu0 0
      %4013 = vmatpush1.bf16.msra.mxu0 %v3993
      %4014 = vmatprep.subr.bf16.mxu0 0
      %4015 = vmatpush1.bf16.msra.mxu0 %v3994
      %4016 = vmatprep.subr.bf16.mxu0 0
      %4017 = vmatpush1.bf16.msra.mxu0 %v3995
      %4018 = vmatprep.subr.bf16.mxu0 0
      %4019 = vmatpush1.bf16.msra.mxu0 %v3996
      %4020 = vmatprep.subr.bf16.mxu0 0
      %4021 = vmatpush1.bf16.msra.mxu0 %v3997
      %4022 = vmatprep.subr.bf16.mxu0 0
      %4023 = vmatpush1.bf16.msra.mxu0 0
      %4024 = vmatprep.subr.bf16.mxu0 0
      %4025 = vmatpush1.bf16.msra.mxu0 0
      %4026 = vmatprep.subr.bf16.mxu0 0
      %4027 = vmatpush1.bf16.msra.mxu0 0
      %4028 = vmatprep.subr.bf16.mxu0 0
      %4029 = vmatpush1.bf16.msra.mxu0 0
      %4030 = vmatprep.subr.bf16.mxu0 0
      %4031 = vmatpush1.bf16.msra.mxu0 0
      %4032 = vmatprep.subr.bf16.mxu0 0
      %4033 = vmatpush1.bf16.msra.mxu0 0
      %4034 = vmatprep.subr.bf16.mxu0 0
      %4035 = vmatpush1.bf16.msra.mxu0 0
      %4036 = vmatprep.subr.bf16.mxu0 0
      %4037 = vmatpush1.bf16.msra.mxu0 0
      %4038 = vmatprep.mubr.bf16.mxu0 0
      %4039 = vmatmul.mubr.bf16.gmra.mrb[0].mxu0 %v3923
      %v4040 = vpop.f32.mrb[0].mxu0
      %v4041 = vadd.f32 0.0, %v4040
      %v4042 = vpop.f32.mrb[0].mxu0
      %v4043 = vpop.f32.mrb[0].mxu0
      %v4044 = vadd.f32 0.0, %v4043
      %v4045 = vpop.f32.mrb[0].mxu0
      %4046 = vmatprep.mubr.bf16.mxu0 0
      %4047 = vmatmul.mubr.bf16.gmra.mrb[0].mxu0 %v3924
      %v4048 = vpop.f32.mrb[0].mxu0
      %v4049 = vadd.f32 0.0, %v4048
      %v4050 = vpop.f32.mrb[0].mxu0
      %v4051 = vpop.f32.mrb[0].mxu0
      %v4052 = vadd.f32 0.0, %v4051
      %v4053 = vpop.f32.mrb[0].mxu0
      %4054 = vmatprep.mubr.bf16.mxu0 0
      %4055 = vmatmul.mubr.bf16.gmra.mrb[0].mxu0 %v3925
      %v4056 = vpop.f32.mrb[0].mxu0
      %v4057 = vadd.f32 0.0, %v4056
      %v4058 = vpop.f32.mrb[0].mxu0
      %v4059 = vpop.f32.mrb[0].mxu0
      %v4060 = vadd.f32 0.0, %v4059
      %v4061 = vpop.f32.mrb[0].mxu0
      %4062 = vmatprep.mubr.bf16.mxu0 0
      %4063 = vmatmul.mubr.bf16.gmra.mrb[0].mxu0 %v3926
      %v4064 = vpop.f32.mrb[0].mxu0
      %v4065 = vadd.f32 0.0, %v4064
      %v4066 = vpop.f32.mrb[0].mxu0
      %v4067 = vpop.f32.mrb[0].mxu0
      %v4068 = vadd.f32 0.0, %v4067
      %v4069 = vpop.f32.mrb[0].mxu0
      %4070 = vmatprep.mubr.bf16.mxu0 0
      %4071 = vmatmul.mubr.bf16.gmra.mrb[0].mxu0 %v3927
      %v4072 = vpop.f32.mrb[0].mxu0
      %v4073 = vadd.f32 0.0, %v4072
      %v4074 = vpop.f32.mrb[0].mxu0
      %v4075 = vpop.f32.mrb[0].mxu0
      %v4076 = vadd.f32 0.0, %v4075
      %v4077 = vpop.f32.mrb[0].mxu0
      %4078 = vmatprep.mubr.bf16.mxu0 0
      %4079 = vmatmul.mubr.bf16.gmra.mrb[0].mxu0 %v3928
      %v4080 = vpop.f32.mrb[0].mxu0
      %v4081 = vadd.f32 0.0, %v4080
      %v4082 = vpop.f32.mrb[0].mxu0
      %v4083 = vpop.f32.mrb[0].mxu0
      %v4084 = vadd.f32 0.0, %v4083
      %v4085 = vpop.f32.mrb[0].mxu0
      %4086 = vmatprep.mubr.bf16.mxu0 0
      %4087 = vmatmul.mubr.bf16.gmra.mrb[0].mxu0 %v3929
      %v4088 = vpop.f32.mrb[0].mxu0
      %v4089 = vadd.f32 0.0, %v4088
      %v4090 = vpop.f32.mrb[0].mxu0
      %v4091 = vpop.f32.mrb[0].mxu0
      %v4092 = vadd.f32 0.0, %v4091
      %v4093 = vpop.f32.mrb[0].mxu0
      %4094 = vmatprep.mubr.bf16.mxu0 0
      %4095 = vmatmul.mubr.bf16.gmra.mrb[0].mxu0 %v3930
      %v4096 = vpop.f32.mrb[0].mxu0
      %v4097 = vadd.f32 0.0, %v4096
      %v4098 = vpop.f32.mrb[0].mxu0
      %v4099 = vpop.f32.mrb[0].mxu0
      %v4100 = vadd.f32 0.0, %v4099
      %v4101 = vpop.f32.mrb[0].mxu0
      %4102 = vmatprep.mubr.bf16.mxu0 0
      %4103 = vmatmul.mubr.bf16.gmra.mrb[0].mxu0 %v3931
      %v4104 = vpop.f32.mrb[0].mxu0
      %v4105 = vadd.f32 0.0, %v4104
      %v4106 = vpop.f32.mrb[0].mxu0
      %v4107 = vpop.f32.mrb[0].mxu0
      %v4108 = vadd.f32 0.0, %v4107
      %v4109 = vpop.f32.mrb[0].mxu0
      %4110 = vmatprep.mubr.bf16.mxu0 0
      %4111 = vmatmul.mubr.bf16.gmra.mrb[0].mxu0 %v3932
      %v4112 = vpop.f32.mrb[0].mxu0
      %v4113 = vadd.f32 0.0, %v4112
      %v4114 = vpop.f32.mrb[0].mxu0
      %v4115 = vpop.f32.mrb[0].mxu0
      %v4116 = vadd.f32 0.0, %v4115
      %v4117 = vpop.f32.mrb[0].mxu0
      %4118 = vmatprep.mubr.bf16.mxu0 0
      %4119 = vmatmul.mubr.bf16.gmra.mrb[0].mxu0 %v3933
      %v4120 = vpop.f32.mrb[0].mxu0
      %v4121 = vadd.f32 0.0, %v4120
      %v4122 = vpop.f32.mrb[0].mxu0
      %v4123 = vpop.f32.mrb[0].mxu0
      %v4124 = vadd.f32 0.0, %v4123
      %v4125 = vpop.f32.mrb[0].mxu0
      %4126 = vmatprep.mubr.bf16.mxu0 0
      %4127 = vmatmul.mubr.bf16.gmra.mrb[0].mxu0 %v3934
      %v4128 = vpop.f32.mrb[0].mxu0
      %v4129 = vadd.f32 0.0, %v4128
      %v4130 = vpop.f32.mrb[0].mxu0
      %v4131 = vpop.f32.mrb[0].mxu0
      %v4132 = vadd.f32 0.0, %v4131
      %v4133 = vpop.f32.mrb[0].mxu0
      %4134 = vmatprep.mubr.bf16.mxu0 0
      %4135 = vmatmul.mubr.bf16.gmra.mrb[0].mxu0 %v3935
      %v4136 = vpop.f32.mrb[0].mxu0
      %v4137 = vadd.f32 0.0, %v4136
      %v4138 = vpop.f32.mrb[0].mxu0
      %v4139 = vpop.f32.mrb[0].mxu0
      %v4140 = vadd.f32 0.0, %v4139
      %v4141 = vpop.f32.mrb[0].mxu0
      %4142 = vmatprep.mubr.bf16.mxu0 0
      %4143 = vmatmul.mubr.bf16.gmra.mrb[0].mxu0 %v3936
      %v4144 = vpop.f32.mrb[0].mxu0
      %v4145 = vadd.f32 0.0, %v4144
      %v4146 = vpop.f32.mrb[0].mxu0
      %v4147 = vpop.f32.mrb[0].mxu0
      %v4148 = vadd.f32 0.0, %v4147
      %v4149 = vpop.f32.mrb[0].mxu0
      %4150 = vmatprep.mubr.bf16.mxu0 0
      %4151 = vmatmul.mubr.bf16.gmra.mrb[0].mxu0 %v3937
      %v4152 = vpop.f32.mrb[0].mxu0
      %v4153 = vadd.f32 0.0, %v4152
      %v4154 = vpop.f32.mrb[0].mxu0
      %v4155 = vpop.f32.mrb[0].mxu0
      %v4156 = vadd.f32 0.0, %v4155
      %v4157 = vpop.f32.mrb[0].mxu0
      %4158 = vmatprep.mubr.bf16.mxu0 0
      %4159 = vmatmul.mubr.bf16.gmra.mrb[0].mxu0 %v3938
      %v4160 = vpop.f32.mrb[0].mxu0
      %v4161 = vadd.f32 0.0, %v4160
      %v4162 = vpop.f32.mrb[0].mxu0
      %v4163 = vpop.f32.mrb[0].mxu0
      %v4164 = vadd.f32 0.0, %v4163
      %v4165 = vpop.f32.mrb[0].mxu0
      %4166 = vmatprep.mubr.bf16.mxu0 0
      %4167 = vmatmul.mubr.bf16.gmra.mrb[0].mxu0 %v3939
      %v4168 = vpop.f32.mrb[0].mxu0
      %v4169 = vadd.f32 0.0, %v4168
      %v4170 = vpop.f32.mrb[0].mxu0
      %v4171 = vpop.f32.mrb[0].mxu0
      %v4172 = vadd.f32 0.0, %v4171
      %v4173 = vpop.f32.mrb[0].mxu0
      %4174 = vmatprep.mubr.bf16.mxu0 0
      %4175 = vmatmul.mubr.bf16.gmra.mrb[0].mxu0 %v3940
      %v4176 = vpop.f32.mrb[0].mxu0
      %v4177 = vadd.f32 0.0, %v4176
      %v4178 = vpop.f32.mrb[0].mxu0
      %v4179 = vpop.f32.mrb[0].mxu0
      %v4180 = vadd.f32 0.0, %v4179
      %v4181 = vpop.f32.mrb[0].mxu0
      %4182 = vdwg.mxu0
      %v4199 = vunpack.c.l.b16 %v3871
      %v4200 = vunpack.c.l.b16 %v3872
      %v4201 = vunpack.c.l.b16 %v3873
      %v4202 = vunpack.c.l.b16 %v3874
      %v4203 = vunpack.c.l.b16 %v3875
      %v4204 = vunpack.c.l.b16 %v3876
      %v4205 = vunpack.c.l.b16 %v3877
      %v4206 = vunpack.c.l.b16 %v3878
      %v4207 = vunpack.c.l.b16 %v3879
      %v4208 = vunpack.c.l.b16 %v3880
      %v4209 = vunpack.c.l.b16 %v3881
      %v4210 = vunpack.c.l.b16 %v3882
      %v4211 = vunpack.c.l.b16 %v3883
      %v4212 = vunpack.c.l.b16 %v3884
      %v4213 = vunpack.c.l.b16 %v3885
      %v4214 = vunpack.c.l.b16 %v3886
      %v4215 = vpack.c.b16 %v4200, %v4199
      %v4216 = vpack.c.b16 %v4202, %v4201
      %v4217 = vpack.c.b16 %v4204, %v4203
      %v4218 = vpack.c.b16 %v4206, %v4205
      %v4219 = vpack.c.b16 %v4208, %v4207
      %v4220 = vpack.c.b16 %v4210, %v4209
      %v4221 = vpack.c.b16 %v4212, %v4211
      %v4222 = vpack.c.b16 %v4214, %v4213
      %4231 = vmatprep.subr.bf16.mxu0 0
      %4232 = vmatpush1.bf16.msra.mxu0 %v4215
      %4233 = vmatprep.subr.bf16.mxu0 0
      %4234 = vmatpush1.bf16.msra.mxu0 %v4216
      %4235 = vmatprep.subr.bf16.mxu0 0
      %4236 = vmatpush1.bf16.msra.mxu0 %v4217
      %4237 = vmatprep.subr.bf16.mxu0 0
      %4238 = vmatpush1.bf16.msra.mxu0 %v4218
      %4239 = vmatprep.subr.bf16.mxu0 0
      %4240 = vmatpush1.bf16.msra.mxu0 %v4219
      %4241 = vmatprep.subr.bf16.mxu0 0
      %4242 = vmatpush1.bf16.msra.mxu0 %v4220
      %4243 = vmatprep.subr.bf16.mxu0 0
      %4244 = vmatpush1.bf16.msra.mxu0 %v4221
      %4245 = vmatprep.subr.bf16.mxu0 0
      %4246 = vmatpush1.bf16.msra.mxu0 %v4222
      %4247 = vmatprep.subr.bf16.mxu0 0
      %4248 = vmatpush1.bf16.msra.mxu0 0
      %4249 = vmatprep.subr.bf16.mxu0 0
      %4250 = vmatpush1.bf16.msra.mxu0 0
      %4251 = vmatprep.subr.bf16.mxu0 0
      %4252 = vmatpush1.bf16.msra.mxu0 0
      %4253 = vmatprep.subr.bf16.mxu0 0
      %4254 = vmatpush1.bf16.msra.mxu0 0
      %4255 = vmatprep.subr.bf16.mxu0 0
      %4256 = vmatpush1.bf16.msra.mxu0 0
      %4257 = vmatprep.subr.bf16.mxu0 0
      %4258 = vmatpush1.bf16.msra.mxu0 0
      %4259 = vmatprep.subr.bf16.mxu0 0
      %4260 = vmatpush1.bf16.msra.mxu0 0
      %4261 = vmatprep.subr.bf16.mxu0 0
      %4262 = vmatpush1.bf16.msra.mxu0 0
      %4263 = vmatprep.mubr.bf16.mxu0 0
      %4264 = vmatmul.mubr.bf16.gmra.mrb[0].mxu0 %v3853
      %v4265 = vpop.f32.mrb[0].mxu0
      %v4266 = vadd.f32 %v4041, %v4265
      %v4267 = vpop.f32.mrb[0].mxu0
      %v4268 = vpop.f32.mrb[0].mxu0
      %v4269 = vadd.f32 %v4044, %v4268
      %v4270 = vpop.f32.mrb[0].mxu0
      %4271 = vmatprep.mubr.bf16.mxu0 0
      %4272 = vmatmul.mubr.bf16.gmra.mrb[0].mxu0 %v3854
      %v4273 = vpop.f32.mrb[0].mxu0
      %v4274 = vadd.f32 %v4049, %v4273
      %v4275 = vpop.f32.mrb[0].mxu0
      %v4276 = vpop.f32.mrb[0].mxu0
      %v4277 = vadd.f32 %v4052, %v4276
      %v4278 = vpop.f32.mrb[0].mxu0
      %4279 = vmatprep.mubr.bf16.mxu0 0
      %4280 = vmatmul.mubr.bf16.gmra.mrb[0].mxu0 %v3855
      %v4281 = vpop.f32.mrb[0].mxu0
      %v4282 = vadd.f32 %v4057, %v4281
      %v4283 = vpop.f32.mrb[0].mxu0
      %v4284 = vpop.f32.mrb[0].mxu0
      %v4285 = vadd.f32 %v4060, %v4284
      %v4286 = vpop.f32.mrb[0].mxu0
      %4287 = vmatprep.mubr.bf16.mxu0 0
      %4288 = vmatmul.mubr.bf16.gmra.mrb[0].mxu0 %v3856
      %v4289 = vpop.f32.mrb[0].mxu0
      %v4290 = vadd.f32 %v4065, %v4289
      %v4291 = vpop.f32.mrb[0].mxu0
      %v4292 = vpop.f32.mrb[0].mxu0
      %v4293 = vadd.f32 %v4068, %v4292
      %v4294 = vpop.f32.mrb[0].mxu0
      %4295 = vmatprep.mubr.bf16.mxu0 0
      %4296 = vmatmul.mubr.bf16.gmra.mrb[0].mxu0 %v3857
      %v4297 = vpop.f32.mrb[0].mxu0
      %v4298 = vadd.f32 %v4073, %v4297
      %v4299 = vpop.f32.mrb[0].mxu0
      %v4300 = vpop.f32.mrb[0].mxu0
      %v4301 = vadd.f32 %v4076, %v4300
      %v4302 = vpop.f32.mrb[0].mxu0
      %4303 = vmatprep.mubr.bf16.mxu0 0
      %4304 = vmatmul.mubr.bf16.gmra.mrb[0].mxu0 %v3858
      %v4305 = vpop.f32.mrb[0].mxu0
      %v4306 = vadd.f32 %v4081, %v4305
      %v4307 = vpop.f32.mrb[0].mxu0
      %v4308 = vpop.f32.mrb[0].mxu0
      %v4309 = vadd.f32 %v4084, %v4308
      %v4310 = vpop.f32.mrb[0].mxu0
      %4311 = vmatprep.mubr.bf16.mxu0 0
      %4312 = vmatmul.mubr.bf16.gmra.mrb[0].mxu0 %v3859
      %v4313 = vpop.f32.mrb[0].mxu0
      %v4314 = vadd.f32 %v4089, %v4313
      %v4315 = vpop.f32.mrb[0].mxu0
      %v4316 = vpop.f32.mrb[0].mxu0
      %v4317 = vadd.f32 %v4092, %v4316
      %v4318 = vpop.f32.mrb[0].mxu0
      %4319 = vmatprep.mubr.bf16.mxu0 0
      %4320 = vmatmul.mubr.bf16.gmra.mrb[0].mxu0 %v3860
      %v4321 = vpop.f32.mrb[0].mxu0
      %v4322 = vadd.f32 %v4097, %v4321
      %v4323 = vpop.f32.mrb[0].mxu0
      %v4324 = vpop.f32.mrb[0].mxu0
      %v4325 = vadd.f32 %v4100, %v4324
      %v4326 = vpop.f32.mrb[0].mxu0
      %4327 = vmatprep.mubr.bf16.mxu0 0
      %4328 = vmatmul.mubr.bf16.gmra.mrb[0].mxu0 %v3861
      %v4329 = vpop.f32.mrb[0].mxu0
      %v4330 = vadd.f32 %v4105, %v4329
      %v4331 = vpop.f32.mrb[0].mxu0
      %v4332 = vpop.f32.mrb[0].mxu0
      %v4333 = vadd.f32 %v4108, %v4332
      %v4334 = vpop.f32.mrb[0].mxu0
      %4335 = vmatprep.mubr.bf16.mxu0 0
      %4336 = vmatmul.mubr.bf16.gmra.mrb[0].mxu0 %v3862
      %v4337 = vpop.f32.mrb[0].mxu0
      %v4338 = vadd.f32 %v4113, %v4337
      %v4339 = vpop.f32.mrb[0].mxu0
      %v4340 = vpop.f32.mrb[0].mxu0
      %v4341 = vadd.f32 %v4116, %v4340
      %v4342 = vpop.f32.mrb[0].mxu0
      %4343 = vmatprep.mubr.bf16.mxu0 0
      %4344 = vmatmul.mubr.bf16.gmra.mrb[0].mxu0 %v3863
      %v4345 = vpop.f32.mrb[0].mxu0
      %v4346 = vadd.f32 %v4121, %v4345
      %v4347 = vpop.f32.mrb[0].mxu0
      %v4348 = vpop.f32.mrb[0].mxu0
      %v4349 = vadd.f32 %v4124, %v4348
      %v4350 = vpop.f32.mrb[0].mxu0
      %4351 = vmatprep.mubr.bf16.mxu0 0
      %4352 = vmatmul.mubr.bf16.gmra.mrb[0].mxu0 %v3864
      %v4353 = vpop.f32.mrb[0].mxu0
      %v4354 = vadd.f32 %v4129, %v4353
      %v4355 = vpop.f32.mrb[0].mxu0
      %v4356 = vpop.f32.mrb[0].mxu0
      %v4357 = vadd.f32 %v4132, %v4356
      %v4358 = vpop.f32.mrb[0].mxu0
      %4359 = vmatprep.mubr.bf16.mxu0 0
      %4360 = vmatmul.mubr.bf16.gmra.mrb[0].mxu0 %v3865
      %v4361 = vpop.f32.mrb[0].mxu0
      %v4362 = vadd.f32 %v4137, %v4361
      %v4363 = vpop.f32.mrb[0].mxu0
      %v4364 = vpop.f32.mrb[0].mxu0
      %v4365 = vadd.f32 %v4140, %v4364
      %v4366 = vpop.f32.mrb[0].mxu0
      %4367 = vmatprep.mubr.bf16.mxu0 0
      %4368 = vmatmul.mubr.bf16.gmra.mrb[0].mxu0 %v3866
      %v4369 = vpop.f32.mrb[0].mxu0
      %v4370 = vadd.f32 %v4145, %v4369
      %v4371 = vpop.f32.mrb[0].mxu0
      %v4372 = vpop.f32.mrb[0].mxu0
      %v4373 = vadd.f32 %v4148, %v4372
      %v4374 = vpop.f32.mrb[0].mxu0
      %4375 = vmatprep.mubr.bf16.mxu0 0
      %4376 = vmatmul.mubr.bf16.gmra.mrb[0].mxu0 %v3867
      %v4377 = vpop.f32.mrb[0].mxu0
      %v4378 = vadd.f32 %v4153, %v4377
      %v4379 = vpop.f32.mrb[0].mxu0
      %v4380 = vpop.f32.mrb[0].mxu0
      %v4381 = vadd.f32 %v4156, %v4380
      %v4382 = vpop.f32.mrb[0].mxu0
      %4383 = vmatprep.mubr.bf16.mxu0 0
      %4384 = vmatmul.mubr.bf16.gmra.mrb[0].mxu0 %v3868
      %v4385 = vpop.f32.mrb[0].mxu0
      %v4386 = vadd.f32 %v4161, %v4385
      %v4387 = vpop.f32.mrb[0].mxu0
      %v4388 = vpop.f32.mrb[0].mxu0
      %v4389 = vadd.f32 %v4164, %v4388
      %v4390 = vpop.f32.mrb[0].mxu0
      %4391 = vmatprep.mubr.bf16.mxu0 0
      %4392 = vmatmul.mubr.bf16.gmra.mrb[0].mxu0 %v3869
      %v4393 = vpop.f32.mrb[0].mxu0
      %v4394 = vadd.f32 %v4169, %v4393
      %v4395 = vpop.f32.mrb[0].mxu0
      %v4396 = vpop.f32.mrb[0].mxu0
      %v4397 = vadd.f32 %v4172, %v4396
      %v4398 = vpop.f32.mrb[0].mxu0
      %4399 = vmatprep.mubr.bf16.mxu0 0
      %4400 = vmatmul.mubr.bf16.gmra.mrb[0].mxu0 %v3870
      %v4401 = vpop.f32.mrb[0].mxu0
      %v4402 = vadd.f32 %v4177, %v4401
      %v4403 = vpop.f32.mrb[0].mxu0
      %v4404 = vpop.f32.mrb[0].mxu0
      %v4405 = vadd.f32 %v4180, %v4404
      %v4406 = vpop.f32.mrb[0].mxu0
      %4407 = vdwg.mxu0
      %v4408 = vld [vmem:[#allocation2 + $0x13] sm:$0xff]
      %v4409 = vld [vmem:[#allocation2 + $0x1b] sm:$0xff]
      %v4410 = vld [vmem:[#allocation2 + $0x23] sm:$0xff]
      %v4411 = vld [vmem:[#allocation2 + $0x2b] sm:$0xff]
      %v4412 = vld [vmem:[#allocation2 + $0x33] sm:$0xff]
      %v4413 = vld [vmem:[#allocation2 + $0x3b] sm:$0xff]
      %v4414 = vld [vmem:[#allocation2 + $0x43] sm:$0xff]
      %v4415 = vld [vmem:[#allocation2 + $0x4b] sm:$0xff]
      %v4416 = vld [vmem:[#allocation2 + $0x53] sm:$0xff]
      %v4417 = vld [vmem:[#allocation2 + $0x5b] sm:$0xff]
      %v4418 = vld [vmem:[#allocation2 + $0x63] sm:$0xff]
      %v4419 = vld [vmem:[#allocation2 + $0x6b] sm:$0xff]
      %v4420 = vld [vmem:[#allocation2 + $0x73] sm:$0xff]
      %v4421 = vld [vmem:[#allocation2 + $0x7b] sm:$0xff]
      %v4422 = vld [vmem:[#allocation2 + $0x83] sm:$0xff]
      %v4423 = vld [vmem:[#allocation2 + $0x8b] sm:$0xff]
      %v4424 = vld [vmem:[#allocation2 + $0x93] sm:$0xff]
      %v4425 = vld [vmem:[#allocation2 + $0x9b] sm:$0xff]
      %v4426 = vld [vmem:[#allocation2 + $0xa3] sm:$0xff]
      %v4427 = vld [vmem:[#allocation2 + $0xab] sm:$0xff]
      %v4428 = vld [vmem:[#allocation2 + $0xb3] sm:$0xff]
      %v4429 = vld [vmem:[#allocation2 + $0xbb] sm:$0xff]
      %v4430 = vld [vmem:[#allocation2 + $0xc3] sm:$0xff]
      %v4431 = vld [vmem:[#allocation2 + $0xcb] sm:$0xff]
      %v4432 = vld [vmem:[#allocation2 + $0xd3] sm:$0xff]
      %v4433 = vld [vmem:[#allocation2 + $0xdb] sm:$0xff]
      %v4434 = vld [vmem:[#allocation2 + $0xe3] sm:$0xff]
      %v4435 = vld [vmem:[#allocation2 + $0xeb] sm:$0xff]
      %v4436 = vld [vmem:[#allocation2 + $0xf3] sm:$0xff]
      %v4437 = vld [vmem:[#allocation2 + $0xfb] sm:$0xff]
      %v4438 = vld [vmem:[#allocation2 + $0x103] sm:$0xff]
      %v4439 = vld [vmem:[#allocation2 + $0x10b] sm:$0xff]
      %v4440 = vld [vmem:[#allocation2 + $0x113] sm:$0xff]
      %v4441 = vld [vmem:[#allocation2 + $0x11b] sm:$0xff]
      %v4442 = vld [vmem:[#allocation2 + $0x123] sm:$0xff]
      %v4443 = vld [vmem:[#allocation2 + $0x12b] sm:$0xff]
      %v4444 = vpack.c.bf16 %v4409, %v4408
      %v4445 = vpack.c.bf16 %v4411, %v4410
      %v4446 = vpack.c.bf16 %v4413, %v4412
      %v4447 = vpack.c.bf16 %v4415, %v4414
      %v4448 = vpack.c.bf16 %v4417, %v4416
      %v4449 = vpack.c.bf16 %v4419, %v4418
      %v4450 = vpack.c.bf16 %v4421, %v4420
      %v4451 = vpack.c.bf16 %v4423, %v4422
      %v4452 = vpack.c.bf16 %v4425, %v4424
      %v4453 = vpack.c.bf16 %v4427, %v4426
      %v4454 = vpack.c.bf16 %v4429, %v4428
      %v4455 = vpack.c.bf16 %v4431, %v4430
      %v4456 = vpack.c.bf16 %v4433, %v4432
      %v4457 = vpack.c.bf16 %v4435, %v4434
      %v4458 = vpack.c.bf16 %v4437, %v4436
      %v4459 = vpack.c.bf16 %v4439, %v4438
      %v4460 = vpack.c.bf16 %v4441, %v4440
      %v4461 = vpack.c.bf16 %v4443, %v4442
      %s4462 = scalar_lea.vmem %s4, 128
      %v4463 = vld [vmem:[%s4462] sm:$0xf]
      %v4464 = vld [vmem:[%s4462 + $0x4] sm:$0xf]
      %v4465 = vld [vmem:[%s4462 + $0x8] sm:$0xf]
      %v4466 = vld [vmem:[%s4462 + $0xc] sm:$0xf]
      %v4467 = vld [vmem:[%s4462 + $0x10] sm:$0xf]
      %v4468 = vld [vmem:[%s4462 + $0x14] sm:$0xf]
      %v4469 = vld [vmem:[%s4462 + $0x18] sm:$0xf]
      %v4470 = vld [vmem:[%s4462 + $0x1c] sm:$0xf]
      %v4471 = vld [vmem:[%s4462 + $0x20] sm:$0xf]
      %v4472 = vld [vmem:[%s4462 + $0x24] sm:$0xf]
      %v4473 = vld [vmem:[%s4462 + $0x28] sm:$0xf]
      %v4474 = vld [vmem:[%s4462 + $0x2c] sm:$0xf]
      %v4475 = vld [vmem:[%s4462 + $0x30] sm:$0xf]
      %v4476 = vld [vmem:[%s4462 + $0x34] sm:$0xf]
      %v4477 = vld [vmem:[%s4462 + $0x38] sm:$0xf]
      %v4478 = vld [vmem:[%s4462 + $0x3c] sm:$0xf]
      %v4495 = vunpack.c.l.b16 %v4463
      %v4496 = vunpack.c.l.b16 %v4464
      %v4497 = vunpack.c.l.b16 %v4465
      %v4498 = vunpack.c.l.b16 %v4466
      %v4499 = vunpack.c.l.b16 %v4467
      %v4500 = vunpack.c.l.b16 %v4468
      %v4501 = vunpack.c.l.b16 %v4469
      %v4502 = vunpack.c.l.b16 %v4470
      %v4503 = vunpack.c.l.b16 %v4471
      %v4504 = vunpack.c.l.b16 %v4472
      %v4505 = vunpack.c.l.b16 %v4473
      %v4506 = vunpack.c.l.b16 %v4474
      %v4507 = vunpack.c.l.b16 %v4475
      %v4508 = vunpack.c.l.b16 %v4476
      %v4509 = vunpack.c.l.b16 %v4477
      %v4510 = vunpack.c.l.b16 %v4478
      %v4511 = vpack.c.b16 %v4496, %v4495
      %v4512 = vpack.c.b16 %v4498, %v4497
      %v4513 = vpack.c.b16 %v4500, %v4499
      %v4514 = vpack.c.b16 %v4502, %v4501
      %v4515 = vpack.c.b16 %v4504, %v4503
      %v4516 = vpack.c.b16 %v4506, %v4505
      %v4517 = vpack.c.b16 %v4508, %v4507
      %v4518 = vpack.c.b16 %v4510, %v4509
      %4527 = vmatprep.subr.bf16.mxu0 0
      %4528 = vmatpush1.bf16.msra.mxu0 %v4511
      %4529 = vmatprep.subr.bf16.mxu0 0
      %4530 = vmatpush1.bf16.msra.mxu0 %v4512
      %4531 = vmatprep.subr.bf16.mxu0 0
      %4532 = vmatpush1.bf16.msra.mxu0 %v4513
      %4533 = vmatprep.subr.bf16.mxu0 0
      %4534 = vmatpush1.bf16.msra.mxu0 %v4514
      %4535 = vmatprep.subr.bf16.mxu0 0
      %4536 = vmatpush1.bf16.msra.mxu0 %v4515
      %4537 = vmatprep.subr.bf16.mxu0 0
      %4538 = vmatpush1.bf16.msra.mxu0 %v4516
      %4539 = vmatprep.subr.bf16.mxu0 0
      %4540 = vmatpush1.bf16.msra.mxu0 %v4517
      %4541 = vmatprep.subr.bf16.mxu0 0
      %4542 = vmatpush1.bf16.msra.mxu0 %v4518
      %4543 = vmatprep.subr.bf16.mxu0 0
      %4544 = vmatpush1.bf16.msra.mxu0 0
      %4545 = vmatprep.subr.bf16.mxu0 0
      %4546 = vmatpush1.bf16.msra.mxu0 0
      %4547 = vmatprep.subr.bf16.mxu0 0
      %4548 = vmatpush1.bf16.msra.mxu0 0
      %4549 = vmatprep.subr.bf16.mxu0 0
      %4550 = vmatpush1.bf16.msra.mxu0 0
      %4551 = vmatprep.subr.bf16.mxu0 0
      %4552 = vmatpush1.bf16.msra.mxu0 0
      %4553 = vmatprep.subr.bf16.mxu0 0
      %4554 = vmatpush1.bf16.msra.mxu0 0
      %4555 = vmatprep.subr.bf16.mxu0 0
      %4556 = vmatpush1.bf16.msra.mxu0 0
      %4557 = vmatprep.subr.bf16.mxu0 0
      %4558 = vmatpush1.bf16.msra.mxu0 0
      %4559 = vmatprep.mubr.bf16.mxu0 0
      %4560 = vmatmul.mubr.bf16.gmra.mrb[0].mxu0 %v4444
      %v4561 = vpop.f32.mrb[0].mxu0
      %v4562 = vadd.f32 0.0, %v4561
      %v4563 = vpop.f32.mrb[0].mxu0
      %v4564 = vpop.f32.mrb[0].mxu0
      %v4565 = vadd.f32 0.0, %v4564
      %v4566 = vpop.f32.mrb[0].mxu0
      %4567 = vmatprep.mubr.bf16.mxu0 0
      %4568 = vmatmul.mubr.bf16.gmra.mrb[0].mxu0 %v4445
      %v4569 = vpop.f32.mrb[0].mxu0
      %v4570 = vadd.f32 0.0, %v4569
      %v4571 = vpop.f32.mrb[0].mxu0
      %v4572 = vpop.f32.mrb[0].mxu0
      %v4573 = vadd.f32 0.0, %v4572
      %v4574 = vpop.f32.mrb[0].mxu0
      %4575 = vmatprep.mubr.bf16.mxu0 0
      %4576 = vmatmul.mubr.bf16.gmra.mrb[0].mxu0 %v4446
      %v4577 = vpop.f32.mrb[0].mxu0
      %v4578 = vadd.f32 0.0, %v4577
      %v4579 = vpop.f32.mrb[0].mxu0
      %v4580 = vpop.f32.mrb[0].mxu0
      %v4581 = vadd.f32 0.0, %v4580
      %v4582 = vpop.f32.mrb[0].mxu0
      %4583 = vmatprep.mubr.bf16.mxu0 0
      %4584 = vmatmul.mubr.bf16.gmra.mrb[0].mxu0 %v4447
      %v4585 = vpop.f32.mrb[0].mxu0
      %v4586 = vadd.f32 0.0, %v4585
      %v4587 = vpop.f32.mrb[0].mxu0
      %v4588 = vpop.f32.mrb[0].mxu0
      %v4589 = vadd.f32 0.0, %v4588
      %v4590 = vpop.f32.mrb[0].mxu0
      %4591 = vmatprep.mubr.bf16.mxu0 0
      %4592 = vmatmul.mubr.bf16.gmra.mrb[0].mxu0 %v4448
      %v4593 = vpop.f32.mrb[0].mxu0
      %v4594 = vadd.f32 0.0, %v4593
      %v4595 = vpop.f32.mrb[0].mxu0
      %v4596 = vpop.f32.mrb[0].mxu0
      %v4597 = vadd.f32 0.0, %v4596
      %v4598 = vpop.f32.mrb[0].mxu0
      %4599 = vmatprep.mubr.bf16.mxu0 0
      %4600 = vmatmul.mubr.bf16.gmra.mrb[0].mxu0 %v4449
      %v4601 = vpop.f32.mrb[0].mxu0
      %v4602 = vadd.f32 0.0, %v4601
      %v4603 = vpop.f32.mrb[0].mxu0
      %v4604 = vpop.f32.mrb[0].mxu0
      %v4605 = vadd.f32 0.0, %v4604
      %v4606 = vpop.f32.mrb[0].mxu0
      %4607 = vmatprep.mubr.bf16.mxu0 0
      %4608 = vmatmul.mubr.bf16.gmra.mrb[0].mxu0 %v4450
      %v4609 = vpop.f32.mrb[0].mxu0
      %v4610 = vadd.f32 0.0, %v4609
      %v4611 = vpop.f32.mrb[0].mxu0
      %v4612 = vpop.f32.mrb[0].mxu0
      %v4613 = vadd.f32 0.0, %v4612
      %v4614 = vpop.f32.mrb[0].mxu0
      %4615 = vmatprep.mubr.bf16.mxu0 0
      %4616 = vmatmul.mubr.bf16.gmra.mrb[0].mxu0 %v4451
      %v4617 = vpop.f32.mrb[0].mxu0
      %v4618 = vadd.f32 0.0, %v4617
      %v4619 = vpop.f32.mrb[0].mxu0
      %v4620 = vpop.f32.mrb[0].mxu0
      %v4621 = vadd.f32 0.0, %v4620
      %v4622 = vpop.f32.mrb[0].mxu0
      %4623 = vmatprep.mubr.bf16.mxu0 0
      %4624 = vmatmul.mubr.bf16.gmra.mrb[0].mxu0 %v4452
      %v4625 = vpop.f32.mrb[0].mxu0
      %v4626 = vadd.f32 0.0, %v4625
      %v4627 = vpop.f32.mrb[0].mxu0
      %v4628 = vpop.f32.mrb[0].mxu0
      %v4629 = vadd.f32 0.0, %v4628
      %v4630 = vpop.f32.mrb[0].mxu0
      %4631 = vmatprep.mubr.bf16.mxu0 0
      %4632 = vmatmul.mubr.bf16.gmra.mrb[0].mxu0 %v4453
      %v4633 = vpop.f32.mrb[0].mxu0
      %v4634 = vadd.f32 0.0, %v4633
      %v4635 = vpop.f32.mrb[0].mxu0
      %v4636 = vpop.f32.mrb[0].mxu0
      %v4637 = vadd.f32 0.0, %v4636
      %v4638 = vpop.f32.mrb[0].mxu0
      %4639 = vmatprep.mubr.bf16.mxu0 0
      %4640 = vmatmul.mubr.bf16.gmra.mrb[0].mxu0 %v4454
      %v4641 = vpop.f32.mrb[0].mxu0
      %v4642 = vadd.f32 0.0, %v4641
      %v4643 = vpop.f32.mrb[0].mxu0
      %v4644 = vpop.f32.mrb[0].mxu0
      %v4645 = vadd.f32 0.0, %v4644
      %v4646 = vpop.f32.mrb[0].mxu0
      %4647 = vmatprep.mubr.bf16.mxu0 0
      %4648 = vmatmul.mubr.bf16.gmra.mrb[0].mxu0 %v4455
      %v4649 = vpop.f32.mrb[0].mxu0
      %v4650 = vadd.f32 0.0, %v4649
      %v4651 = vpop.f32.mrb[0].mxu0
      %v4652 = vpop.f32.mrb[0].mxu0
      %v4653 = vadd.f32 0.0, %v4652
      %v4654 = vpop.f32.mrb[0].mxu0
      %4655 = vmatprep.mubr.bf16.mxu0 0
      %4656 = vmatmul.mubr.bf16.gmra.mrb[0].mxu0 %v4456
      %v4657 = vpop.f32.mrb[0].mxu0
      %v4658 = vadd.f32 0.0, %v4657
      %v4659 = vpop.f32.mrb[0].mxu0
      %v4660 = vpop.f32.mrb[0].mxu0
      %v4661 = vadd.f32 0.0, %v4660
      %v4662 = vpop.f32.mrb[0].mxu0
      %4663 = vmatprep.mubr.bf16.mxu0 0
      %4664 = vmatmul.mubr.bf16.gmra.mrb[0].mxu0 %v4457
      %v4665 = vpop.f32.mrb[0].mxu0
      %v4666 = vadd.f32 0.0, %v4665
      %v4667 = vpop.f32.mrb[0].mxu0
      %v4668 = vpop.f32.mrb[0].mxu0
      %v4669 = vadd.f32 0.0, %v4668
      %v4670 = vpop.f32.mrb[0].mxu0
      %4671 = vmatprep.mubr.bf16.mxu0 0
      %4672 = vmatmul.mubr.bf16.gmra.mrb[0].mxu0 %v4458
      %v4673 = vpop.f32.mrb[0].mxu0
      %v4674 = vadd.f32 0.0, %v4673
      %v4675 = vpop.f32.mrb[0].mxu0
      %v4676 = vpop.f32.mrb[0].mxu0
      %v4677 = vadd.f32 0.0, %v4676
      %v4678 = vpop.f32.mrb[0].mxu0
      %4679 = vmatprep.mubr.bf16.mxu0 0
      %4680 = vmatmul.mubr.bf16.gmra.mrb[0].mxu0 %v4459
      %v4681 = vpop.f32.mrb[0].mxu0
      %v4682 = vadd.f32 0.0, %v4681
      %v4683 = vpop.f32.mrb[0].mxu0
      %v4684 = vpop.f32.mrb[0].mxu0
      %v4685 = vadd.f32 0.0, %v4684
      %v4686 = vpop.f32.mrb[0].mxu0
      %4687 = vmatprep.mubr.bf16.mxu0 0
      %4688 = vmatmul.mubr.bf16.gmra.mrb[0].mxu0 %v4460
      %v4689 = vpop.f32.mrb[0].mxu0
      %v4690 = vadd.f32 0.0, %v4689
      %v4691 = vpop.f32.mrb[0].mxu0
      %v4692 = vpop.f32.mrb[0].mxu0
      %v4693 = vadd.f32 0.0, %v4692
      %v4694 = vpop.f32.mrb[0].mxu0
      %4695 = vmatprep.mubr.bf16.mxu0 0
      %4696 = vmatmul.mubr.bf16.gmra.mrb[0].mxu0 %v4461
      %v4697 = vpop.f32.mrb[0].mxu0
      %v4698 = vadd.f32 0.0, %v4697
      %v4699 = vpop.f32.mrb[0].mxu0
      %v4700 = vpop.f32.mrb[0].mxu0
      %v4701 = vadd.f32 0.0, %v4700
      %v4702 = vpop.f32.mrb[0].mxu0
      %4703 = vdwg.mxu0
      %v4704 = vadd.f32 %v4266, %v4562
      %v4705 = vadd.f32 %v4269, %v4565
      %v4706 = vadd.f32 %v4274, %v4570
      %v4707 = vadd.f32 %v4277, %v4573
      %v4708 = vadd.f32 %v4282, %v4578
      %v4709 = vadd.f32 %v4285, %v4581
      %v4710 = vadd.f32 %v4290, %v4586
      %v4711 = vadd.f32 %v4293, %v4589
      %v4712 = vadd.f32 %v4298, %v4594
      %v4713 = vadd.f32 %v4301, %v4597
      %v4714 = vadd.f32 %v4306, %v4602
      %v4715 = vadd.f32 %v4309, %v4605
      %v4716 = vadd.f32 %v4314, %v4610
      %v4717 = vadd.f32 %v4317, %v4613
      %v4718 = vadd.f32 %v4322, %v4618
      %v4719 = vadd.f32 %v4325, %v4621
      %v4720 = vadd.f32 %v4330, %v4626
      %v4721 = vadd.f32 %v4333, %v4629
      %v4722 = vadd.f32 %v4338, %v4634
      %v4723 = vadd.f32 %v4341, %v4637
      %v4724 = vadd.f32 %v4346, %v4642
      %v4725 = vadd.f32 %v4349, %v4645
      %v4726 = vadd.f32 %v4354, %v4650
      %v4727 = vadd.f32 %v4357, %v4653
      %v4728 = vadd.f32 %v4362, %v4658
      %v4729 = vadd.f32 %v4365, %v4661
      %v4730 = vadd.f32 %v4370, %v4666
      %v4731 = vadd.f32 %v4373, %v4669
      %v4732 = vadd.f32 %v4378, %v4674
      %v4733 = vadd.f32 %v4381, %v4677
      %v4734 = vadd.f32 %v4386, %v4682
      %v4735 = vadd.f32 %v4389, %v4685
      %v4736 = vadd.f32 %v4394, %v4690
      %v4737 = vadd.f32 %v4397, %v4693
      %v4738 = vadd.f32 %v4402, %v4698
      %v4739 = vadd.f32 %v4405, %v4701
      %v4740 = vld [vmem:[%s8] sm:$0x1]
      %v4742 = vlaneseq
      %v4743 = vshrl.u32 %v4742, 7
      %v4744 = vsub.s32 0, %v4743
      %v4745 = vrot.slane %v4740, %v4744
      %v4747 = vadd.f32 %v4704, %v4745
      %v4748 = vadd.f32 %v4705, %v4745
      %v4749 = vadd.f32 %v4706, %v4745
      %v4750 = vadd.f32 %v4707, %v4745
      %v4751 = vadd.f32 %v4708, %v4745
      %v4752 = vadd.f32 %v4709, %v4745
      %v4753 = vadd.f32 %v4710, %v4745
      %v4754 = vadd.f32 %v4711, %v4745
      %v4755 = vadd.f32 %v4712, %v4745
      %v4756 = vadd.f32 %v4713, %v4745
      %v4757 = vadd.f32 %v4714, %v4745
      %v4758 = vadd.f32 %v4715, %v4745
      %v4759 = vadd.f32 %v4716, %v4745
      %v4760 = vadd.f32 %v4717, %v4745
      %v4761 = vadd.f32 %v4718, %v4745
      %v4762 = vadd.f32 %v4719, %v4745
      %v4763 = vadd.f32 %v4720, %v4745
      %v4764 = vadd.f32 %v4721, %v4745
      %v4765 = vadd.f32 %v4722, %v4745
      %v4766 = vadd.f32 %v4723, %v4745
      %v4767 = vadd.f32 %v4724, %v4745
      %v4768 = vadd.f32 %v4725, %v4745
      %v4769 = vadd.f32 %v4726, %v4745
      %v4770 = vadd.f32 %v4727, %v4745
      %v4771 = vadd.f32 %v4728, %v4745
      %v4772 = vadd.f32 %v4729, %v4745
      %v4773 = vadd.f32 %v4730, %v4745
      %v4774 = vadd.f32 %v4731, %v4745
      %v4775 = vadd.f32 %v4732, %v4745
      %v4776 = vadd.f32 %v4733, %v4745
      %v4777 = vadd.f32 %v4734, %v4745
      %v4778 = vadd.f32 %v4735, %v4745
      %v4779 = vadd.f32 %v4736, %v4745
      %v4780 = vadd.f32 %v4737, %v4745
      %v4781 = vadd.f32 %v4738, %v4745
      %v4782 = vadd.f32 %v4739, %v4745
      %v4783 = vmul.f32 %v4747, %v1402
      %v4784 = vmul.f32 %v4748, %v1407
      %v4785 = vmul.f32 %v4749, %v1412
      %v4786 = vmul.f32 %v4750, %v1417
      %v4787 = vmul.f32 %v4751, %v1422
      %v4788 = vmul.f32 %v4752, %v1427
      %v4789 = vmul.f32 %v4753, %v1432
      %v4790 = vmul.f32 %v4754, %v1437
      %v4791 = vmul.f32 %v4755, %v1442
      %v4792 = vmul.f32 %v4756, %v1447
      %v4793 = vmul.f32 %v4757, %v1452
      %v4794 = vmul.f32 %v4758, %v1457
      %v4795 = vmul.f32 %v4759, %v1462
      %v4796 = vmul.f32 %v4760, %v1467
      %v4797 = vmul.f32 %v4761, %v1472
      %v4798 = vmul.f32 %v4762, %v1477
      %v4799 = vmul.f32 %v4763, %v1482
      %v4800 = vmul.f32 %v4764, %v1487
      %v4801 = vmul.f32 %v4765, %v1492
      %v4802 = vmul.f32 %v4766, %v1497
      %v4803 = vmul.f32 %v4767, %v1502
      %v4804 = vmul.f32 %v4768, %v1507
      %v4805 = vmul.f32 %v4769, %v1512
      %v4806 = vmul.f32 %v4770, %v1517
      %v4807 = vmul.f32 %v4771, %v1522
      %v4808 = vmul.f32 %v4772, %v1527
      %v4809 = vmul.f32 %v4773, %v1532
      %v4810 = vmul.f32 %v4774, %v1537
      %v4811 = vmul.f32 %v4775, %v1542
      %v4812 = vmul.f32 %v4776, %v1547
      %v4813 = vmul.f32 %v4777, %v1552
      %v4814 = vmul.f32 %v4778, %v1557
      %v4815 = vmul.f32 %v4779, %v1562
      %v4816 = vmul.f32 %v4780, %v1567
      %v4817 = vmul.f32 %v4781, %v1572
      %v4818 = vmul.f32 %v4782, %v1577
      %v4819 = vld [vmem:[%s354 + $0x12] sm:$0xff]
      %v4820 = vld [vmem:[%s354 + $0x1a] sm:$0xff]
      %v4821 = vld [vmem:[%s354 + $0x22] sm:$0xff]
      %v4822 = vld [vmem:[%s354 + $0x2a] sm:$0xff]
      %v4823 = vld [vmem:[%s354 + $0x32] sm:$0xff]
      %v4824 = vld [vmem:[%s354 + $0x3a] sm:$0xff]
      %v4825 = vld [vmem:[%s354 + $0x42] sm:$0xff]
      %v4826 = vld [vmem:[%s354 + $0x4a] sm:$0xff]
      %v4827 = vld [vmem:[%s354 + $0x52] sm:$0xff]
      %v4828 = vld [vmem:[%s354 + $0x5a] sm:$0xff]
      %v4829 = vld [vmem:[%s354 + $0x62] sm:$0xff]
      %v4830 = vld [vmem:[%s354 + $0x6a] sm:$0xff]
      %v4831 = vld [vmem:[%s354 + $0x72] sm:$0xff]
      %v4832 = vld [vmem:[%s354 + $0x7a] sm:$0xff]
      %v4833 = vld [vmem:[%s354 + $0x82] sm:$0xff]
      %v4834 = vld [vmem:[%s354 + $0x8a] sm:$0xff]
      %v4835 = vld [vmem:[%s354 + $0x92] sm:$0xff]
      %v4836 = vld [vmem:[%s354 + $0x9a] sm:$0xff]
      %v4837 = vld [vmem:[%s354 + $0xa2] sm:$0xff]
      %v4838 = vld [vmem:[%s354 + $0xaa] sm:$0xff]
      %v4839 = vld [vmem:[%s354 + $0xb2] sm:$0xff]
      %v4840 = vld [vmem:[%s354 + $0xba] sm:$0xff]
      %v4841 = vld [vmem:[%s354 + $0xc2] sm:$0xff]
      %v4842 = vld [vmem:[%s354 + $0xca] sm:$0xff]
      %v4843 = vld [vmem:[%s354 + $0xd2] sm:$0xff]
      %v4844 = vld [vmem:[%s354 + $0xda] sm:$0xff]
      %v4845 = vld [vmem:[%s354 + $0xe2] sm:$0xff]
      %v4846 = vld [vmem:[%s354 + $0xea] sm:$0xff]
      %v4847 = vld [vmem:[%s354 + $0xf2] sm:$0xff]
      %v4848 = vld [vmem:[%s354 + $0xfa] sm:$0xff]
      %v4849 = vld [vmem:[%s354 + $0x102] sm:$0xff]
      %v4850 = vld [vmem:[%s354 + $0x10a] sm:$0xff]
      %v4851 = vld [vmem:[%s354 + $0x112] sm:$0xff]
      %v4852 = vld [vmem:[%s354 + $0x11a] sm:$0xff]
      %v4853 = vld [vmem:[%s354 + $0x122] sm:$0xff]
      %v4854 = vld [vmem:[%s354 + $0x12a] sm:$0xff]
      %v4855 = vadd.f32 %v4783, %v4819
      %v4856 = vadd.f32 %v4784, %v4820
      %v4857 = vadd.f32 %v4785, %v4821
      %v4858 = vadd.f32 %v4786, %v4822
      %v4859 = vadd.f32 %v4787, %v4823
      %v4860 = vadd.f32 %v4788, %v4824
      %v4861 = vadd.f32 %v4789, %v4825
      %v4862 = vadd.f32 %v4790, %v4826
      %v4863 = vadd.f32 %v4791, %v4827
      %v4864 = vadd.f32 %v4792, %v4828
      %v4865 = vadd.f32 %v4793, %v4829
      %v4866 = vadd.f32 %v4794, %v4830
      %v4867 = vadd.f32 %v4795, %v4831
      %v4868 = vadd.f32 %v4796, %v4832
      %v4869 = vadd.f32 %v4797, %v4833
      %v4870 = vadd.f32 %v4798, %v4834
      %v4871 = vadd.f32 %v4799, %v4835
      %v4872 = vadd.f32 %v4800, %v4836
      %v4873 = vadd.f32 %v4801, %v4837
      %v4874 = vadd.f32 %v4802, %v4838
      %v4875 = vadd.f32 %v4803, %v4839
      %v4876 = vadd.f32 %v4804, %v4840
      %v4877 = vadd.f32 %v4805, %v4841
      %v4878 = vadd.f32 %v4806, %v4842
      %v4879 = vadd.f32 %v4807, %v4843
      %v4880 = vadd.f32 %v4808, %v4844
      %v4881 = vadd.f32 %v4809, %v4845
      %v4882 = vadd.f32 %v4810, %v4846
      %v4883 = vadd.f32 %v4811, %v4847
      %v4884 = vadd.f32 %v4812, %v4848
      %v4885 = vadd.f32 %v4813, %v4849
      %v4886 = vadd.f32 %v4814, %v4850
      %v4887 = vadd.f32 %v4815, %v4851
      %v4888 = vadd.f32 %v4816, %v4852
      %v4889 = vadd.f32 %v4817, %v4853
      %v4890 = vadd.f32 %v4818, %v4854
      %v4891 = vmax.f32 %v4855, 0.0
      %v4892 = vmax.f32 %v4856, 0.0
      %v4893 = vmax.f32 %v4857, 0.0
      %v4894 = vmax.f32 %v4858, 0.0
      %v4895 = vmax.f32 %v4859, 0.0
      %v4896 = vmax.f32 %v4860, 0.0
      %v4897 = vmax.f32 %v4861, 0.0
      %v4898 = vmax.f32 %v4862, 0.0
      %v4899 = vmax.f32 %v4863, 0.0
      %v4900 = vmax.f32 %v4864, 0.0
      %v4901 = vmax.f32 %v4865, 0.0
      %v4902 = vmax.f32 %v4866, 0.0
      %v4903 = vmax.f32 %v4867, 0.0
      %v4904 = vmax.f32 %v4868, 0.0
      %v4905 = vmax.f32 %v4869, 0.0
      %v4906 = vmax.f32 %v4870, 0.0
      %v4907 = vmax.f32 %v4871, 0.0
      %v4908 = vmax.f32 %v4872, 0.0
      %v4909 = vmax.f32 %v4873, 0.0
      %v4910 = vmax.f32 %v4874, 0.0
      %v4911 = vmax.f32 %v4875, 0.0
      %v4912 = vmax.f32 %v4876, 0.0
      %v4913 = vmax.f32 %v4877, 0.0
      %v4914 = vmax.f32 %v4878, 0.0
      %v4915 = vmax.f32 %v4879, 0.0
      %v4916 = vmax.f32 %v4880, 0.0
      %v4917 = vmax.f32 %v4881, 0.0
      %v4918 = vmax.f32 %v4882, 0.0
      %v4919 = vmax.f32 %v4883, 0.0
      %v4920 = vmax.f32 %v4884, 0.0
      %v4921 = vmax.f32 %v4885, 0.0
      %v4922 = vmax.f32 %v4886, 0.0
      %v4923 = vmax.f32 %v4887, 0.0
      %v4924 = vmax.f32 %v4888, 0.0
      %v4925 = vmax.f32 %v4889, 0.0
      %v4926 = vmax.f32 %v4890, 0.0
      %4927 = vst [vmem:[%s359] sm:$0xff] %v4891
      %4928 = vst [vmem:[%s359 + $0x8] sm:$0xff] %v4892
      %4929 = vst [vmem:[%s359 + $0x10] sm:$0xff] %v4893
      %4930 = vst [vmem:[%s359 + $0x18] sm:$0xff] %v4894
      %4931 = vst [vmem:[%s359 + $0x20] sm:$0xff] %v4895
      %4932 = vst [vmem:[%s359 + $0x28] sm:$0xff] %v4896
      %4933 = vst [vmem:[%s359 + $0x30] sm:$0xff] %v4897
      %4934 = vst [vmem:[%s359 + $0x38] sm:$0xff] %v4898
      %4935 = vst [vmem:[%s359 + $0x40] sm:$0xff] %v4899
      %4936 = vst [vmem:[%s359 + $0x48] sm:$0xff] %v4900
      %4937 = vst [vmem:[%s359 + $0x50] sm:$0xff] %v4901
      %4938 = vst [vmem:[%s359 + $0x58] sm:$0xff] %v4902
      %4939 = vst [vmem:[%s359 + $0x60] sm:$0xff] %v4903
      %4940 = vst [vmem:[%s359 + $0x68] sm:$0xff] %v4904
      %4941 = vst [vmem:[%s359 + $0x70] sm:$0xff] %v4905
      %4942 = vst [vmem:[%s359 + $0x78] sm:$0xff] %v4906
      %4943 = vst [vmem:[%s359 + $0x80] sm:$0xff] %v4907
      %4944 = vst [vmem:[%s359 + $0x88] sm:$0xff] %v4908
      %4945 = vst [vmem:[%s359 + $0x90] sm:$0xff] %v4909
      %4946 = vst [vmem:[%s359 + $0x98] sm:$0xff] %v4910
      %4947 = vst [vmem:[%s359 + $0xa0] sm:$0xff] %v4911
      %4948 = vst [vmem:[%s359 + $0xa8] sm:$0xff] %v4912
      %4949 = vst [vmem:[%s359 + $0xb0] sm:$0xff] %v4913
      %4950 = vst [vmem:[%s359 + $0xb8] sm:$0xff] %v4914
      %4951 = vst [vmem:[%s359 + $0xc0] sm:$0xff] %v4915
      %4952 = vst [vmem:[%s359 + $0xc8] sm:$0xff] %v4916
      %4953 = vst [vmem:[%s359 + $0xd0] sm:$0xff] %v4917
      %4954 = vst [vmem:[%s359 + $0xd8] sm:$0xff] %v4918
      %4955 = vst [vmem:[%s359 + $0xe0] sm:$0xff] %v4919
      %4956 = vst [vmem:[%s359 + $0xe8] sm:$0xff] %v4920
      %4957 = vst [vmem:[%s359 + $0xf0] sm:$0xff] %v4921
      %4958 = vst [vmem:[%s359 + $0xf8] sm:$0xff] %v4922
      %4959 = vst [vmem:[%s359 + $0x100] sm:$0xff] %v4923
      %4960 = vst [vmem:[%s359 + $0x108] sm:$0xff] %v4924
      %4961 = vst [vmem:[%s359 + $0x110] sm:$0xff] %v4925
      %4962 = vst [vmem:[%s359 + $0x118] sm:$0xff] %v4926
      %p4963 = scmp.lt.s32.totalorder %s21, 1
      %s4964 = scalar_select %p4963, %s21, 1
      %s4965 = smul.addr %s4964, 36
      %s4966 = smul.addr %s4965, 8
      %s4967 = scalar_lea.vmem %s10, %s4966
      // Predicated region
      $region61: #{nonbottleneck1d_forward.1} parent=59 // pred_check
        %p4968 = pneg %p254
      $region62: #{nonbottleneck1d_forward.1} parent=59 // pred_check_branch
        %4970 = sbr.rel (%p4968) target = $region64
      $region63: #{nonbottleneck1d_forward.1} parent=59 // pred_region
        _
      $region64: #{nonbottleneck1d_forward.1} parent=59 // pred_fallthru
        _
    $region60: #{nonbottleneck1d_forward.1} parent=5 // pred_fallthru
      _
    %p4971 = scmp.le.s32.totalorder 2, %s16
    // Predicated region
    $region65: #{nonbottleneck1d_forward.1} parent=5 // pred_check
      %p4972 = pneg %p4971
    $region66: #{nonbottleneck1d_forward.1} parent=5 // pred_check_branch
      %4974 = sbr.rel (%p4972) target = $region68
    $region67: #{nonbottleneck1d_forward.1} parent=5 // pred_region
      %s4975 = ssub.s32 %s16, 2
      // Predicated region
      $region69: #{nonbottleneck1d_forward.1} parent=67 // pred_check
        %p4976 = pneg %p260
      $region70: #{nonbottleneck1d_forward.1} parent=67 // pred_check_branch
        %4978 = sbr.rel (%p4976) target = $region72
      $region71: #{nonbottleneck1d_forward.1} parent=67 // pred_region
        %p4979 = scmp.lt.s32.totalorder %s22, 1
        %s4980 = scalar_select %p4979, %s22, 1
        %s4981 = smul.addr %s4980, 36
        %s4982 = smul.addr %s4981, 8
        %s4983 = scalar_lea.vmem %s10, %s4982
      $region72: #{nonbottleneck1d_forward.1} parent=67 // pred_fallthru
        _
    $region68: #{nonbottleneck1d_forward.1} parent=5 // pred_fallthru
      _
  $region6: #{nonbottleneck1d_forward.1} parent=0 // loop_footer
    %s20 = sadd.s32 1, %s16
  $region7: #{nonbottleneck1d_forward.1} parent=0 // loop_footer_branch
    %15 = sbr.rel target = $region3
  $region8: #{nonbottleneck1d_forward.1} parent=0 // loop_exit
    _

</llo_original>
